<compile_context>
chip_gen: v7x
topology: tpu7x:2x2x1
jax: 0.10.0
libtpu: 0.0.40
codegen_flags: <defaults>
</compile_context>

<pallas_src>
import math
from functools import partial

import jax
import jax.numpy as jnp
from jax.experimental import pallas as pl
from jax.experimental.pallas import tpu as pltpu


MXU_DTYPE = jnp.bfloat16   # matmul operand dtype (set to jnp.float32 for full f32)
MASK_NEG = -1e30           # finite "minus infinity" for key-padding bias


def _round_up(x, m):
    return (x + m - 1) // m * m


def _row_tiling(m, target=256):
    """Pick a row tile (multiple of 8, up to `target`) and the padded row count."""
    tm = min(target, _round_up(m, 8))
    return _round_up(m, tm), tm


def _ff_chunk(d_ff, target=512):
    for c in (target, 256, 128):
        if d_ff % c == 0:
            return c
    return d_ff


def _pad_rows(x, mp):
    m = x.shape[0]
    return x if mp == m else jnp.pad(x, ((0, mp - m), (0, 0)))


# ----------------------------- Pallas kernels ------------------------------ #

def _embed_kernel(x_ref, w_ref, b_ref, pe_ref, o_ref):
    # o = x @ W_emb + b + pe   (one batch element per grid step)
    x = x_ref[0]                                                  # [S, F] f32
    acc = jnp.dot(x.astype(MXU_DTYPE), w_ref[...],
                  preferred_element_type=jnp.float32)
    o_ref[0] = acc + b_ref[...] + pe_ref[...]


def embed(x, w, b, pe):
    B, S, F = x.shape
    D = w.shape[1]
    return pl.pallas_call(
        _embed_kernel,
        out_shape=jax.ShapeDtypeStruct((B, S, D), jnp.float32),
        grid_spec=pltpu.PrefetchScalarGridSpec(
            num_scalar_prefetch=0,
            grid=(B,),
            in_specs=[
                pl.BlockSpec((1, S, F), lambda b: (b, 0, 0)),
                pl.BlockSpec((F, D), lambda b: (0, 0)),
                pl.BlockSpec((1, D), lambda b: (0, 0)),
                pl.BlockSpec((S, D), lambda b: (0, 0)),
            ],
            out_specs=pl.BlockSpec((1, S, D), lambda b: (b, 0, 0)),
        ),
        compiler_params=pltpu.CompilerParams(dimension_semantics=("parallel",)),
    )(x, w, b, pe)


def _attn_block_kernel(x_ref, bias_ref, wi_ref, bi_ref, wo_ref, bo_ref,
                       g_ref, beta_ref, o_ref, qkv_ref,
                       *, n_heads, d_head, eps):
    # Fully fused attention block for one batch element (post-norm):
    #   qkv = x @ Wi + bi ; ctx = MHA(qkv, key_padding_bias)
    #   y   = x + ctx @ Wo + bo ; out = LayerNorm(y)
    S = x_ref.shape[1]
    D = n_heads * d_head
    scale = 1.0 / math.sqrt(d_head)

    x = x_ref[0]                                                  # [S, D] f32
    qkv_ref[...] = (jnp.dot(x.astype(MXU_DTYPE), wi_ref[...],
                            preferred_element_type=jnp.float32)
                    + bi_ref[...])                                # [S, 3D] f32
    bias = bias_ref[0]                                            # [1, S]

    attn = jnp.zeros((S, D), jnp.float32)
    for h in range(n_heads):                                      # static unroll
        lo = h * d_head
        q = qkv_ref[:, pl.ds(lo, d_head)]
        k = qkv_ref[:, pl.ds(D + lo, d_head)]
        v = qkv_ref[:, pl.ds(2 * D + lo, d_head)]
        s = jax.lax.dot_general(q.astype(MXU_DTYPE), k.astype(MXU_DTYPE),
                                (((1,), (1,)), ((), ())),
                                preferred_element_type=jnp.float32) * scale
        s = s + bias                                              # key-padding bias
        m = jnp.max(s, axis=-1, keepdims=True)
        p = jnp.exp(s - m)
        p = p / jnp.sum(p, axis=-1, keepdims=True)
        ctx = jnp.dot(p.astype(MXU_DTYPE), v.astype(MXU_DTYPE),
                      preferred_element_type=jnp.float32)         # [S, d_head]
        attn = attn + jnp.dot(ctx.astype(MXU_DTYPE),
                              wo_ref[pl.ds(lo, d_head), :],
                              preferred_element_type=jnp.float32)

    y = x + attn + bo_ref[...]
    mu = jnp.mean(y, axis=-1, keepdims=True)
    var = jnp.mean(jnp.square(y - mu), axis=-1, keepdims=True)
    o_ref[0] = (y - mu) * jax.lax.rsqrt(var + eps) * g_ref[...] + beta_ref[...]


def attention_block(x, mask_bias, wi, bi, wo, bo, g, beta, *, n_heads, eps=1e-5):
    B, S, D = x.shape
    d_head = D // n_heads
    return pl.pallas_call(
        partial(_attn_block_kernel, n_heads=n_heads, d_head=d_head, eps=eps),
        out_shape=jax.ShapeDtypeStruct((B, S, D), jnp.float32),
        grid_spec=pltpu.PrefetchScalarGridSpec(
            num_scalar_prefetch=0,
            grid=(B,),
            in_specs=[
                pl.BlockSpec((1, S, D), lambda b: (b, 0, 0)),
                pl.BlockSpec((1, 1, S), lambda b: (b, 0, 0)),
                pl.BlockSpec((D, 3 * D), lambda b: (0, 0)),
                pl.BlockSpec((1, 3 * D), lambda b: (0, 0)),
                pl.BlockSpec((D, D), lambda b: (0, 0)),
                pl.BlockSpec((1, D), lambda b: (0, 0)),
                pl.BlockSpec((1, D), lambda b: (0, 0)),
                pl.BlockSpec((1, D), lambda b: (0, 0)),
            ],
            out_specs=pl.BlockSpec((1, S, D), lambda b: (b, 0, 0)),
            scratch_shapes=[pltpu.VMEM((S, 3 * D), jnp.float32)],
        ),
        compiler_params=pltpu.CompilerParams(dimension_semantics=("parallel",)),
    )(x, mask_bias, wi, bi, wo, bo, g, beta)


def _ffn_kernel(x_ref, w1_ref, b1_ref, w2_ref, b2_ref, g_ref, beta_ref,
                o_ref, acc_ref, *, eps):
    # Fused FFN block: out = LayerNorm(x + relu(x@W1+b1) @ W2 + b2)
    # Grid axis 1 tiles the hidden (d_ff) dimension; acc_ref accumulates in f32.
    j = pl.program_id(1)

    @pl.when(j == 0)
    def _init():
        acc_ref[...] = jnp.zeros_like(acc_ref)

    x = x_ref[...]                                                # [tm, D] f32
    h = jnp.dot(x.astype(MXU_DTYPE), w1_ref[...],
                preferred_element_type=jnp.float32) + b1_ref[...]
    h = jnp.maximum(h, 0.0)
    acc_ref[...] += jnp.dot(h.astype(MXU_DTYPE), w2_ref[...],
                            preferred_element_type=jnp.float32)

    @pl.when(j == pl.num_programs(1) - 1)
    def _finalize():
        y = x + acc_ref[...] + b2_ref[...]
        mu = jnp.mean(y, axis=-1, keepdims=True)
        var = jnp.mean(jnp.square(y - mu), axis=-1, keepdims=True)
        o_ref[...] = (y - mu) * jax.lax.rsqrt(var + eps) * g_ref[...] + beta_ref[...]


def ffn_block(x, w1, b1, w2, b2, g, beta, *, eps=1e-5):
    M, D = x.shape
    F = w1.shape[1]
    mp, tm = _row_tiling(M)
    tff = _ff_chunk(F)
    xp = _pad_rows(x, mp)
    out = pl.pallas_call(
        partial(_ffn_kernel, eps=eps),
        out_shape=jax.ShapeDtypeStruct((mp, D), jnp.float32),
        grid_spec=pltpu.PrefetchScalarGridSpec(
            num_scalar_prefetch=0,
            grid=(mp // tm, F // tff),
            in_specs=[
                pl.BlockSpec((tm, D), lambda i, j: (i, 0)),
                pl.BlockSpec((D, tff), lambda i, j: (0, j)),
                pl.BlockSpec((1, tff), lambda i, j: (0, j)),
                pl.BlockSpec((tff, D), lambda i, j: (j, 0)),
                pl.BlockSpec((1, D), lambda i, j: (0, 0)),
                pl.BlockSpec((1, D), lambda i, j: (0, 0)),
                pl.BlockSpec((1, D), lambda i, j: (0, 0)),
            ],
            out_specs=pl.BlockSpec((tm, D), lambda i, j: (i, 0)),
            scratch_shapes=[pltpu.VMEM((tm, D), jnp.float32)],
        ),
        compiler_params=pltpu.CompilerParams(
            dimension_semantics=("parallel", "arbitrary")),
    )(xp, w1, b1, w2, b2, g, beta)
    return out[:M] if mp != M else out


def _fc_kernel(x_ref, w_ref, b_ref, o_ref):
    o_ref[...] = (jnp.dot(x_ref[...].astype(MXU_DTYPE), w_ref[...],
                          preferred_element_type=jnp.float32) + b_ref[...])


def fc_out(x, w, b):
    M, D = x.shape
    N = w.shape[1]
    Np = _round_up(N, 128)                    # lane-dense output stores
    if Np != N:
        w = jnp.pad(w, ((0, 0), (0, Np - N)))
        b = jnp.pad(b, ((0, 0), (0, Np - N)))
    mp, tm = _row_tiling(M)
    xp = _pad_rows(x, mp)
    out = pl.pallas_call(
        _fc_kernel,
        out_shape=jax.ShapeDtypeStruct((mp, Np), jnp.float32),
        grid_spec=pltpu.PrefetchScalarGridSpec(
            num_scalar_prefetch=0,
            grid=(mp // tm,),
            in_specs=[
                pl.BlockSpec((tm, D), lambda i: (i, 0)),
                pl.BlockSpec((D, Np), lambda i: (0, 0)),
                pl.BlockSpec((1, Np), lambda i: (0, 0)),
            ],
            out_specs=pl.BlockSpec((tm, Np), lambda i: (i, 0)),
        ),
        compiler_params=pltpu.CompilerParams(dimension_semantics=("parallel",)),
    )(xp, w, b)
    return out[:M, :N]


# ------------------------------- model glue -------------------------------- #

def make_positional_encoding(max_len, d_model):
    position = jnp.arange(max_len, dtype=jnp.float32)[:, None]
    div_term = jnp.exp(jnp.arange(0, d_model, 2, dtype=jnp.float32)
                       * (-math.log(10000.0) / d_model))
    pe = jnp.zeros((max_len, d_model), jnp.float32)
    pe = pe.at[:, 0::2].set(jnp.sin(position * div_term))
    if d_model % 2 == 1:
        pe = pe.at[:, 1::2].set(jnp.cos(position * div_term[:-1]))
    else:
        pe = pe.at[:, 1::2].set(jnp.cos(position * div_term))
    return pe


def disturbance_transformer(x, attention_mask, params, *, n_heads):
    B, S, _ = x.shape
    D = params["pe"].shape[1]

    h = embed(x, params["emb_w"], params["emb_b"], params["pe"][:S])

    # key_padding_mask semantics: True -> key is ignored (large negative bias)
    mask_bias = jnp.where(attention_mask, MASK_NEG, 0.0).astype(jnp.float32)
    mask_bias = mask_bias[:, None, :]                             # [B, 1, S]

    for lp in params["layers"]:
        h = attention_block(h, mask_bias, lp["in_w"], lp["in_b"],
                            lp["out_w"], lp["out_b"], lp["ln1_g"], lp["ln1_b"],
                            n_heads=n_heads)
        hf = ffn_block(h.reshape(B * S, D), lp["ff1_w"], lp["ff1_b"],
                       lp["ff2_w"], lp["ff2_b"], lp["ln2_g"], lp["ln2_b"])
        h = hf.reshape(B, S, D)

    logits = fc_out(h.reshape(B * S, D), params["fc_w"], params["fc_b"])
    return logits.reshape(B, S, -1)


def init_params(key, n_features, d_model, n_layers, n_classes, seq_len, d_ff=2048):
    def dense(k, fan_in, fan_out):
        kw, kb = jax.random.split(k)
        bound = 1.0 / math.sqrt(fan_in)
        w = jax.random.uniform(kw, (fan_in, fan_out), jnp.float32, -bound, bound)
        b = jax.random.uniform(kb, (1, fan_out), jnp.float32, -bound, bound)
        return w.astype(MXU_DTYPE), b                  # weights bf16, biases f32

    keys = jax.random.split(key, 2 + n_layers)
    emb_w, emb_b = dense(keys[0], n_features, d_model)
    fc_w, fc_b = dense(keys[1], d_model, n_classes)
    layers = []
    for li in range(n_layers):
        lk = jax.random.split(keys[2 + li], 4)
        in_w, in_b = dense(lk[0], d_model, 3 * d_model)
        out_w, out_b = dense(lk[1], d_model, d_model)
        ff1_w, ff1_b = dense(lk[2], d_model, d_ff)
        ff2_w, ff2_b = dense(lk[3], d_ff, d_model)
        layers.append(dict(
            in_w=in_w, in_b=in_b, out_w=out_w, out_b=out_b,
            ff1_w=ff1_w, ff1_b=ff1_b, ff2_w=ff2_w, ff2_b=ff2_b,
            ln1_g=jnp.ones((1, d_model), jnp.float32),
            ln1_b=jnp.zeros((1, d_model), jnp.float32),
            ln2_g=jnp.ones((1, d_model), jnp.float32),
            ln2_b=jnp.zeros((1, d_model), jnp.float32),
        ))
    return dict(emb_w=emb_w, emb_b=emb_b, fc_w=fc_w, fc_b=fc_b,
                pe=make_positional_encoding(seq_len, d_model), layers=layers)


# ---------------------------------- main ------------------------------------ #

if __name__ == "__main__":
    B, S = 2, 8
    N_FEATURES, D_MODEL, N_HEADS, N_LAYERS, N_CLASSES = 4, 32, 4, 2, 3

    key = jax.random.PRNGKey(0)
    kp, kx = jax.random.split(key)
    params = init_params(kp, N_FEATURES, D_MODEL, N_LAYERS, N_CLASSES, S)

    x = jax.random.normal(kx, (B, S, N_FEATURES), jnp.float32)
    # True = padding (ignored) — mask out the last two tokens of batch element 1.
    attention_mask = jnp.zeros((B, S), dtype=bool).at[1, 6:].set(True)

    fwd = jax.jit(partial(disturbance_transformer, n_heads=N_HEADS))
    logits = fwd(x, attention_mask, params)
    jax.block_until_ready(logits)

    assert logits.shape == (B, S, N_CLASSES)
    assert bool(jnp.all(jnp.isfinite(logits)))
    print("KERNEL_OK")
</pallas_src>

<mosaic_0001>
module attributes {stable_mosaic.version = 11 : i64} {
  func.func @_embed_kernel(%arg0: i32, %arg1: memref<1x8x4xf32, #tpu.memory_space<vmem>>, %arg2: memref<4x32xbf16, #tpu.memory_space<vmem>>, %arg3: memref<1x32xf32, #tpu.memory_space<vmem>>, %arg4: memref<8x32xf32, #tpu.memory_space<vmem>>, %arg5: memref<1x8x32xf32, #tpu.memory_space<vmem>>) attributes {dimension_semantics = [#tpu.dimension_semantics<parallel>], iteration_bounds = array<i64: 2>, scalar_prefetch = 0 : i64, scratch_operands = 0 : i64, tpu.core_type = #tpu.core_type<tc>, window_params = [{transform_indices = @transform_0, window_bounds = array<i64: 1, 8, 4>}, {pipeline_mode = #tpu.pipeline_mode<synchronous>, transform_indices = @transform_1, window_bounds = array<i64: 4, 32>}, {pipeline_mode = #tpu.pipeline_mode<synchronous>, transform_indices = @transform_2, window_bounds = array<i64: 1, 32>}, {pipeline_mode = #tpu.pipeline_mode<synchronous>, transform_indices = @transform_3, window_bounds = array<i64: 8, 32>}, {transform_indices = @transform_4, window_bounds = array<i64: 1, 8, 32>}]} {
    %c0 = arith.constant 0 : index
    %c0_0 = arith.constant 0 : index
    %c0_1 = arith.constant 0 : index
    %0 = vector.load %arg1[%c0, %c0_0, %c0_1] : memref<1x8x4xf32, #tpu.memory_space<vmem>>, vector<1x8x4xf32>
    %1 = vector.shape_cast %0 : vector<1x8x4xf32> to vector<8x4xf32>
    %2 = arith.truncf %1 : vector<8x4xf32> to vector<8x4xbf16>
    %c0_2 = arith.constant 0 : index
    %c0_3 = arith.constant 0 : index
    %3 = vector.load %arg2[%c0_2, %c0_3] : memref<4x32xbf16, #tpu.memory_space<vmem>>, vector<4x32xbf16>
    %cst = arith.constant dense<0.000000e+00> : vector<8x32xf32>
    %4 = tpu.matmul %2, %3, %cst {dimension_numbers = #tpu.dot_dimension_numbers<[1], [0], [0], [1], [0, 0, 1, 1], [], []>} : vector<8x4xbf16>, vector<4x32xbf16>, vector<8x32xf32> -> vector<8x32xf32>
    %c0_4 = arith.constant 0 : index
    %c0_5 = arith.constant 0 : index
    %5 = vector.load %arg3[%c0_4, %c0_5] : memref<1x32xf32, #tpu.memory_space<vmem>>, vector<1x32xf32>
    %6 = vector.broadcast %5 : vector<1x32xf32> to vector<8x32xf32>
    %7 = arith.addf %4, %6 : vector<8x32xf32>
    %c0_6 = arith.constant 0 : index
    %c0_7 = arith.constant 0 : index
    %8 = vector.load %arg4[%c0_6, %c0_7] : memref<8x32xf32, #tpu.memory_space<vmem>>, vector<8x32xf32>
    %9 = arith.addf %7, %8 : vector<8x32xf32>
    %c0_8 = arith.constant 0 : index
    %c0_9 = arith.constant 0 : index
    %c0_10 = arith.constant 0 : index
    %10 = vector.load %arg5[%c0_8, %c0_9, %c0_10] : memref<1x8x32xf32, #tpu.memory_space<vmem>>, vector<1x8x32xf32>
    %11 = vector.shape_cast %10 : vector<1x8x32xf32> to vector<8x32xf32>
    %12 = vector.shape_cast %9 : vector<8x32xf32> to vector<1x8x32xf32>
    tpu.vector_store %arg5[%c0_8, %c0_9, %c0_10], %12 {strides = array<i32>} : memref<1x8x32xf32, #tpu.memory_space<vmem>>, vector<1x8x32xf32>,
    return
  }
  func.func @transform_0(%arg0: i32) -> (i32, i32, i32) {
    %c0_i32 = arith.constant 0 : i32
    %c0_i32_0 = arith.constant 0 : i32
    %c0_i32_1 = arith.constant 0 : i32
    return %arg0, %c0_i32, %c0_i32_0 : i32, i32, i32
  }
  func.func @transform_1(%arg0: i32) -> (i32, i32) {
    %c0_i32 = arith.constant 0 : i32
    %c0_i32_0 = arith.constant 0 : i32
    %c0_i32_1 = arith.constant 0 : i32
    return %c0_i32, %c0_i32_0 : i32, i32
  }
  func.func @transform_2(%arg0: i32) -> (i32, i32) {
    %c0_i32 = arith.constant 0 : i32
    %c0_i32_0 = arith.constant 0 : i32
    %c0_i32_1 = arith.constant 0 : i32
    return %c0_i32, %c0_i32_0 : i32, i32
  }
  func.func @transform_3(%arg0: i32) -> (i32, i32) {
    %c0_i32 = arith.constant 0 : i32
    %c0_i32_0 = arith.constant 0 : i32
    %c0_i32_1 = arith.constant 0 : i32
    return %c0_i32, %c0_i32_0 : i32, i32
  }
  func.func @transform_4(%arg0: i32) -> (i32, i32, i32) {
    %c0_i32 = arith.constant 0 : i32
    %c0_i32_0 = arith.constant 0 : i32
    %c0_i32_1 = arith.constant 0 : i32
    return %arg0, %c0_i32, %c0_i32_0 : i32, i32, i32
  }
}

module attributes {stable_mosaic.version = 11 : i64} {
  func.func @_attn_block_kernel(%arg0: i32, %arg1: memref<1x8x32xf32, #tpu.memory_space<vmem>>, %arg2: memref<1x1x8xf32, #tpu.memory_space<vmem>>, %arg3: memref<32x96xbf16, #tpu.memory_space<vmem>>, %arg4: memref<1x96xf32, #tpu.memory_space<vmem>>, %arg5: memref<32x32xbf16, #tpu.memory_space<vmem>>, %arg6: memref<1x32xf32, #tpu.memory_space<vmem>>, %arg7: memref<1x32xf32, #tpu.memory_space<vmem>>, %arg8: memref<1x32xf32, #tpu.memory_space<vmem>>, %arg9: memref<1x8x32xf32, #tpu.memory_space<vmem>>, %arg10: memref<8x96xf32, #tpu.memory_space<vmem>>) attributes {dimension_semantics = [#tpu.dimension_semantics<parallel>], iteration_bounds = array<i64: 2>, scalar_prefetch = 0 : i64, scratch_operands = 1 : i64, tpu.core_type = #tpu.core_type<tc>, window_params = [{transform_indices = @transform_0, window_bounds = array<i64: 1, 8, 32>}, {transform_indices = @transform_1, window_bounds = array<i64: 1, 1, 8>}, {pipeline_mode = #tpu.pipeline_mode<synchronous>, transform_indices = @transform_2, window_bounds = array<i64: 32, 96>}, {pipeline_mode = #tpu.pipeline_mode<synchronous>, transform_indices = @transform_3, window_bounds = array<i64: 1, 96>}, {pipeline_mode = #tpu.pipeline_mode<synchronous>, transform_indices = @transform_4, window_bounds = array<i64: 32, 32>}, {pipeline_mode = #tpu.pipeline_mode<synchronous>, transform_indices = @transform_5, window_bounds = array<i64: 1, 32>}, {pipeline_mode = #tpu.pipeline_mode<synchronous>, transform_indices = @transform_6, window_bounds = array<i64: 1, 32>}, {pipeline_mode = #tpu.pipeline_mode<synchronous>, transform_indices = @transform_7, window_bounds = array<i64: 1, 32>}, {transform_indices = @transform_8, window_bounds = array<i64: 1, 8, 32>}]} {
    %c0 = arith.constant 0 : index
    %c0_0 = arith.constant 0 : index
    %c0_1 = arith.constant 0 : index
    %0 = vector.load %arg1[%c0, %c0_0, %c0_1] : memref<1x8x32xf32, #tpu.memory_space<vmem>>, vector<1x8x32xf32>
    %1 = vector.shape_cast %0 : vector<1x8x32xf32> to vector<8x32xf32>
    %2 = arith.truncf %1 : vector<8x32xf32> to vector<8x32xbf16>
    %c0_2 = arith.constant 0 : index
    %c0_3 = arith.constant 0 : index
    %3 = vector.load %arg3[%c0_2, %c0_3] : memref<32x96xbf16, #tpu.memory_space<vmem>>, vector<32x96xbf16>
    %cst = arith.constant dense<0.000000e+00> : vector<8x96xf32>
    %4 = tpu.matmul %2, %3, %cst {dimension_numbers = #tpu.dot_dimension_numbers<[1], [0], [0], [1], [0, 0, 1, 1], [], []>} : vector<8x32xbf16>, vector<32x96xbf16>, vector<8x96xf32> -> vector<8x96xf32>
    %c0_4 = arith.constant 0 : index
    %c0_5 = arith.constant 0 : index
    %5 = vector.load %arg4[%c0_4, %c0_5] : memref<1x96xf32, #tpu.memory_space<vmem>>, vector<1x96xf32>
    %6 = vector.broadcast %5 : vector<1x96xf32> to vector<8x96xf32>
    %7 = arith.addf %4, %6 : vector<8x96xf32>
    %c0_6 = arith.constant 0 : index
    %c0_7 = arith.constant 0 : index
    %8 = vector.load %arg10[%c0_6, %c0_7] : memref<8x96xf32, #tpu.memory_space<vmem>>, vector<8x96xf32>
    tpu.vector_store %arg10[%c0_6, %c0_7], %7 {strides = array<i32>} : memref<8x96xf32, #tpu.memory_space<vmem>>, vector<8x96xf32>,
    %c0_8 = arith.constant 0 : index
    %c0_9 = arith.constant 0 : index
    %c0_10 = arith.constant 0 : index
    %9 = vector.load %arg2[%c0_8, %c0_9, %c0_10] : memref<1x1x8xf32, #tpu.memory_space<vmem>>, vector<1x1x8xf32>
    %10 = vector.shape_cast %9 : vector<1x1x8xf32> to vector<1x8xf32>
    %cst_11 = arith.constant 0.000000e+00 : f32
    %11 = vector.broadcast %cst_11 : f32 to vector<8x32xf32>
    %c0_12 = arith.constant 0 : index
    %c0_13 = arith.constant 0 : index
    %12 = vector.load %arg10[%c0_12, %c0_13] : memref<8x96xf32, #tpu.memory_space<vmem>>, vector<8x8xf32>
    %c0_14 = arith.constant 0 : index
    %c32 = arith.constant 32 : index
    %13 = vector.load %arg10[%c0_14, %c32] : memref<8x96xf32, #tpu.memory_space<vmem>>, vector<8x8xf32>
    %c0_15 = arith.constant 0 : index
    %c64 = arith.constant 64 : index
    %14 = vector.load %arg10[%c0_15, %c64] : memref<8x96xf32, #tpu.memory_space<vmem>>, vector<8x8xf32>
    %15 = arith.truncf %12 : vector<8x8xf32> to vector<8x8xbf16>
    %16 = arith.truncf %13 : vector<8x8xf32> to vector<8x8xbf16>
    %cst_16 = arith.constant dense<0.000000e+00> : vector<8x8xf32>
    %17 = tpu.matmul %15, %16, %cst_16 {dimension_numbers = #tpu.dot_dimension_numbers<[1], [1], [0], [0], [0, 0, 1, 0], [], []>} : vector<8x8xbf16>, vector<8x8xbf16>, vector<8x8xf32> -> vector<8x8xf32>
    %cst_17 = arith.constant 0.353553385 : f32
    %18 = vector.broadcast %cst_17 : f32 to vector<8x8xf32>
    %19 = arith.mulf %17, %18 : vector<8x8xf32>
    %20 = vector.broadcast %10 : vector<1x8xf32> to vector<8x8xf32>
    %21 = arith.addf %19, %20 : vector<8x8xf32>
    %cst_18 = arith.constant dense<0xFF800000> : vector<8xf32>
    %22 = vector.multi_reduction <maximumf>, %21, %cst_18 [1] : vector<8x8xf32> to vector<8xf32>
    %23 = vector.shape_cast %22 : vector<8xf32> to vector<8x1xf32>
    %24 = vector.broadcast %23 : vector<8x1xf32> to vector<8x8xf32>
    %25 = arith.subf %21, %24 : vector<8x8xf32>
    %26 = math.exp %25 : vector<8x8xf32>
    %cst_19 = arith.constant dense<0.000000e+00> : vector<8xf32>
    %27 = vector.multi_reduction <add>, %26, %cst_19 [1] : vector<8x8xf32> to vector<8xf32>
    %28 = vector.shape_cast %27 : vector<8xf32> to vector<8x1xf32>
    %29 = vector.broadcast %28 : vector<8x1xf32> to vector<8x8xf32>
    %30 = arith.divf %26, %29 : vector<8x8xf32>
    %31 = arith.truncf %30 : vector<8x8xf32> to vector<8x8xbf16>
    %32 = arith.truncf %14 : vector<8x8xf32> to vector<8x8xbf16>
    %cst_20 = arith.constant dense<0.000000e+00> : vector<8x8xf32>
    %33 = tpu.matmul %31, %32, %cst_20 {dimension_numbers = #tpu.dot_dimension_numbers<[1], [0], [0], [1], [0, 0, 1, 1], [], []>} : vector<8x8xbf16>, vector<8x8xbf16>, vector<8x8xf32> -> vector<8x8xf32>
    %34 = arith.truncf %33 : vector<8x8xf32> to vector<8x8xbf16>
    %c0_21 = arith.constant 0 : index
    %c0_22 = arith.constant 0 : index
    %35 = vector.load %arg5[%c0_21, %c0_22] : memref<32x32xbf16, #tpu.memory_space<vmem>>, vector<8x32xbf16>
    %cst_23 = arith.constant dense<0.000000e+00> : vector<8x32xf32>
    %36 = tpu.matmul %34, %35, %cst_23 {dimension_numbers = #tpu.dot_dimension_numbers<[1], [0], [0], [1], [0, 0, 1, 1], [], []>} : vector<8x8xbf16>, vector<8x32xbf16>, vector<8x32xf32> -> vector<8x32xf32>
    %37 = arith.addf %11, %36 : vector<8x32xf32>
    %c0_24 = arith.constant 0 : index
    %c8 = arith.constant 8 : index
    %38 = vector.load %arg10[%c0_24, %c8] : memref<8x96xf32, #tpu.memory_space<vmem>>, vector<8x8xf32>
    %c0_25 = arith.constant 0 : index
    %c40 = arith.constant 40 : index
    %39 = vector.load %arg10[%c0_25, %c40] : memref<8x96xf32, #tpu.memory_space<vmem>>, vector<8x8xf32>
    %c0_26 = arith.constant 0 : index
    %c72 = arith.constant 72 : index
    %40 = vector.load %arg10[%c0_26, %c72] : memref<8x96xf32, #tpu.memory_space<vmem>>, vector<8x8xf32>
    %41 = arith.truncf %38 : vector<8x8xf32> to vector<8x8xbf16>
    %42 = arith.truncf %39 : vector<8x8xf32> to vector<8x8xbf16>
    %cst_27 = arith.constant dense<0.000000e+00> : vector<8x8xf32>
    %43 = tpu.matmul %41, %42, %cst_27 {dimension_numbers = #tpu.dot_dimension_numbers<[1], [1], [0], [0], [0, 0, 1, 0], [], []>} : vector<8x8xbf16>, vector<8x8xbf16>, vector<8x8xf32> -> vector<8x8xf32>
    %cst_28 = arith.constant 0.353553385 : f32
    %44 = vector.broadcast %cst_28 : f32 to vector<8x8xf32>
    %45 = arith.mulf %43, %44 : vector<8x8xf32>
    %46 = vector.broadcast %10 : vector<1x8xf32> to vector<8x8xf32>
    %47 = arith.addf %45, %46 : vector<8x8xf32>
    %cst_29 = arith.constant dense<0xFF800000> : vector<8xf32>
    %48 = vector.multi_reduction <maximumf>, %47, %cst_29 [1] : vector<8x8xf32> to vector<8xf32>
    %49 = vector.shape_cast %48 : vector<8xf32> to vector<8x1xf32>
    %50 = vector.broadcast %49 : vector<8x1xf32> to vector<8x8xf32>
    %51 = arith.subf %47, %50 : vector<8x8xf32>
    %52 = math.exp %51 : vector<8x8xf32>
    %cst_30 = arith.constant dense<0.000000e+00> : vector<8xf32>
    %53 = vector.multi_reduction <add>, %52, %cst_30 [1] : vector<8x8xf32> to vector<8xf32>
    %54 = vector.shape_cast %53 : vector<8xf32> to vector<8x1xf32>
    %55 = vector.broadcast %54 : vector<8x1xf32> to vector<8x8xf32>
    %56 = arith.divf %52, %55 : vector<8x8xf32>
    %57 = arith.truncf %56 : vector<8x8xf32> to vector<8x8xbf16>
    %58 = arith.truncf %40 : vector<8x8xf32> to vector<8x8xbf16>
    %cst_31 = arith.constant dense<0.000000e+00> : vector<8x8xf32>
    %59 = tpu.matmul %57, %58, %cst_31 {dimension_numbers = #tpu.dot_dimension_numbers<[1], [0], [0], [1], [0, 0, 1, 1], [], []>} : vector<8x8xbf16>, vector<8x8xbf16>, vector<8x8xf32> -> vector<8x8xf32>
    %60 = arith.truncf %59 : vector<8x8xf32> to vector<8x8xbf16>
    %c8_32 = arith.constant 8 : index
    %c0_33 = arith.constant 0 : index
    %61 = vector.load %arg5[%c8_32, %c0_33] : memref<32x32xbf16, #tpu.memory_space<vmem>>, vector<8x32xbf16>
    %cst_34 = arith.constant dense<0.000000e+00> : vector<8x32xf32>
    %62 = tpu.matmul %60, %61, %cst_34 {dimension_numbers = #tpu.dot_dimension_numbers<[1], [0], [0], [1], [0, 0, 1, 1], [], []>} : vector<8x8xbf16>, vector<8x32xbf16>, vector<8x32xf32> -> vector<8x32xf32>
    %63 = arith.addf %37, %62 : vector<8x32xf32>
    %c0_35 = arith.constant 0 : index
    %c16 = arith.constant 16 : index
    %64 = vector.load %arg10[%c0_35, %c16] : memref<8x96xf32, #tpu.memory_space<vmem>>, vector<8x8xf32>
    %c0_36 = arith.constant 0 : index
    %c48 = arith.constant 48 : index
    %65 = vector.load %arg10[%c0_36, %c48] : memref<8x96xf32, #tpu.memory_space<vmem>>, vector<8x8xf32>
    %c0_37 = arith.constant 0 : index
    %c80 = arith.constant 80 : index
    %66 = vector.load %arg10[%c0_37, %c80] : memref<8x96xf32, #tpu.memory_space<vmem>>, vector<8x8xf32>
    %67 = arith.truncf %64 : vector<8x8xf32> to vector<8x8xbf16>
    %68 = arith.truncf %65 : vector<8x8xf32> to vector<8x8xbf16>
    %cst_38 = arith.constant dense<0.000000e+00> : vector<8x8xf32>
    %69 = tpu.matmul %67, %68, %cst_38 {dimension_numbers = #tpu.dot_dimension_numbers<[1], [1], [0], [0], [0, 0, 1, 0], [], []>} : vector<8x8xbf16>, vector<8x8xbf16>, vector<8x8xf32> -> vector<8x8xf32>
    %cst_39 = arith.constant 0.353553385 : f32
    %70 = vector.broadcast %cst_39 : f32 to vector<8x8xf32>
    %71 = arith.mulf %69, %70 : vector<8x8xf32>
    %72 = vector.broadcast %10 : vector<1x8xf32> to vector<8x8xf32>
    %73 = arith.addf %71, %72 : vector<8x8xf32>
    %cst_40 = arith.constant dense<0xFF800000> : vector<8xf32>
    %74 = vector.multi_reduction <maximumf>, %73, %cst_40 [1] : vector<8x8xf32> to vector<8xf32>
    %75 = vector.shape_cast %74 : vector<8xf32> to vector<8x1xf32>
    %76 = vector.broadcast %75 : vector<8x1xf32> to vector<8x8xf32>
    %77 = arith.subf %73, %76 : vector<8x8xf32>
    %78 = math.exp %77 : vector<8x8xf32>
    %cst_41 = arith.constant dense<0.000000e+00> : vector<8xf32>
    %79 = vector.multi_reduction <add>, %78, %cst_41 [1] : vector<8x8xf32> to vector<8xf32>
    %80 = vector.shape_cast %79 : vector<8xf32> to vector<8x1xf32>
    %81 = vector.broadcast %80 : vector<8x1xf32> to vector<8x8xf32>
    %82 = arith.divf %78, %81 : vector<8x8xf32>
    %83 = arith.truncf %82 : vector<8x8xf32> to vector<8x8xbf16>
    %84 = arith.truncf %66 : vector<8x8xf32> to vector<8x8xbf16>
    %cst_42 = arith.constant dense<0.000000e+00> : vector<8x8xf32>
    %85 = tpu.matmul %83, %84, %cst_42 {dimension_numbers = #tpu.dot_dimension_numbers<[1], [0], [0], [1], [0, 0, 1, 1], [], []>} : vector<8x8xbf16>, vector<8x8xbf16>, vector<8x8xf32> -> vector<8x8xf32>
    %86 = arith.truncf %85 : vector<8x8xf32> to vector<8x8xbf16>
    %c16_43 = arith.constant 16 : index
    %c0_44 = arith.constant 0 : index
    %87 = vector.load %arg5[%c16_43, %c0_44] : memref<32x32xbf16, #tpu.memory_space<vmem>>, vector<8x32xbf16>
    %cst_45 = arith.constant dense<0.000000e+00> : vector<8x32xf32>
    %88 = tpu.matmul %86, %87, %cst_45 {dimension_numbers = #tpu.dot_dimension_numbers<[1], [0], [0], [1], [0, 0, 1, 1], [], []>} : vector<8x8xbf16>, vector<8x32xbf16>, vector<8x32xf32> -> vector<8x32xf32>
    %89 = arith.addf %63, %88 : vector<8x32xf32>
    %c0_46 = arith.constant 0 : index
    %c24 = arith.constant 24 : index
    %90 = vector.load %arg10[%c0_46, %c24] : memref<8x96xf32, #tpu.memory_space<vmem>>, vector<8x8xf32>
    %c0_47 = arith.constant 0 : index
    %c56 = arith.constant 56 : index
    %91 = vector.load %arg10[%c0_47, %c56] : memref<8x96xf32, #tpu.memory_space<vmem>>, vector<8x8xf32>
    %c0_48 = arith.constant 0 : index
    %c88 = arith.constant 88 : index
    %92 = vector.load %arg10[%c0_48, %c88] : memref<8x96xf32, #tpu.memory_space<vmem>>, vector<8x8xf32>
    %93 = arith.truncf %90 : vector<8x8xf32> to vector<8x8xbf16>
    %94 = arith.truncf %91 : vector<8x8xf32> to vector<8x8xbf16>
    %cst_49 = arith.constant dense<0.000000e+00> : vector<8x8xf32>
    %95 = tpu.matmul %93, %94, %cst_49 {dimension_numbers = #tpu.dot_dimension_numbers<[1], [1], [0], [0], [0, 0, 1, 0], [], []>} : vector<8x8xbf16>, vector<8x8xbf16>, vector<8x8xf32> -> vector<8x8xf32>
    %cst_50 = arith.constant 0.353553385 : f32
    %96 = vector.broadcast %cst_50 : f32 to vector<8x8xf32>
    %97 = arith.mulf %95, %96 : vector<8x8xf32>
    %98 = vector.broadcast %10 : vector<1x8xf32> to vector<8x8xf32>
    %99 = arith.addf %97, %98 : vector<8x8xf32>
    %cst_51 = arith.constant dense<0xFF800000> : vector<8xf32>
    %100 = vector.multi_reduction <maximumf>, %99, %cst_51 [1] : vector<8x8xf32> to vector<8xf32>
    %101 = vector.shape_cast %100 : vector<8xf32> to vector<8x1xf32>
    %102 = vector.broadcast %101 : vector<8x1xf32> to vector<8x8xf32>
    %103 = arith.subf %99, %102 : vector<8x8xf32>
    %104 = math.exp %103 : vector<8x8xf32>
    %cst_52 = arith.constant dense<0.000000e+00> : vector<8xf32>
    %105 = vector.multi_reduction <add>, %104, %cst_52 [1] : vector<8x8xf32> to vector<8xf32>
    %106 = vector.shape_cast %105 : vector<8xf32> to vector<8x1xf32>
    %107 = vector.broadcast %106 : vector<8x1xf32> to vector<8x8xf32>
    %108 = arith.divf %104, %107 : vector<8x8xf32>
    %109 = arith.truncf %108 : vector<8x8xf32> to vector<8x8xbf16>
    %110 = arith.truncf %92 : vector<8x8xf32> to vector<8x8xbf16>
    %cst_53 = arith.constant dense<0.000000e+00> : vector<8x8xf32>
    %111 = tpu.matmul %109, %110, %cst_53 {dimension_numbers = #tpu.dot_dimension_numbers<[1], [0], [0], [1], [0, 0, 1, 1], [], []>} : vector<8x8xbf16>, vector<8x8xbf16>, vector<8x8xf32> -> vector<8x8xf32>
    %112 = arith.truncf %111 : vector<8x8xf32> to vector<8x8xbf16>
    %c24_54 = arith.constant 24 : index
    %c0_55 = arith.constant 0 : index
    %113 = vector.load %arg5[%c24_54, %c0_55] : memref<32x32xbf16, #tpu.memory_space<vmem>>, vector<8x32xbf16>
    %cst_56 = arith.constant dense<0.000000e+00> : vector<8x32xf32>
    %114 = tpu.matmul %112, %113, %cst_56 {dimension_numbers = #tpu.dot_dimension_numbers<[1], [0], [0], [1], [0, 0, 1, 1], [], []>} : vector<8x8xbf16>, vector<8x32xbf16>, vector<8x32xf32> -> vector<8x32xf32>
    %115 = arith.addf %89, %114 : vector<8x32xf32>
    %116 = arith.addf %1, %115 : vector<8x32xf32>
    %c0_57 = arith.constant 0 : index
    %c0_58 = arith.constant 0 : index
    %117 = vector.load %arg6[%c0_57, %c0_58] : memref<1x32xf32, #tpu.memory_space<vmem>>, vector<1x32xf32>
    %118 = vector.broadcast %117 : vector<1x32xf32> to vector<8x32xf32>
    %119 = arith.addf %116, %118 : vector<8x32xf32>
    %cst_59 = arith.constant dense<0.000000e+00> : vector<8xf32>
    %120 = vector.multi_reduction <add>, %119, %cst_59 [1] : vector<8x32xf32> to vector<8xf32>
    %121 = vector.shape_cast %120 : vector<8xf32> to vector<8x1xf32>
    %cst_60 = arith.constant 3.200000e+01 : f32
    %122 = vector.broadcast %cst_60 : f32 to vector<8x1xf32>
    %123 = arith.divf %121, %122 : vector<8x1xf32>
    %124 = vector.broadcast %123 : vector<8x1xf32> to vector<8x32xf32>
    %125 = arith.subf %119, %124 : vector<8x32xf32>
    %126 = arith.mulf %125, %125 : vector<8x32xf32>
    %cst_61 = arith.constant dense<0.000000e+00> : vector<8xf32>
    %127 = vector.multi_reduction <add>, %126, %cst_61 [1] : vector<8x32xf32> to vector<8xf32>
    %128 = vector.shape_cast %127 : vector<8xf32> to vector<8x1xf32>
    %cst_62 = arith.constant 3.200000e+01 : f32
    %129 = vector.broadcast %cst_62 : f32 to vector<8x1xf32>
    %130 = arith.divf %128, %129 : vector<8x1xf32>
    %131 = vector.broadcast %123 : vector<8x1xf32> to vector<8x32xf32>
    %132 = arith.subf %119, %131 : vector<8x32xf32>
    %cst_63 = arith.constant 9.99999974E-6 : f32
    %133 = vector.broadcast %cst_63 : f32 to vector<8x1xf32>
    %134 = arith.addf %130, %133 : vector<8x1xf32>
    %135 = math.rsqrt %134 : vector<8x1xf32>
    %136 = vector.broadcast %135 : vector<8x1xf32> to vector<8x32xf32>
    %137 = arith.mulf %132, %136 : vector<8x32xf32>
    %c0_64 = arith.constant 0 : index
    %c0_65 = arith.constant 0 : index
    %138 = vector.load %arg7[%c0_64, %c0_65] : memref<1x32xf32, #tpu.memory_space<vmem>>, vector<1x32xf32>
    %139 = vector.broadcast %138 : vector<1x32xf32> to vector<8x32xf32>
    %140 = arith.mulf %137, %139 : vector<8x32xf32>
    %c0_66 = arith.constant 0 : index
    %c0_67 = arith.constant 0 : index
    %141 = vector.load %arg8[%c0_66, %c0_67] : memref<1x32xf32, #tpu.memory_space<vmem>>, vector<1x32xf32>
    %142 = vector.broadcast %141 : vector<1x32xf32> to vector<8x32xf32>
    %143 = arith.addf %140, %142 : vector<8x32xf32>
    %c0_68 = arith.constant 0 : index
    %c0_69 = arith.constant 0 : index
    %c0_70 = arith.constant 0 : index
    %144 = vector.load %arg9[%c0_68, %c0_69, %c0_70] : memref<1x8x32xf32, #tpu.memory_space<vmem>>, vector<1x8x32xf32>
    %145 = vector.shape_cast %144 : vector<1x8x32xf32> to vector<8x32xf32>
    %146 = vector.shape_cast %143 : vector<8x32xf32> to vector<1x8x32xf32>
    tpu.vector_store %arg9[%c0_68, %c0_69, %c0_70], %146 {strides = array<i32>} : memref<1x8x32xf32, #tpu.memory_space<vmem>>, vector<1x8x32xf32>,
    return
  }
  func.func @transform_0(%arg0: i32) -> (i32, i32, i32) {
    %c0_i32 = arith.constant 0 : i32
    %c0_i32_0 = arith.constant 0 : i32
    %c0_i32_1 = arith.constant 0 : i32
    return %arg0, %c0_i32, %c0_i32_0 : i32, i32, i32
  }
  func.func @transform_1(%arg0: i32) -> (i32, i32, i32) {
    %c0_i32 = arith.constant 0 : i32
    %c0_i32_0 = arith.constant 0 : i32
    %c0_i32_1 = arith.constant 0 : i32
    return %arg0, %c0_i32, %c0_i32_0 : i32, i32, i32
  }
  func.func @transform_2(%arg0: i32) -> (i32, i32) {
    %c0_i32 = arith.constant 0 : i32
    %c0_i32_0 = arith.constant 0 : i32
    %c0_i32_1 = arith.constant 0 : i32
    return %c0_i32, %c0_i32_0 : i32, i32
  }
  func.func @transform_3(%arg0: i32) -> (i32, i32) {
    %c0_i32 = arith.constant 0 : i32
    %c0_i32_0 = arith.constant 0 : i32
    %c0_i32_1 = arith.constant 0 : i32
    return %c0_i32, %c0_i32_0 : i32, i32
  }
  func.func @transform_4(%arg0: i32) -> (i32, i32) {
    %c0_i32 = arith.constant 0 : i32
    %c0_i32_0 = arith.constant 0 : i32
    %c0_i32_1 = arith.constant 0 : i32
    return %c0_i32, %c0_i32_0 : i32, i32
  }
  func.func @transform_5(%arg0: i32) -> (i32, i32) {
    %c0_i32 = arith.constant 0 : i32
    %c0_i32_0 = arith.constant 0 : i32
    %c0_i32_1 = arith.constant 0 : i32
    return %c0_i32, %c0_i32_0 : i32, i32
  }
  func.func @transform_6(%arg0: i32) -> (i32, i32) {
    %c0_i32 = arith.constant 0 : i32
    %c0_i32_0 = arith.constant 0 : i32
    %c0_i32_1 = arith.constant 0 : i32
    return %c0_i32, %c0_i32_0 : i32, i32
  }
  func.func @transform_7(%arg0: i32) -> (i32, i32) {
    %c0_i32 = arith.constant 0 : i32
    %c0_i32_0 = arith.constant 0 : i32
    %c0_i32_1 = arith.constant 0 : i32
    return %c0_i32, %c0_i32_0 : i32, i32
  }
  func.func @transform_8(%arg0: i32) -> (i32, i32, i32) {
    %c0_i32 = arith.constant 0 : i32
    %c0_i32_0 = arith.constant 0 : i32
    %c0_i32_1 = arith.constant 0 : i32
    return %arg0, %c0_i32, %c0_i32_0 : i32, i32, i32
  }
}

module attributes {stable_mosaic.version = 11 : i64} {
  func.func @_ffn_kernel(%arg0: i32, %arg1: i32, %arg2: memref<16x32xf32, #tpu.memory_space<vmem>>, %arg3: memref<32x512xbf16, #tpu.memory_space<vmem>>, %arg4: memref<1x512xf32, #tpu.memory_space<vmem>>, %arg5: memref<512x32xbf16, #tpu.memory_space<vmem>>, %arg6: memref<1x32xf32, #tpu.memory_space<vmem>>, %arg7: memref<1x32xf32, #tpu.memory_space<vmem>>, %arg8: memref<1x32xf32, #tpu.memory_space<vmem>>, %arg9: memref<16x32xf32, #tpu.memory_space<vmem>>, %arg10: memref<16x32xf32, #tpu.memory_space<vmem>>) attributes {dimension_semantics = [#tpu.dimension_semantics<parallel>, #tpu.dimension_semantics<arbitrary>], iteration_bounds = array<i64: 1, 4>, scalar_prefetch = 0 : i64, scratch_operands = 1 : i64, tpu.core_type = #tpu.core_type<tc>, window_params = [{transform_indices = @transform_0, window_bounds = array<i64: 16, 32>}, {transform_indices = @transform_1, window_bounds = array<i64: 32, 512>}, {transform_indices = @transform_2, window_bounds = array<i64: 1, 512>}, {transform_indices = @transform_3, window_bounds = array<i64: 512, 32>}, {pipeline_mode = #tpu.pipeline_mode<synchronous>, transform_indices = @transform_4, window_bounds = array<i64: 1, 32>}, {pipeline_mode = #tpu.pipeline_mode<synchronous>, transform_indices = @transform_5, window_bounds = array<i64: 1, 32>}, {pipeline_mode = #tpu.pipeline_mode<synchronous>, transform_indices = @transform_6, window_bounds = array<i64: 1, 32>}, {transform_indices = @transform_7, window_bounds = array<i64: 16, 32>}]} {
    %c0_i32 = arith.constant 0 : i32
    %0 = arith.cmpi eq, %arg1, %c0_i32 : i32
    %1 = arith.extui %0 : i1 to i32
    %c0_i32_0 = arith.constant 0 : i32
    %2 = arith.cmpi ne, %1, %c0_i32_0 : i32
    scf.if %2 {
      %cst_15 = arith.constant 0.000000e+00 : f32
      %21 = vector.broadcast %cst_15 : f32 to vector<16x32xf32>
      %c0_16 = arith.constant 0 : index
      %c0_17 = arith.constant 0 : index
      %22 = vector.load %arg10[%c0_16, %c0_17] : memref<16x32xf32, #tpu.memory_space<vmem>>, vector<16x32xf32>
      tpu.vector_store %arg10[%c0_16, %c0_17], %21 {strides = array<i32>} : memref<16x32xf32, #tpu.memory_space<vmem>>, vector<16x32xf32>,
    } else {
    }
    %c0 = arith.constant 0 : index
    %c0_1 = arith.constant 0 : index
    %3 = vector.load %arg2[%c0, %c0_1] : memref<16x32xf32, #tpu.memory_space<vmem>>, vector<16x32xf32>
    %4 = arith.truncf %3 : vector<16x32xf32> to vector<16x32xbf16>
    %c0_2 = arith.constant 0 : index
    %c0_3 = arith.constant 0 : index
    %5 = vector.load %arg3[%c0_2, %c0_3] : memref<32x512xbf16, #tpu.memory_space<vmem>>, vector<32x512xbf16>
    %cst = arith.constant dense<0.000000e+00> : vector<16x512xf32>
    %6 = tpu.matmul %4, %5, %cst {dimension_numbers = #tpu.dot_dimension_numbers<[1], [0], [0], [1], [0, 0, 1, 1], [], []>} : vector<16x32xbf16>, vector<32x512xbf16>, vector<16x512xf32> -> vector<16x512xf32>
    %c0_4 = arith.constant 0 : index
    %c0_5 = arith.constant 0 : index
    %7 = vector.load %arg4[%c0_4, %c0_5] : memref<1x512xf32, #tpu.memory_space<vmem>>, vector<1x512xf32>
    %8 = vector.broadcast %7 : vector<1x512xf32> to vector<16x512xf32>
    %9 = arith.addf %6, %8 : vector<16x512xf32>
    %cst_6 = arith.constant 0.000000e+00 : f32
    %10 = vector.broadcast %cst_6 : f32 to vector<16x512xf32>
    %11 = arith.maximumf %9, %10 : vector<16x512xf32>
    %c0_7 = arith.constant 0 : index
    %c0_8 = arith.constant 0 : index
    %12 = vector.load %arg10[%c0_7, %c0_8] : memref<16x32xf32, #tpu.memory_space<vmem>>, vector<16x32xf32>
    %13 = arith.truncf %11 : vector<16x512xf32> to vector<16x512xbf16>
    %c0_9 = arith.constant 0 : index
    %c0_10 = arith.constant 0 : index
    %14 = vector.load %arg5[%c0_9, %c0_10] : memref<512x32xbf16, #tpu.memory_space<vmem>>, vector<512x32xbf16>
    %cst_11 = arith.constant dense<0.000000e+00> : vector<16x32xf32>
    %15 = tpu.matmul %13, %14, %cst_11 {dimension_numbers = #tpu.dot_dimension_numbers<[1], [0], [0], [1], [0, 0, 1, 1], [], []>} : vector<16x512xbf16>, vector<512x32xbf16>, vector<16x32xf32> -> vector<16x32xf32>
    %16 = arith.addf %12, %15 : vector<16x32xf32>
    %c0_12 = arith.constant 0 : index
    %c0_13 = arith.constant 0 : index
    %17 = vector.load %arg10[%c0_12, %c0_13] : memref<16x32xf32, #tpu.memory_space<vmem>>, vector<16x32xf32>
    tpu.vector_store %arg10[%c0_12, %c0_13], %16 {strides = array<i32>} : memref<16x32xf32, #tpu.memory_space<vmem>>, vector<16x32xf32>,
    %c3_i32 = arith.constant 3 : i32
    %18 = arith.cmpi eq, %arg1, %c3_i32 : i32
    %19 = arith.extui %18 : i1 to i32
    %c0_i32_14 = arith.constant 0 : i32
    %20 = arith.cmpi ne, %19, %c0_i32_14 : i32
    scf.if %20 {
      %c0_15 = arith.constant 0 : index
      %c0_16 = arith.constant 0 : index
      %21 = vector.load %arg10[%c0_15, %c0_16] : memref<16x32xf32, #tpu.memory_space<vmem>>, vector<16x32xf32>
      %22 = arith.addf %3, %21 : vector<16x32xf32>
      %c0_17 = arith.constant 0 : index
      %c0_18 = arith.constant 0 : index
      %23 = vector.load %arg6[%c0_17, %c0_18] : memref<1x32xf32, #tpu.memory_space<vmem>>, vector<1x32xf32>
      %24 = vector.broadcast %23 : vector<1x32xf32> to vector<16x32xf32>
      %25 = arith.addf %22, %24 : vector<16x32xf32>
      %cst_19 = arith.constant dense<0.000000e+00> : vector<16xf32>
      %26 = vector.multi_reduction <add>, %25, %cst_19 [1] : vector<16x32xf32> to vector<16xf32>
      %27 = vector.shape_cast %26 : vector<16xf32> to vector<16x1xf32>
      %cst_20 = arith.constant 3.200000e+01 : f32
      %28 = vector.broadcast %cst_20 : f32 to vector<16x1xf32>
      %29 = arith.divf %27, %28 : vector<16x1xf32>
      %30 = vector.broadcast %29 : vector<16x1xf32> to vector<16x32xf32>
      %31 = arith.subf %25, %30 : vector<16x32xf32>
      %32 = arith.mulf %31, %31 : vector<16x32xf32>
      %cst_21 = arith.constant dense<0.000000e+00> : vector<16xf32>
      %33 = vector.multi_reduction <add>, %32, %cst_21 [1] : vector<16x32xf32> to vector<16xf32>
      %34 = vector.shape_cast %33 : vector<16xf32> to vector<16x1xf32>
      %cst_22 = arith.constant 3.200000e+01 : f32
      %35 = vector.broadcast %cst_22 : f32 to vector<16x1xf32>
      %36 = arith.divf %34, %35 : vector<16x1xf32>
      %37 = vector.broadcast %29 : vector<16x1xf32> to vector<16x32xf32>
      %38 = arith.subf %25, %37 : vector<16x32xf32>
      %cst_23 = arith.constant 9.99999974E-6 : f32
      %39 = vector.broadcast %cst_23 : f32 to vector<16x1xf32>
      %40 = arith.addf %36, %39 : vector<16x1xf32>
      %41 = math.rsqrt %40 : vector<16x1xf32>
      %42 = vector.broadcast %41 : vector<16x1xf32> to vector<16x32xf32>
      %43 = arith.mulf %38, %42 : vector<16x32xf32>
      %c0_24 = arith.constant 0 : index
      %c0_25 = arith.constant 0 : index
      %44 = vector.load %arg7[%c0_24, %c0_25] : memref<1x32xf32, #tpu.memory_space<vmem>>, vector<1x32xf32>
      %45 = vector.broadcast %44 : vector<1x32xf32> to vector<16x32xf32>
      %46 = arith.mulf %43, %45 : vector<16x32xf32>
      %c0_26 = arith.constant 0 : index
      %c0_27 = arith.constant 0 : index
      %47 = vector.load %arg8[%c0_26, %c0_27] : memref<1x32xf32, #tpu.memory_space<vmem>>, vector<1x32xf32>
      %48 = vector.broadcast %47 : vector<1x32xf32> to vector<16x32xf32>
      %49 = arith.addf %46, %48 : vector<16x32xf32>
      %c0_28 = arith.constant 0 : index
      %c0_29 = arith.constant 0 : index
      %50 = vector.load %arg9[%c0_28, %c0_29] : memref<16x32xf32, #tpu.memory_space<vmem>>, vector<16x32xf32>
      tpu.vector_store %arg9[%c0_28, %c0_29], %49 {strides = array<i32>} : memref<16x32xf32, #tpu.memory_space<vmem>>, vector<16x32xf32>,
    } else {
    }
    return
  }
  func.func @transform_0(%arg0: i32, %arg1: i32) -> (i32, i32) {
    %c0_i32 = arith.constant 0 : i32
    %c0_i32_0 = arith.constant 0 : i32
    return %arg0, %c0_i32 : i32, i32
  }
  func.func @transform_1(%arg0: i32, %arg1: i32) -> (i32, i32) {
    %c0_i32 = arith.constant 0 : i32
    %c0_i32_0 = arith.constant 0 : i32
    return %c0_i32, %arg1 : i32, i32
  }
  func.func @transform_2(%arg0: i32, %arg1: i32) -> (i32, i32) {
    %c0_i32 = arith.constant 0 : i32
    %c0_i32_0 = arith.constant 0 : i32
    return %c0_i32, %arg1 : i32, i32
  }
  func.func @transform_3(%arg0: i32, %arg1: i32) -> (i32, i32) {
    %c0_i32 = arith.constant 0 : i32
    %c0_i32_0 = arith.constant 0 : i32
    return %arg1, %c0_i32 : i32, i32
  }
  func.func @transform_4(%arg0: i32, %arg1: i32) -> (i32, i32) {
    %c0_i32 = arith.constant 0 : i32
    %c0_i32_0 = arith.constant 0 : i32
    %c0_i32_1 = arith.constant 0 : i32
    return %c0_i32, %c0_i32_0 : i32, i32
  }
  func.func @transform_5(%arg0: i32, %arg1: i32) -> (i32, i32) {
    %c0_i32 = arith.constant 0 : i32
    %c0_i32_0 = arith.constant 0 : i32
    %c0_i32_1 = arith.constant 0 : i32
    return %c0_i32, %c0_i32_0 : i32, i32
  }
  func.func @transform_6(%arg0: i32, %arg1: i32) -> (i32, i32) {
    %c0_i32 = arith.constant 0 : i32
    %c0_i32_0 = arith.constant 0 : i32
    %c0_i32_1 = arith.constant 0 : i32
    return %c0_i32, %c0_i32_0 : i32, i32
  }
  func.func @transform_7(%arg0: i32, %arg1: i32) -> (i32, i32) {
    %c0_i32 = arith.constant 0 : i32
    %c0_i32_0 = arith.constant 0 : i32
    return %arg0, %c0_i32 : i32, i32
  }
}

module attributes {stable_mosaic.version = 11 : i64} {
  func.func @_fc_kernel(%arg0: i32, %arg1: memref<16x32xf32, #tpu.memory_space<vmem>>, %arg2: memref<32x128xbf16, #tpu.memory_space<vmem>>, %arg3: memref<1x128xf32, #tpu.memory_space<vmem>>, %arg4: memref<16x128xf32, #tpu.memory_space<vmem>>) attributes {dimension_semantics = [#tpu.dimension_semantics<parallel>], iteration_bounds = array<i64: 1>, scalar_prefetch = 0 : i64, scratch_operands = 0 : i64, tpu.core_type = #tpu.core_type<tc>, window_params = [{transform_indices = @transform_0, window_bounds = array<i64: 16, 32>}, {pipeline_mode = #tpu.pipeline_mode<synchronous>, transform_indices = @transform_1, window_bounds = array<i64: 32, 128>}, {pipeline_mode = #tpu.pipeline_mode<synchronous>, transform_indices = @transform_2, window_bounds = array<i64: 1, 128>}, {transform_indices = @transform_3, window_bounds = array<i64: 16, 128>}]} {
    %c0 = arith.constant 0 : index
    %c0_0 = arith.constant 0 : index
    %0 = vector.load %arg1[%c0, %c0_0] : memref<16x32xf32, #tpu.memory_space<vmem>>, vector<16x32xf32>
    %1 = arith.truncf %0 : vector<16x32xf32> to vector<16x32xbf16>
    %c0_1 = arith.constant 0 : index
    %c0_2 = arith.constant 0 : index
    %2 = vector.load %arg2[%c0_1, %c0_2] : memref<32x128xbf16, #tpu.memory_space<vmem>>, vector<32x128xbf16>
    %cst = arith.constant dense<0.000000e+00> : vector<16x128xf32>
    %3 = tpu.matmul %1, %2, %cst {dimension_numbers = #tpu.dot_dimension_numbers<[1], [0], [0], [1], [0, 0, 1, 1], [], []>} : vector<16x32xbf16>, vector<32x128xbf16>, vector<16x128xf32> -> vector<16x128xf32>
    %c0_3 = arith.constant 0 : index
    %c0_4 = arith.constant 0 : index
    %4 = vector.load %arg3[%c0_3, %c0_4] : memref<1x128xf32, #tpu.memory_space<vmem>>, vector<1x128xf32>
    %5 = vector.broadcast %4 : vector<1x128xf32> to vector<16x128xf32>
    %6 = arith.addf %3, %5 : vector<16x128xf32>
    %c0_5 = arith.constant 0 : index
    %c0_6 = arith.constant 0 : index
    %7 = vector.load %arg4[%c0_5, %c0_6] : memref<16x128xf32, #tpu.memory_space<vmem>>, vector<16x128xf32>
    tpu.vector_store %arg4[%c0_5, %c0_6], %6 {strides = array<i32>} : memref<16x128xf32, #tpu.memory_space<vmem>>, vector<16x128xf32>,
    return
  }
  func.func @transform_0(%arg0: i32) -> (i32, i32) {
    %c0_i32 = arith.constant 0 : i32
    %c0_i32_0 = arith.constant 0 : i32
    return %arg0, %c0_i32 : i32, i32
  }
  func.func @transform_1(%arg0: i32) -> (i32, i32) {
    %c0_i32 = arith.constant 0 : i32
    %c0_i32_0 = arith.constant 0 : i32
    %c0_i32_1 = arith.constant 0 : i32
    return %c0_i32, %c0_i32_0 : i32, i32
  }
  func.func @transform_2(%arg0: i32) -> (i32, i32) {
    %c0_i32 = arith.constant 0 : i32
    %c0_i32_0 = arith.constant 0 : i32
    %c0_i32_1 = arith.constant 0 : i32
    return %c0_i32, %c0_i32_0 : i32, i32
  }
  func.func @transform_3(%arg0: i32) -> (i32, i32) {
    %c0_i32 = arith.constant 0 : i32
    %c0_i32_0 = arith.constant 0 : i32
    return %arg0, %c0_i32 : i32, i32
  }
}

</mosaic_0001>

<llo_original>
// kernel: disturbance_transformer.6
$region0: #{disturbance_transformer.6}
  #allocation0 [shape = 'u32[]', space=smem, size = 0x4, offset = 0x4, fixed_abs, tag = 'smem constant byte address 0x4 - core index']
  #allocation1 [shape = 'u32[144,128]{1,0:T(1,128)}', space=vmem, size = 0x12000, scoped, tag = 'internal scratch']
  %s0 = inlined_call_operand.vmem [shape: f32[2,8,4], index: 0, kind: input, shape index: {}]
  %s1 = inlined_call_operand.vmem [shape: bf16[4,32], index: 1, kind: input, shape index: {}]
  %s2 = inlined_call_operand.vmem [shape: f32[1,32], index: 2, kind: input, shape index: {}]
  %s3 = inlined_call_operand.vmem [shape: f32[8,32], index: 3, kind: input, shape index: {}]
  %s4 = inlined_call_operand.vmem [shape: f32[2,8,32], index: 4, kind: output, shape index: {}]
  %s5 = sld [smem:[#allocation0]]
  $region49: #{disturbance_transformer.6} parent=0
    _
  %s7 = ssub.s32 1, %s5
  %s8 = scalar_select 0, %s7, %s5
  loop: start=0, step=1, limit=4
  $region2: #{disturbance_transformer.6} parent=0 // loop_pre_header
    _
  $region3: #{disturbance_transformer.6} parent=0 // loop_header
    %s10 = sphi 0, %s14
    %p11 = scmp.ge.s32.totalorder %s10, 4
    %s20 = sphi 0, %s22
    %s23 = sphi 0, %s20
    %s24 = sphi 0, %s23
    %s40 = sphi 0, %s24
    %s44 = sphi 0, %s44
    %s46 = sphi 0, %s44
    %s47 = sphi 0, %s46
    %s61 = sphi 0, %s47
    %s65 = sphi 0, %s65
    %s67 = sphi 0, %s65
    %s68 = sphi 0, %s67
    %s82 = sphi 0, %s68
    %s86 = sphi 0, %s86
    %s88 = sphi 0, %s86
    %s89 = sphi 0, %s88
    %s103 = sphi 0, %s89
    %s109 = sphi 0, %s111
    %s112 = sphi 0, %s109
    %s113 = sphi 0, %s112
    %s129 = sphi 0, %s113
  $region4: #{disturbance_transformer.6} parent=0 // loop_header_branch
    %13 = sbr.rel (%p11) target = $region8
  $region5: #{disturbance_transformer.6} parent=0 // loop_body
    %s15 = ssub.s32 %s10, 1
    %s16 = ssub.s32 %s10, 2
    %s17 = sadd.s32 %s10, 1
    %s18 = ssub.s32 %s10, %s17
    %p19 = scmp.eq.s32.totalorder %s18, 0
    %s21 = sadd.s32 %s20, 1
    %s22 = scalar_select %p19, %s20, %s21
    %p25 = pneg %p19
    %p26 = scmp.eq.s32.totalorder %s10, 1
    %p27 = por %p25, %p26
    %p28 = scmp.ne.s32.totalorder %s20, %s23
    %p29 = scmp.eq.s32.totalorder %s10, 0
    %p30 = por %p28, %p29
    %p31 = scmp.ne.s32.totalorder %s20, %s23
    %p32 = scmp.eq.s32.totalorder %s15, 1
    %p33 = por %p31, %p32
    %p34 = scmp.ne.s32.totalorder %s23, %s24
    %p35 = scmp.eq.s32.totalorder %s15, 0
    %p36 = por %p34, %p35
    %p37 = scmp.ne.s32.totalorder %s23, %s24
    %p38 = scmp.eq.s32.totalorder %s16, 1
    %p39 = por %p37, %p38
    %p41 = scmp.ne.s32.totalorder %s24, %s40
    %p42 = scmp.eq.s32.totalorder %s16, 0
    %p43 = por %p41, %p42
    %s45 = sadd.s32 %s44, 1
    %p48 = scmp.eq.s32.totalorder %s10, 1
    %p49 = scmp.ne.s32.totalorder %s44, %s46
    %p50 = scmp.eq.s32.totalorder %s10, 0
    %p51 = por %p49, %p50
    %p52 = scmp.ne.s32.totalorder %s44, %s46
    %p53 = scmp.eq.s32.totalorder %s15, 1
    %p54 = por %p52, %p53
    %p55 = scmp.ne.s32.totalorder %s46, %s47
    %p56 = scmp.eq.s32.totalorder %s15, 0
    %p57 = por %p55, %p56
    %p58 = scmp.ne.s32.totalorder %s46, %s47
    %p59 = scmp.eq.s32.totalorder %s16, 1
    %p60 = por %p58, %p59
    %p62 = scmp.ne.s32.totalorder %s47, %s61
    %p63 = scmp.eq.s32.totalorder %s16, 0
    %p64 = por %p62, %p63
    %s66 = sadd.s32 %s65, 1
    %p69 = scmp.eq.s32.totalorder %s10, 1
    %p70 = scmp.ne.s32.totalorder %s65, %s67
    %p71 = scmp.eq.s32.totalorder %s10, 0
    %p72 = por %p70, %p71
    %p73 = scmp.ne.s32.totalorder %s65, %s67
    %p74 = scmp.eq.s32.totalorder %s15, 1
    %p75 = por %p73, %p74
    %p76 = scmp.ne.s32.totalorder %s67, %s68
    %p77 = scmp.eq.s32.totalorder %s15, 0
    %p78 = por %p76, %p77
    %p79 = scmp.ne.s32.totalorder %s67, %s68
    %p80 = scmp.eq.s32.totalorder %s16, 1
    %p81 = por %p79, %p80
    %p83 = scmp.ne.s32.totalorder %s68, %s82
    %p84 = scmp.eq.s32.totalorder %s16, 0
    %p85 = por %p83, %p84
    %s87 = sadd.s32 %s86, 1
    %p90 = scmp.eq.s32.totalorder %s10, 1
    %p91 = scmp.ne.s32.totalorder %s86, %s88
    %p92 = scmp.eq.s32.totalorder %s10, 0
    %p93 = por %p91, %p92
    %p94 = scmp.ne.s32.totalorder %s86, %s88
    %p95 = scmp.eq.s32.totalorder %s15, 1
    %p96 = por %p94, %p95
    %p97 = scmp.ne.s32.totalorder %s88, %s89
    %p98 = scmp.eq.s32.totalorder %s15, 0
    %p99 = por %p97, %p98
    %p100 = scmp.ne.s32.totalorder %s88, %s89
    %p101 = scmp.eq.s32.totalorder %s16, 1
    %p102 = por %p100, %p101
    %p104 = scmp.ne.s32.totalorder %s89, %s103
    %p105 = scmp.eq.s32.totalorder %s16, 0
    %p106 = por %p104, %p105
    %s107 = ssub.s32 %s10, %s17
    %p108 = scmp.eq.s32.totalorder %s107, 0
    %s110 = sadd.s32 %s109, 1
    %s111 = scalar_select %p108, %s109, %s110
    %p114 = pneg %p108
    %p115 = scmp.eq.s32.totalorder %s10, 1
    %p116 = por %p114, %p115
    %p117 = scmp.ne.s32.totalorder %s109, %s112
    %p118 = scmp.eq.s32.totalorder %s10, 0
    %p119 = por %p117, %p118
    %p120 = scmp.ne.s32.totalorder %s109, %s112
    %p121 = scmp.eq.s32.totalorder %s15, 1
    %p122 = por %p120, %p121
    %p123 = scmp.ne.s32.totalorder %s112, %s113
    %p124 = scmp.eq.s32.totalorder %s15, 0
    %p125 = por %p123, %p124
    %p126 = scmp.ne.s32.totalorder %s112, %s113
    %p127 = scmp.eq.s32.totalorder %s16, 1
    %p128 = por %p126, %p127
    %p130 = scmp.ne.s32.totalorder %s113, %s129
    %p131 = scmp.eq.s32.totalorder %s16, 0
    %p132 = por %p130, %p131
    %p133 = scmp.le.s32.totalorder 1, %s10
    %p134 = scmp.lt.s32.totalorder %s10, 3
    %p135 = pnand %p133, %p134
    %p136 = pneg %p135
    // Predicated region
    $region9: #{disturbance_transformer.6} parent=5 // pred_check
      _
    $region10: #{disturbance_transformer.6} parent=5 // pred_check_branch
      %138 = sbr.rel (%p135) target = $region12
    $region11: #{disturbance_transformer.6} parent=5 // pred_region
      %s139 = ssub.s32 %s10, 1
      // Predicated region
      $region13: #{disturbance_transformer.6} parent=11 // pred_check
        %p140 = pneg %p57
      $region14: #{disturbance_transformer.6} parent=11 // pred_check_branch
        %142 = sbr.rel (%p140) target = $region16
      $region15: #{disturbance_transformer.6} parent=11 // pred_region
        _
      $region16: #{disturbance_transformer.6} parent=11 // pred_fallthru
        _
      // Predicated region
      $region17: #{disturbance_transformer.6} parent=11 // pred_check
        %p143 = pneg %p78
      $region18: #{disturbance_transformer.6} parent=11 // pred_check_branch
        %145 = sbr.rel (%p143) target = $region20
      $region19: #{disturbance_transformer.6} parent=11 // pred_region
        _
      $region20: #{disturbance_transformer.6} parent=11 // pred_fallthru
        _
      // Predicated region
      $region21: #{disturbance_transformer.6} parent=11 // pred_check
        %p146 = pneg %p99
      $region22: #{disturbance_transformer.6} parent=11 // pred_check_branch
        %148 = sbr.rel (%p146) target = $region24
      $region23: #{disturbance_transformer.6} parent=11 // pred_region
        _
      $region24: #{disturbance_transformer.6} parent=11 // pred_fallthru
        _
    $region12: #{disturbance_transformer.6} parent=5 // pred_fallthru
      _
    %p149 = scmp.lt.s32.totalorder %s10, 2
    // Predicated region
    $region25: #{disturbance_transformer.6} parent=5 // pred_check
      %p150 = pneg %p149
    $region26: #{disturbance_transformer.6} parent=5 // pred_check_branch
      %152 = sbr.rel (%p150) target = $region28
    $region27: #{disturbance_transformer.6} parent=5 // pred_region
      // Predicated region
      $region29: #{disturbance_transformer.6} parent=27 // pred_check
        %p153 = pneg %p30
      $region30: #{disturbance_transformer.6} parent=27 // pred_check_branch
        %155 = sbr.rel (%p153) target = $region32
      $region31: #{disturbance_transformer.6} parent=27 // pred_region
        %p156 = scmp.lt.s32.totalorder %s10, 1
        %s157 = scalar_select %p156, %s10, 1
        %s158 = smul.addr %s157, 8
        %s159 = scalar_lea.vmem %s0, %s158
      $region32: #{disturbance_transformer.6} parent=27 // pred_fallthru
        _
    $region28: #{disturbance_transformer.6} parent=5 // pred_fallthru
      _
    %p160 = scmp.le.s32.totalorder 1, %s10
    %p161 = scmp.lt.s32.totalorder %s10, 3
    %p162 = pnand %p160, %p161
    %p163 = pneg %p162
    // Predicated region
    $region33: #{disturbance_transformer.6} parent=5 // pred_check
      _
    $region34: #{disturbance_transformer.6} parent=5 // pred_check_branch
      %165 = sbr.rel (%p162) target = $region36
    $region35: #{disturbance_transformer.6} parent=5 // pred_region
      %s166 = ssub.s32 %s10, 1
      %p167 = scmp.lt.s32.totalorder %s15, 1
      %s168 = scalar_select %p167, %s15, 1
      %s169 = smul.addr %s168, 8
      %s170 = scalar_lea.vmem %s0, %s169
      %p171 = pneg %p36
      %p172 = pneg %p33
      %p173 = pneg %p57
      %p174 = pneg %p54
      %p175 = pneg %p78
      %p176 = pneg %p75
      %p177 = pneg %p99
      %p178 = pneg %p96
      %p179 = pneg %p125
      %p180 = pneg %p122
      %p181 = scmp.lt.s32.totalorder %s15, 1
      %s182 = scalar_select %p181, %s15, 1
      %s183 = smul.addr %s182, 8
      %s184 = scalar_lea.vmem %s4, %s183
      %p185 = scmp.lt.s32.totalorder %s15, 1
      %s186 = scalar_select %p185, %s15, 1
      %s187 = smul.addr %s186, 8
      %s188 = scalar_lea.vmem %s0, %s187
      %p189 = scmp.lt.s32.totalorder %s15, 1
      %s190 = scalar_select %p189, %s15, 1
      %s191 = smul.addr %s190, 8
      %s192 = scalar_lea.vmem %s4, %s191
      %v194 = vld [vmem:[%s188] sm:$0xff]
      %v195 = vpack.c.bf16 %v194, %v194
      %v196 = vld [vmem:[%s1] sm:$0x3]
      %v197 = vld [vmem:[%s2] sm:$0x1]
      %v199 = vlaneseq
      %v200 = vshrl.u32 %v199, 7
      %v201 = vsub.s32 0, %v200
      %v202 = vrot.slane %v197, %v201
      %vm204 = vcmask 31744
      %v206 = vsel %vm204, %v195, 0
      %vm208 = vcmask 1041408
      %v210 = vsel %vm208, %v196, 0
      %212 = vmatprep.subr.bf16.mxu0 0
      %213 = vmatpush1.bf16.msra.mxu0 %v210
      %214 = vmatprep.subr.bf16.mxu0 0
      %215 = vmatpush1.bf16.msra.mxu0 0
      %216 = vmatprep.subr.bf16.mxu0 0
      %217 = vmatpush1.bf16.msra.mxu0 0
      %218 = vmatprep.subr.bf16.mxu0 0
      %219 = vmatpush1.bf16.msra.mxu0 0
      %220 = vmatprep.subr.bf16.mxu0 0
      %221 = vmatpush1.bf16.msra.mxu0 0
      %222 = vmatprep.subr.bf16.mxu0 0
      %223 = vmatpush1.bf16.msra.mxu0 0
      %224 = vmatprep.subr.bf16.mxu0 0
      %225 = vmatpush1.bf16.msra.mxu0 0
      %226 = vmatprep.subr.bf16.mxu0 0
      %227 = vmatpush1.bf16.msra.mxu0 0
      %228 = vmatprep.subr.bf16.mxu0 0
      %229 = vmatpush1.bf16.msra.mxu0 0
      %230 = vmatprep.subr.bf16.mxu0 0
      %231 = vmatpush1.bf16.msra.mxu0 0
      %232 = vmatprep.subr.bf16.mxu0 0
      %233 = vmatpush1.bf16.msra.mxu0 0
      %234 = vmatprep.subr.bf16.mxu0 0
      %235 = vmatpush1.bf16.msra.mxu0 0
      %236 = vmatprep.subr.bf16.mxu0 0
      %237 = vmatpush1.bf16.msra.mxu0 0
      %238 = vmatprep.subr.bf16.mxu0 0
      %239 = vmatpush1.bf16.msra.mxu0 0
      %240 = vmatprep.subr.bf16.mxu0 0
      %241 = vmatpush1.bf16.msra.mxu0 0
      %242 = vmatprep.subr.bf16.mxu0 0
      %243 = vmatpush1.bf16.msra.mxu0 0
      %244 = vmatprep.mubr.bf16.mxu0 0
      %245 = vmatmul.mubr.bf16.gmra.mrb[0].mxu0 %v206
      %v246 = vpop.f32.mrb[0].mxu0
      %v247 = vadd.f32 %v202, %v246
      %v248 = vpop.f32.mrb[0].mxu0
      %v249 = vpop.f32.mrb[0].mxu0
      %v250 = vpop.f32.mrb[0].mxu0
      %251 = vdwg.mxu0
      %v252 = vld [vmem:[%s3] sm:$0xff]
      %v253 = vadd.f32 %v247, %v252
      %vm254 = vcmask 261120
      %255 = vst.msk [vmem:[%s192] sm:$0xff] %vm254, %v253
      %p256 = scmp.lt.s32.totalorder %s15, 1
      %s257 = scalar_select %p256, %s15, 1
      %s258 = smul.addr %s257, 8
      %s259 = scalar_lea.vmem %s4, %s258
      // Predicated region
      $region37: #{disturbance_transformer.6} parent=35 // pred_check
        %p260 = pneg %p122
      $region38: #{disturbance_transformer.6} parent=35 // pred_check_branch
        %262 = sbr.rel (%p260) target = $region40
      $region39: #{disturbance_transformer.6} parent=35 // pred_region
        _
      $region40: #{disturbance_transformer.6} parent=35 // pred_fallthru
        _
    $region36: #{disturbance_transformer.6} parent=5 // pred_fallthru
      _
    %p263 = scmp.le.s32.totalorder 2, %s10
    // Predicated region
    $region41: #{disturbance_transformer.6} parent=5 // pred_check
      %p264 = pneg %p263
    $region42: #{disturbance_transformer.6} parent=5 // pred_check_branch
      %266 = sbr.rel (%p264) target = $region44
    $region43: #{disturbance_transformer.6} parent=5 // pred_region
      %s267 = ssub.s32 %s10, 2
      // Predicated region
      $region45: #{disturbance_transformer.6} parent=43 // pred_check
        %p268 = pneg %p128
      $region46: #{disturbance_transformer.6} parent=43 // pred_check_branch
        %270 = sbr.rel (%p268) target = $region48
      $region47: #{disturbance_transformer.6} parent=43 // pred_region
        %p271 = scmp.lt.s32.totalorder %s16, 1
        %s272 = scalar_select %p271, %s16, 1
        %s273 = smul.addr %s272, 8
        %s274 = scalar_lea.vmem %s4, %s273
      $region48: #{disturbance_transformer.6} parent=43 // pred_fallthru
        _
    $region44: #{disturbance_transformer.6} parent=5 // pred_fallthru
      _
  $region6: #{disturbance_transformer.6} parent=0 // loop_footer
    %s14 = sadd.s32 1, %s10
  $region7: #{disturbance_transformer.6} parent=0 // loop_footer_branch
    %9 = sbr.rel target = $region3
  $region8: #{disturbance_transformer.6} parent=0 // loop_exit
    _

// kernel: disturbance_transformer.7
$region0: #{disturbance_transformer.7}
  #allocation0 [shape = 'u32[]', space=smem, size = 0x4, offset = 0x4, fixed_abs, tag = 'smem constant byte address 0x4 - core index']
  #allocation1 [shape = 'u32[144,128]{1,0:T(1,128)}', space=vmem, size = 0x12000, scoped, tag = 'internal scratch']
  #allocation2 [shape = 'f32[8,96]{1,0:T(8,128)}', space=vmem, size = 0x1000, scoped, tag = 'scratch operand']
  %s0 = inlined_call_operand.vmem [shape: f32[2,8,32], index: 0, kind: input, shape index: {}]
  %s1 = inlined_call_operand.vmem [shape: f32[2,1,8], index: 1, kind: input, shape index: {}]
  %s2 = inlined_call_operand.vmem [shape: bf16[32,96], index: 2, kind: input, shape index: {}]
  %s3 = inlined_call_operand.vmem [shape: f32[1,96], index: 3, kind: input, shape index: {}]
  %s4 = inlined_call_operand.vmem [shape: bf16[32,32], index: 4, kind: input, shape index: {}]
  %s5 = inlined_call_operand.vmem [shape: f32[1,32], index: 5, kind: input, shape index: {}]
  %s6 = inlined_call_operand.vmem [shape: f32[1,32], index: 6, kind: input, shape index: {}]
  %s7 = inlined_call_operand.vmem [shape: f32[1,32], index: 7, kind: input, shape index: {}]
  %s8 = inlined_call_operand.vmem [shape: f32[2,8,32], index: 8, kind: output, shape index: {}]
  %s9 = sld [smem:[#allocation0]]
  $region65: #{disturbance_transformer.7} parent=0
    _
  %s11 = ssub.s32 1, %s9
  %s12 = scalar_select 0, %s11, %s9
  loop: start=0, step=1, limit=4
  $region2: #{disturbance_transformer.7} parent=0 // loop_pre_header
    _
  $region3: #{disturbance_transformer.7} parent=0 // loop_header
    %s14 = sphi 0, %s18
    %p15 = scmp.ge.s32.totalorder %s14, 4
    %s24 = sphi 0, %s26
    %s27 = sphi 0, %s24
    %s28 = sphi 0, %s27
    %s44 = sphi 0, %s28
    %s50 = sphi 0, %s52
    %s53 = sphi 0, %s50
    %s54 = sphi 0, %s53
    %s70 = sphi 0, %s54
    %s74 = sphi 0, %s74
    %s76 = sphi 0, %s74
    %s77 = sphi 0, %s76
    %s91 = sphi 0, %s77
    %s95 = sphi 0, %s95
    %s97 = sphi 0, %s95
    %s98 = sphi 0, %s97
    %s112 = sphi 0, %s98
    %s116 = sphi 0, %s116
    %s118 = sphi 0, %s116
    %s119 = sphi 0, %s118
    %s133 = sphi 0, %s119
    %s137 = sphi 0, %s137
    %s139 = sphi 0, %s137
    %s140 = sphi 0, %s139
    %s154 = sphi 0, %s140
    %s158 = sphi 0, %s158
    %s160 = sphi 0, %s158
    %s161 = sphi 0, %s160
    %s175 = sphi 0, %s161
    %s179 = sphi 0, %s179
    %s181 = sphi 0, %s179
    %s182 = sphi 0, %s181
    %s196 = sphi 0, %s182
    %s202 = sphi 0, %s204
    %s205 = sphi 0, %s202
    %s206 = sphi 0, %s205
    %s222 = sphi 0, %s206
  $region4: #{disturbance_transformer.7} parent=0 // loop_header_branch
    %17 = sbr.rel (%p15) target = $region8
  $region5: #{disturbance_transformer.7} parent=0 // loop_body
    %s19 = ssub.s32 %s14, 1
    %s20 = ssub.s32 %s14, 2
    %s21 = sadd.s32 %s14, 1
    %s22 = ssub.s32 %s14, %s21
    %p23 = scmp.eq.s32.totalorder %s22, 0
    %s25 = sadd.s32 %s24, 1
    %s26 = scalar_select %p23, %s24, %s25
    %p29 = pneg %p23
    %p30 = scmp.eq.s32.totalorder %s14, 1
    %p31 = por %p29, %p30
    %p32 = scmp.ne.s32.totalorder %s24, %s27
    %p33 = scmp.eq.s32.totalorder %s14, 0
    %p34 = por %p32, %p33
    %p35 = scmp.ne.s32.totalorder %s24, %s27
    %p36 = scmp.eq.s32.totalorder %s19, 1
    %p37 = por %p35, %p36
    %p38 = scmp.ne.s32.totalorder %s27, %s28
    %p39 = scmp.eq.s32.totalorder %s19, 0
    %p40 = por %p38, %p39
    %p41 = scmp.ne.s32.totalorder %s27, %s28
    %p42 = scmp.eq.s32.totalorder %s20, 1
    %p43 = por %p41, %p42
    %p45 = scmp.ne.s32.totalorder %s28, %s44
    %p46 = scmp.eq.s32.totalorder %s20, 0
    %p47 = por %p45, %p46
    %s48 = ssub.s32 %s14, %s21
    %p49 = scmp.eq.s32.totalorder %s48, 0
    %s51 = sadd.s32 %s50, 1
    %s52 = scalar_select %p49, %s50, %s51
    %p55 = pneg %p49
    %p56 = scmp.eq.s32.totalorder %s14, 1
    %p57 = por %p55, %p56
    %p58 = scmp.ne.s32.totalorder %s50, %s53
    %p59 = scmp.eq.s32.totalorder %s14, 0
    %p60 = por %p58, %p59
    %p61 = scmp.ne.s32.totalorder %s50, %s53
    %p62 = scmp.eq.s32.totalorder %s19, 1
    %p63 = por %p61, %p62
    %p64 = scmp.ne.s32.totalorder %s53, %s54
    %p65 = scmp.eq.s32.totalorder %s19, 0
    %p66 = por %p64, %p65
    %p67 = scmp.ne.s32.totalorder %s53, %s54
    %p68 = scmp.eq.s32.totalorder %s20, 1
    %p69 = por %p67, %p68
    %p71 = scmp.ne.s32.totalorder %s54, %s70
    %p72 = scmp.eq.s32.totalorder %s20, 0
    %p73 = por %p71, %p72
    %s75 = sadd.s32 %s74, 1
    %p78 = scmp.eq.s32.totalorder %s14, 1
    %p79 = scmp.ne.s32.totalorder %s74, %s76
    %p80 = scmp.eq.s32.totalorder %s14, 0
    %p81 = por %p79, %p80
    %p82 = scmp.ne.s32.totalorder %s74, %s76
    %p83 = scmp.eq.s32.totalorder %s19, 1
    %p84 = por %p82, %p83
    %p85 = scmp.ne.s32.totalorder %s76, %s77
    %p86 = scmp.eq.s32.totalorder %s19, 0
    %p87 = por %p85, %p86
    %p88 = scmp.ne.s32.totalorder %s76, %s77
    %p89 = scmp.eq.s32.totalorder %s20, 1
    %p90 = por %p88, %p89
    %p92 = scmp.ne.s32.totalorder %s77, %s91
    %p93 = scmp.eq.s32.totalorder %s20, 0
    %p94 = por %p92, %p93
    %s96 = sadd.s32 %s95, 1
    %p99 = scmp.eq.s32.totalorder %s14, 1
    %p100 = scmp.ne.s32.totalorder %s95, %s97
    %p101 = scmp.eq.s32.totalorder %s14, 0
    %p102 = por %p100, %p101
    %p103 = scmp.ne.s32.totalorder %s95, %s97
    %p104 = scmp.eq.s32.totalorder %s19, 1
    %p105 = por %p103, %p104
    %p106 = scmp.ne.s32.totalorder %s97, %s98
    %p107 = scmp.eq.s32.totalorder %s19, 0
    %p108 = por %p106, %p107
    %p109 = scmp.ne.s32.totalorder %s97, %s98
    %p110 = scmp.eq.s32.totalorder %s20, 1
    %p111 = por %p109, %p110
    %p113 = scmp.ne.s32.totalorder %s98, %s112
    %p114 = scmp.eq.s32.totalorder %s20, 0
    %p115 = por %p113, %p114
    %s117 = sadd.s32 %s116, 1
    %p120 = scmp.eq.s32.totalorder %s14, 1
    %p121 = scmp.ne.s32.totalorder %s116, %s118
    %p122 = scmp.eq.s32.totalorder %s14, 0
    %p123 = por %p121, %p122
    %p124 = scmp.ne.s32.totalorder %s116, %s118
    %p125 = scmp.eq.s32.totalorder %s19, 1
    %p126 = por %p124, %p125
    %p127 = scmp.ne.s32.totalorder %s118, %s119
    %p128 = scmp.eq.s32.totalorder %s19, 0
    %p129 = por %p127, %p128
    %p130 = scmp.ne.s32.totalorder %s118, %s119
    %p131 = scmp.eq.s32.totalorder %s20, 1
    %p132 = por %p130, %p131
    %p134 = scmp.ne.s32.totalorder %s119, %s133
    %p135 = scmp.eq.s32.totalorder %s20, 0
    %p136 = por %p134, %p135
    %s138 = sadd.s32 %s137, 1
    %p141 = scmp.eq.s32.totalorder %s14, 1
    %p142 = scmp.ne.s32.totalorder %s137, %s139
    %p143 = scmp.eq.s32.totalorder %s14, 0
    %p144 = por %p142, %p143
    %p145 = scmp.ne.s32.totalorder %s137, %s139
    %p146 = scmp.eq.s32.totalorder %s19, 1
    %p147 = por %p145, %p146
    %p148 = scmp.ne.s32.totalorder %s139, %s140
    %p149 = scmp.eq.s32.totalorder %s19, 0
    %p150 = por %p148, %p149
    %p151 = scmp.ne.s32.totalorder %s139, %s140
    %p152 = scmp.eq.s32.totalorder %s20, 1
    %p153 = por %p151, %p152
    %p155 = scmp.ne.s32.totalorder %s140, %s154
    %p156 = scmp.eq.s32.totalorder %s20, 0
    %p157 = por %p155, %p156
    %s159 = sadd.s32 %s158, 1
    %p162 = scmp.eq.s32.totalorder %s14, 1
    %p163 = scmp.ne.s32.totalorder %s158, %s160
    %p164 = scmp.eq.s32.totalorder %s14, 0
    %p165 = por %p163, %p164
    %p166 = scmp.ne.s32.totalorder %s158, %s160
    %p167 = scmp.eq.s32.totalorder %s19, 1
    %p168 = por %p166, %p167
    %p169 = scmp.ne.s32.totalorder %s160, %s161
    %p170 = scmp.eq.s32.totalorder %s19, 0
    %p171 = por %p169, %p170
    %p172 = scmp.ne.s32.totalorder %s160, %s161
    %p173 = scmp.eq.s32.totalorder %s20, 1
    %p174 = por %p172, %p173
    %p176 = scmp.ne.s32.totalorder %s161, %s175
    %p177 = scmp.eq.s32.totalorder %s20, 0
    %p178 = por %p176, %p177
    %s180 = sadd.s32 %s179, 1
    %p183 = scmp.eq.s32.totalorder %s14, 1
    %p184 = scmp.ne.s32.totalorder %s179, %s181
    %p185 = scmp.eq.s32.totalorder %s14, 0
    %p186 = por %p184, %p185
    %p187 = scmp.ne.s32.totalorder %s179, %s181
    %p188 = scmp.eq.s32.totalorder %s19, 1
    %p189 = por %p187, %p188
    %p190 = scmp.ne.s32.totalorder %s181, %s182
    %p191 = scmp.eq.s32.totalorder %s19, 0
    %p192 = por %p190, %p191
    %p193 = scmp.ne.s32.totalorder %s181, %s182
    %p194 = scmp.eq.s32.totalorder %s20, 1
    %p195 = por %p193, %p194
    %p197 = scmp.ne.s32.totalorder %s182, %s196
    %p198 = scmp.eq.s32.totalorder %s20, 0
    %p199 = por %p197, %p198
    %s200 = ssub.s32 %s14, %s21
    %p201 = scmp.eq.s32.totalorder %s200, 0
    %s203 = sadd.s32 %s202, 1
    %s204 = scalar_select %p201, %s202, %s203
    %p207 = pneg %p201
    %p208 = scmp.eq.s32.totalorder %s14, 1
    %p209 = por %p207, %p208
    %p210 = scmp.ne.s32.totalorder %s202, %s205
    %p211 = scmp.eq.s32.totalorder %s14, 0
    %p212 = por %p210, %p211
    %p213 = scmp.ne.s32.totalorder %s202, %s205
    %p214 = scmp.eq.s32.totalorder %s19, 1
    %p215 = por %p213, %p214
    %p216 = scmp.ne.s32.totalorder %s205, %s206
    %p217 = scmp.eq.s32.totalorder %s19, 0
    %p218 = por %p216, %p217
    %p219 = scmp.ne.s32.totalorder %s205, %s206
    %p220 = scmp.eq.s32.totalorder %s20, 1
    %p221 = por %p219, %p220
    %p223 = scmp.ne.s32.totalorder %s206, %s222
    %p224 = scmp.eq.s32.totalorder %s20, 0
    %p225 = por %p223, %p224
    %p226 = scmp.le.s32.totalorder 1, %s14
    %p227 = scmp.lt.s32.totalorder %s14, 3
    %p228 = pnand %p226, %p227
    %p229 = pneg %p228
    // Predicated region
    $region9: #{disturbance_transformer.7} parent=5 // pred_check
      _
    $region10: #{disturbance_transformer.7} parent=5 // pred_check_branch
      %231 = sbr.rel (%p228) target = $region12
    $region11: #{disturbance_transformer.7} parent=5 // pred_region
      %s232 = ssub.s32 %s14, 1
      // Predicated region
      $region13: #{disturbance_transformer.7} parent=11 // pred_check
        %p233 = pneg %p87
      $region14: #{disturbance_transformer.7} parent=11 // pred_check_branch
        %235 = sbr.rel (%p233) target = $region16
      $region15: #{disturbance_transformer.7} parent=11 // pred_region
        _
      $region16: #{disturbance_transformer.7} parent=11 // pred_fallthru
        _
      // Predicated region
      $region17: #{disturbance_transformer.7} parent=11 // pred_check
        %p236 = pneg %p108
      $region18: #{disturbance_transformer.7} parent=11 // pred_check_branch
        %238 = sbr.rel (%p236) target = $region20
      $region19: #{disturbance_transformer.7} parent=11 // pred_region
        _
      $region20: #{disturbance_transformer.7} parent=11 // pred_fallthru
        _
      // Predicated region
      $region21: #{disturbance_transformer.7} parent=11 // pred_check
        %p239 = pneg %p129
      $region22: #{disturbance_transformer.7} parent=11 // pred_check_branch
        %241 = sbr.rel (%p239) target = $region24
      $region23: #{disturbance_transformer.7} parent=11 // pred_region
        _
      $region24: #{disturbance_transformer.7} parent=11 // pred_fallthru
        _
      // Predicated region
      $region25: #{disturbance_transformer.7} parent=11 // pred_check
        %p242 = pneg %p150
      $region26: #{disturbance_transformer.7} parent=11 // pred_check_branch
        %244 = sbr.rel (%p242) target = $region28
      $region27: #{disturbance_transformer.7} parent=11 // pred_region
        _
      $region28: #{disturbance_transformer.7} parent=11 // pred_fallthru
        _
      // Predicated region
      $region29: #{disturbance_transformer.7} parent=11 // pred_check
        %p245 = pneg %p171
      $region30: #{disturbance_transformer.7} parent=11 // pred_check_branch
        %247 = sbr.rel (%p245) target = $region32
      $region31: #{disturbance_transformer.7} parent=11 // pred_region
        _
      $region32: #{disturbance_transformer.7} parent=11 // pred_fallthru
        _
      // Predicated region
      $region33: #{disturbance_transformer.7} parent=11 // pred_check
        %p248 = pneg %p192
      $region34: #{disturbance_transformer.7} parent=11 // pred_check_branch
        %250 = sbr.rel (%p248) target = $region36
      $region35: #{disturbance_transformer.7} parent=11 // pred_region
        _
      $region36: #{disturbance_transformer.7} parent=11 // pred_fallthru
        _
    $region12: #{disturbance_transformer.7} parent=5 // pred_fallthru
      _
    %p251 = scmp.lt.s32.totalorder %s14, 2
    // Predicated region
    $region37: #{disturbance_transformer.7} parent=5 // pred_check
      %p252 = pneg %p251
    $region38: #{disturbance_transformer.7} parent=5 // pred_check_branch
      %254 = sbr.rel (%p252) target = $region40
    $region39: #{disturbance_transformer.7} parent=5 // pred_region
      // Predicated region
      $region41: #{disturbance_transformer.7} parent=39 // pred_check
        %p255 = pneg %p34
      $region42: #{disturbance_transformer.7} parent=39 // pred_check_branch
        %257 = sbr.rel (%p255) target = $region44
      $region43: #{disturbance_transformer.7} parent=39 // pred_region
        %p258 = scmp.lt.s32.totalorder %s14, 1
        %s259 = scalar_select %p258, %s14, 1
        %s260 = smul.addr %s259, 8
        %s261 = scalar_lea.vmem %s0, %s260
      $region44: #{disturbance_transformer.7} parent=39 // pred_fallthru
        _
      // Predicated region
      $region45: #{disturbance_transformer.7} parent=39 // pred_check
        %p262 = pneg %p60
      $region46: #{disturbance_transformer.7} parent=39 // pred_check_branch
        %264 = sbr.rel (%p262) target = $region48
      $region47: #{disturbance_transformer.7} parent=39 // pred_region
        %p265 = scmp.lt.s32.totalorder %s14, 1
        %s266 = scalar_select %p265, %s14, 1
        %s267 = scalar_lea.vmem %s1, %s266
      $region48: #{disturbance_transformer.7} parent=39 // pred_fallthru
        _
    $region40: #{disturbance_transformer.7} parent=5 // pred_fallthru
      _
    %p268 = scmp.le.s32.totalorder 1, %s14
    %p269 = scmp.lt.s32.totalorder %s14, 3
    %p270 = pnand %p268, %p269
    %p271 = pneg %p270
    // Predicated region
    $region49: #{disturbance_transformer.7} parent=5 // pred_check
      _
    $region50: #{disturbance_transformer.7} parent=5 // pred_check_branch
      %273 = sbr.rel (%p270) target = $region52
    $region51: #{disturbance_transformer.7} parent=5 // pred_region
      %s274 = ssub.s32 %s14, 1
      %p275 = scmp.lt.s32.totalorder %s19, 1
      %s276 = scalar_select %p275, %s19, 1
      %s277 = smul.addr %s276, 8
      %s278 = scalar_lea.vmem %s0, %s277
      %p279 = pneg %p40
      %p280 = pneg %p37
      %p281 = scmp.lt.s32.totalorder %s19, 1
      %s282 = scalar_select %p281, %s19, 1
      %s283 = scalar_lea.vmem %s1, %s282
      %p284 = pneg %p66
      %p285 = pneg %p63
      %p286 = pneg %p87
      %p287 = pneg %p84
      %p288 = pneg %p108
      %p289 = pneg %p105
      %p290 = pneg %p129
      %p291 = pneg %p126
      %p292 = pneg %p150
      %p293 = pneg %p147
      %p294 = pneg %p171
      %p295 = pneg %p168
      %p296 = pneg %p192
      %p297 = pneg %p189
      %p298 = pneg %p218
      %p299 = pneg %p215
      %p300 = scmp.lt.s32.totalorder %s19, 1
      %s301 = scalar_select %p300, %s19, 1
      %s302 = smul.addr %s301, 8
      %s303 = scalar_lea.vmem %s8, %s302
      %p304 = scmp.lt.s32.totalorder %s19, 1
      %s305 = scalar_select %p304, %s19, 1
      %s306 = smul.addr %s305, 8
      %s307 = scalar_lea.vmem %s0, %s306
      %p308 = scmp.lt.s32.totalorder %s19, 1
      %s309 = scalar_select %p308, %s19, 1
      %s310 = scalar_lea.vmem %s1, %s309
      %p311 = scmp.lt.s32.totalorder %s19, 1
      %s312 = scalar_select %p311, %s19, 1
      %s313 = smul.addr %s312, 8
      %s314 = scalar_lea.vmem %s8, %s313
      %v316 = vld [vmem:[%s307] sm:$0xff]
      %v317 = vpack.c.bf16 %v316, %v316
      %v318 = vld [vmem:[%s2] sm:$0xf]
      %v319 = vld [vmem:[%s2 + $0x4] sm:$0xf]
      %v320 = vld [vmem:[%s2 + $0x8] sm:$0xf]
      %v321 = vld [vmem:[%s2 + $0xc] sm:$0xf]
      %v322 = vld [vmem:[%s3] sm:$0x1]
      %v324 = vlaneseq
      %v325 = vshrl.u32 %v324, 7
      %v326 = vsub.s32 0, %v325
      %v327 = vrot.slane %v322, %v326
      %v333 = vunpack.c.l.b16 %v318
      %v334 = vunpack.c.l.b16 %v319
      %v335 = vunpack.c.l.b16 %v320
      %v336 = vunpack.c.l.b16 %v321
      %v337 = vpack.c.b16 %v334, %v333
      %v338 = vpack.c.b16 %v336, %v335
      %vm341 = vcmask 261120
      %v343 = vsel %vm341, %v317, 0
      %345 = vmatprep.subr.bf16.mxu0 0
      %346 = vmatpush1.bf16.msra.mxu0 %v337
      %347 = vmatprep.subr.bf16.mxu0 0
      %348 = vmatpush1.bf16.msra.mxu0 %v338
      %349 = vmatprep.subr.bf16.mxu0 0
      %350 = vmatpush1.bf16.msra.mxu0 0
      %351 = vmatprep.subr.bf16.mxu0 0
      %352 = vmatpush1.bf16.msra.mxu0 0
      %353 = vmatprep.subr.bf16.mxu0 0
      %354 = vmatpush1.bf16.msra.mxu0 0
      %355 = vmatprep.subr.bf16.mxu0 0
      %356 = vmatpush1.bf16.msra.mxu0 0
      %357 = vmatprep.subr.bf16.mxu0 0
      %358 = vmatpush1.bf16.msra.mxu0 0
      %359 = vmatprep.subr.bf16.mxu0 0
      %360 = vmatpush1.bf16.msra.mxu0 0
      %361 = vmatprep.subr.bf16.mxu0 0
      %362 = vmatpush1.bf16.msra.mxu0 0
      %363 = vmatprep.subr.bf16.mxu0 0
      %364 = vmatpush1.bf16.msra.mxu0 0
      %365 = vmatprep.subr.bf16.mxu0 0
      %366 = vmatpush1.bf16.msra.mxu0 0
      %367 = vmatprep.subr.bf16.mxu0 0
      %368 = vmatpush1.bf16.msra.mxu0 0
      %369 = vmatprep.subr.bf16.mxu0 0
      %370 = vmatpush1.bf16.msra.mxu0 0
      %371 = vmatprep.subr.bf16.mxu0 0
      %372 = vmatpush1.bf16.msra.mxu0 0
      %373 = vmatprep.subr.bf16.mxu0 0
      %374 = vmatpush1.bf16.msra.mxu0 0
      %375 = vmatprep.subr.bf16.mxu0 0
      %376 = vmatpush1.bf16.msra.mxu0 0
      %377 = vmatprep.mubr.bf16.mxu0 0
      %378 = vmatmul.mubr.bf16.gmra.mrb[0].mxu0 %v343
      %v379 = vpop.f32.mrb[0].mxu0
      %v380 = vadd.f32 %v327, %v379
      %v381 = vpop.f32.mrb[0].mxu0
      %v382 = vpop.f32.mrb[0].mxu0
      %v383 = vpop.f32.mrb[0].mxu0
      %384 = vdwg.mxu0
      %vm385 = vcmask 785408
      %386 = vst.msk [vmem:[#allocation2] sm:$0xff] %vm385, %v380
      %v387 = vld [vmem:[%s310] sm:$0x1]
      %v388 = vld [vmem:[#allocation2] sm:$0xff]
      %v389 = vpack.c.bf16 %v388, %v388
      %391 = vrot.lane.b32.xlu0 %v389, 96
      %v392 = vpop.permute.xlu0 %391
      %vm393 = vcmask 64512
      %v395 = vsel %vm393, %v389, 0
      %v398 = vsel %vm393, %v392, 0
      %400 = vmatprep.subr.bf16.mxu0 0
      %401 = vmatpush1.bf16.xpose.msra.mxu0 %v398
      %402 = vmatprep.subr.bf16.mxu0 0
      %403 = vmatpush1.bf16.xpose.msra.mxu0 0
      %404 = vmatprep.subr.bf16.mxu0 0
      %405 = vmatpush1.bf16.xpose.msra.mxu0 0
      %406 = vmatprep.subr.bf16.mxu0 0
      %407 = vmatpush1.bf16.xpose.msra.mxu0 0
      %408 = vmatprep.subr.bf16.mxu0 0
      %409 = vmatpush1.bf16.xpose.msra.mxu0 0
      %410 = vmatprep.subr.bf16.mxu0 0
      %411 = vmatpush1.bf16.xpose.msra.mxu0 0
      %412 = vmatprep.subr.bf16.mxu0 0
      %413 = vmatpush1.bf16.xpose.msra.mxu0 0
      %414 = vmatprep.subr.bf16.mxu0 0
      %415 = vmatpush1.bf16.xpose.msra.mxu0 0
      %416 = vmatprep.subr.bf16.mxu0 0
      %417 = vmatpush1.bf16.xpose.msra.mxu0 0
      %418 = vmatprep.subr.bf16.mxu0 0
      %419 = vmatpush1.bf16.xpose.msra.mxu0 0
      %420 = vmatprep.subr.bf16.mxu0 0
      %421 = vmatpush1.bf16.xpose.msra.mxu0 0
      %422 = vmatprep.subr.bf16.mxu0 0
      %423 = vmatpush1.bf16.xpose.msra.mxu0 0
      %424 = vmatprep.subr.bf16.mxu0 0
      %425 = vmatpush1.bf16.xpose.msra.mxu0 0
      %426 = vmatprep.subr.bf16.mxu0 0
      %427 = vmatpush1.bf16.xpose.msra.mxu0 0
      %428 = vmatprep.subr.bf16.mxu0 0
      %429 = vmatpush1.bf16.xpose.msra.mxu0 0
      %430 = vmatprep.subr.bf16.mxu0 0
      %431 = vmatpush1.bf16.xpose.msra.mxu0 0
      %432 = vmatprep.mubr.bf16.mxu0 0
      %433 = vmatmul.mubr.bf16.gmra.mrb[0].mxu0 %v395
      %v434 = vpop.f32.mrb[0].mxu0
      %v435 = vadd.f32 0.0, %v434
      %v436 = vpop.f32.mrb[0].mxu0
      %v437 = vpop.f32.mrb[0].mxu0
      %v438 = vpop.f32.mrb[0].mxu0
      %439 = vdwg.mxu0
      %v440 = vmul.f32 %v435, 0.35355338
      %v442 = vlaneseq
      %v443 = vshrl.u32 %v442, 7
      %v444 = vsub.s32 0, %v443
      %v445 = vrot.slane %v387, %v444
      %v447 = vadd.f32 %v440, %v445
      %v448 = vsel %vm393, %v447, -inf
      %449 = vmax.xlane.f32.xlu0 %v448
      %v450 = vpop.xlane.xlu0 %449
      %v451 = vsub.f32 %v447, %v450
      %v452 = vmul.f32 %v451, 1.442695
      %v453 = vpow.pop %v452
      %v454 = vsel %vm393, %v453, 0.0
      %455 = vadd.xlane.f32.xlu0 %v454
      %v456 = vpop.xlane.xlu0 %455
      %v457 = vrcp.pop %v456
      %v458 = vmul.f32 %v453, %v457
      %v459 = vpack.c.bf16 %v458, %v458
      %460 = vrot.lane.b32.xlu0 %v389, 64
      %v461 = vpop.permute.xlu0 %460
      %v463 = vsel %vm393, %v459, 0
      %vm465 = vcmask 1043456
      %v467 = vsel %vm465, %v461, 0
      %469 = vmatprep.subr.bf16.mxu0 0
      %470 = vmatpush1.bf16.msra.mxu0 %v467
      %471 = vmatprep.subr.bf16.mxu0 0
      %472 = vmatpush1.bf16.msra.mxu0 0
      %473 = vmatprep.subr.bf16.mxu0 0
      %474 = vmatpush1.bf16.msra.mxu0 0
      %475 = vmatprep.subr.bf16.mxu0 0
      %476 = vmatpush1.bf16.msra.mxu0 0
      %477 = vmatprep.subr.bf16.mxu0 0
      %478 = vmatpush1.bf16.msra.mxu0 0
      %479 = vmatprep.subr.bf16.mxu0 0
      %480 = vmatpush1.bf16.msra.mxu0 0
      %481 = vmatprep.subr.bf16.mxu0 0
      %482 = vmatpush1.bf16.msra.mxu0 0
      %483 = vmatprep.subr.bf16.mxu0 0
      %484 = vmatpush1.bf16.msra.mxu0 0
      %485 = vmatprep.subr.bf16.mxu0 0
      %486 = vmatpush1.bf16.msra.mxu0 0
      %487 = vmatprep.subr.bf16.mxu0 0
      %488 = vmatpush1.bf16.msra.mxu0 0
      %489 = vmatprep.subr.bf16.mxu0 0
      %490 = vmatpush1.bf16.msra.mxu0 0
      %491 = vmatprep.subr.bf16.mxu0 0
      %492 = vmatpush1.bf16.msra.mxu0 0
      %493 = vmatprep.subr.bf16.mxu0 0
      %494 = vmatpush1.bf16.msra.mxu0 0
      %495 = vmatprep.subr.bf16.mxu0 0
      %496 = vmatpush1.bf16.msra.mxu0 0
      %497 = vmatprep.subr.bf16.mxu0 0
      %498 = vmatpush1.bf16.msra.mxu0 0
      %499 = vmatprep.subr.bf16.mxu0 0
      %500 = vmatpush1.bf16.msra.mxu0 0
      %501 = vmatprep.mubr.bf16.mxu0 0
      %502 = vmatmul.mubr.bf16.gmra.mrb[0].mxu0 %v463
      %v503 = vpop.f32.mrb[0].mxu0
      %v504 = vadd.f32 0.0, %v503
      %v505 = vpop.f32.mrb[0].mxu0
      %v506 = vpop.f32.mrb[0].mxu0
      %v507 = vpop.f32.mrb[0].mxu0
      %508 = vdwg.mxu0
      %v509 = vpack.c.bf16 %v504, %v504
      %v510 = vld [vmem:[%s4] sm:$0xf]
      %511 = vrot.lane.b32.xlu0 %v389, 120
      %v512 = vpop.permute.xlu0 %511
      %513 = vrot.lane.b32.xlu0 %v389, 88
      %v514 = vpop.permute.xlu0 %513
      %v516 = vsel %vm393, %v512, 0
      %v519 = vsel %vm393, %v514, 0
      %521 = vmatprep.subr.bf16.mxu0 0
      %522 = vmatpush1.bf16.xpose.msra.mxu0 %v519
      %523 = vmatprep.subr.bf16.mxu0 0
      %524 = vmatpush1.bf16.xpose.msra.mxu0 0
      %525 = vmatprep.subr.bf16.mxu0 0
      %526 = vmatpush1.bf16.xpose.msra.mxu0 0
      %527 = vmatprep.subr.bf16.mxu0 0
      %528 = vmatpush1.bf16.xpose.msra.mxu0 0
      %529 = vmatprep.subr.bf16.mxu0 0
      %530 = vmatpush1.bf16.xpose.msra.mxu0 0
      %531 = vmatprep.subr.bf16.mxu0 0
      %532 = vmatpush1.bf16.xpose.msra.mxu0 0
      %533 = vmatprep.subr.bf16.mxu0 0
      %534 = vmatpush1.bf16.xpose.msra.mxu0 0
      %535 = vmatprep.subr.bf16.mxu0 0
      %536 = vmatpush1.bf16.xpose.msra.mxu0 0
      %537 = vmatprep.subr.bf16.mxu0 0
      %538 = vmatpush1.bf16.xpose.msra.mxu0 0
      %539 = vmatprep.subr.bf16.mxu0 0
      %540 = vmatpush1.bf16.xpose.msra.mxu0 0
      %541 = vmatprep.subr.bf16.mxu0 0
      %542 = vmatpush1.bf16.xpose.msra.mxu0 0
      %543 = vmatprep.subr.bf16.mxu0 0
      %544 = vmatpush1.bf16.xpose.msra.mxu0 0
      %545 = vmatprep.subr.bf16.mxu0 0
      %546 = vmatpush1.bf16.xpose.msra.mxu0 0
      %547 = vmatprep.subr.bf16.mxu0 0
      %548 = vmatpush1.bf16.xpose.msra.mxu0 0
      %549 = vmatprep.subr.bf16.mxu0 0
      %550 = vmatpush1.bf16.xpose.msra.mxu0 0
      %551 = vmatprep.subr.bf16.mxu0 0
      %552 = vmatpush1.bf16.xpose.msra.mxu0 0
      %553 = vmatprep.mubr.bf16.mxu0 0
      %554 = vmatmul.mubr.bf16.gmra.mrb[0].mxu0 %v516
      %v555 = vpop.f32.mrb[0].mxu0
      %v556 = vadd.f32 0.0, %v555
      %v557 = vpop.f32.mrb[0].mxu0
      %v558 = vpop.f32.mrb[0].mxu0
      %v559 = vpop.f32.mrb[0].mxu0
      %560 = vdwg.mxu0
      %v561 = vmul.f32 %v556, 0.35355338
      %v562 = vadd.f32 %v561, %v445
      %v563 = vsel %vm393, %v562, -inf
      %564 = vmax.xlane.f32.xlu0 %v563
      %v565 = vpop.xlane.xlu0 %564
      %v566 = vsub.f32 %v562, %v565
      %v567 = vmul.f32 %v566, 1.442695
      %v568 = vpow.pop %v567
      %v569 = vsel %vm393, %v568, 0.0
      %570 = vadd.xlane.f32.xlu0 %v569
      %v571 = vpop.xlane.xlu0 %570
      %v572 = vrcp.pop %v571
      %v573 = vmul.f32 %v568, %v572
      %v574 = vpack.c.bf16 %v573, %v573
      %575 = vrot.lane.b32.xlu0 %v389, 56
      %v576 = vpop.permute.xlu0 %575
      %v578 = vsel %vm393, %v574, 0
      %v581 = vsel %vm465, %v576, 0
      %583 = vmatprep.subr.bf16.mxu0 0
      %584 = vmatpush1.bf16.msra.mxu0 %v581
      %585 = vmatprep.subr.bf16.mxu0 0
      %586 = vmatpush1.bf16.msra.mxu0 0
      %587 = vmatprep.subr.bf16.mxu0 0
      %588 = vmatpush1.bf16.msra.mxu0 0
      %589 = vmatprep.subr.bf16.mxu0 0
      %590 = vmatpush1.bf16.msra.mxu0 0
      %591 = vmatprep.subr.bf16.mxu0 0
      %592 = vmatpush1.bf16.msra.mxu0 0
      %593 = vmatprep.subr.bf16.mxu0 0
      %594 = vmatpush1.bf16.msra.mxu0 0
      %595 = vmatprep.subr.bf16.mxu0 0
      %596 = vmatpush1.bf16.msra.mxu0 0
      %597 = vmatprep.subr.bf16.mxu0 0
      %598 = vmatpush1.bf16.msra.mxu0 0
      %599 = vmatprep.subr.bf16.mxu0 0
      %600 = vmatpush1.bf16.msra.mxu0 0
      %601 = vmatprep.subr.bf16.mxu0 0
      %602 = vmatpush1.bf16.msra.mxu0 0
      %603 = vmatprep.subr.bf16.mxu0 0
      %604 = vmatpush1.bf16.msra.mxu0 0
      %605 = vmatprep.subr.bf16.mxu0 0
      %606 = vmatpush1.bf16.msra.mxu0 0
      %607 = vmatprep.subr.bf16.mxu0 0
      %608 = vmatpush1.bf16.msra.mxu0 0
      %609 = vmatprep.subr.bf16.mxu0 0
      %610 = vmatpush1.bf16.msra.mxu0 0
      %611 = vmatprep.subr.bf16.mxu0 0
      %612 = vmatpush1.bf16.msra.mxu0 0
      %613 = vmatprep.subr.bf16.mxu0 0
      %614 = vmatpush1.bf16.msra.mxu0 0
      %615 = vmatprep.mubr.bf16.mxu0 0
      %616 = vmatmul.mubr.bf16.gmra.mrb[0].mxu0 %v578
      %v617 = vpop.f32.mrb[0].mxu0
      %v618 = vadd.f32 0.0, %v617
      %v619 = vpop.f32.mrb[0].mxu0
      %v620 = vpop.f32.mrb[0].mxu0
      %v621 = vpop.f32.mrb[0].mxu0
      %622 = vdwg.mxu0
      %v623 = vpack.c.bf16 %v618, %v618
      %v624 = vld [vmem:[%s4 + $0x4] sm:$0xf]
      %v626 = vsel %vm393, %v623, 0
      %v629 = vsel %vm465, %v624, 0
      %631 = vmatprep.subr.bf16.mxu0 0
      %632 = vmatpush1.bf16.msra.mxu0 %v629
      %633 = vmatprep.subr.bf16.mxu0 0
      %634 = vmatpush1.bf16.msra.mxu0 0
      %635 = vmatprep.subr.bf16.mxu0 0
      %636 = vmatpush1.bf16.msra.mxu0 0
      %637 = vmatprep.subr.bf16.mxu0 0
      %638 = vmatpush1.bf16.msra.mxu0 0
      %639 = vmatprep.subr.bf16.mxu0 0
      %640 = vmatpush1.bf16.msra.mxu0 0
      %641 = vmatprep.subr.bf16.mxu0 0
      %642 = vmatpush1.bf16.msra.mxu0 0
      %643 = vmatprep.subr.bf16.mxu0 0
      %644 = vmatpush1.bf16.msra.mxu0 0
      %645 = vmatprep.subr.bf16.mxu0 0
      %646 = vmatpush1.bf16.msra.mxu0 0
      %647 = vmatprep.subr.bf16.mxu0 0
      %648 = vmatpush1.bf16.msra.mxu0 0
      %649 = vmatprep.subr.bf16.mxu0 0
      %650 = vmatpush1.bf16.msra.mxu0 0
      %651 = vmatprep.subr.bf16.mxu0 0
      %652 = vmatpush1.bf16.msra.mxu0 0
      %653 = vmatprep.subr.bf16.mxu0 0
      %654 = vmatpush1.bf16.msra.mxu0 0
      %655 = vmatprep.subr.bf16.mxu0 0
      %656 = vmatpush1.bf16.msra.mxu0 0
      %657 = vmatprep.subr.bf16.mxu0 0
      %658 = vmatpush1.bf16.msra.mxu0 0
      %659 = vmatprep.subr.bf16.mxu0 0
      %660 = vmatpush1.bf16.msra.mxu0 0
      %661 = vmatprep.subr.bf16.mxu0 0
      %662 = vmatpush1.bf16.msra.mxu0 0
      %663 = vmatprep.mubr.bf16.mxu0 0
      %664 = vmatmul.mubr.bf16.gmra.mrb[0].mxu0 %v626
      %v665 = vpop.f32.mrb[0].mxu0
      %v666 = vadd.f32 0.0, %v665
      %v667 = vpop.f32.mrb[0].mxu0
      %v668 = vpop.f32.mrb[0].mxu0
      %v669 = vpop.f32.mrb[0].mxu0
      %670 = vdwg.mxu0
      %v672 = vsel %vm393, %v509, 0
      %v675 = vsel %vm465, %v510, 0
      %677 = vmatprep.subr.bf16.mxu0 0
      %678 = vmatpush1.bf16.msra.mxu0 %v675
      %679 = vmatprep.subr.bf16.mxu0 0
      %680 = vmatpush1.bf16.msra.mxu0 0
      %681 = vmatprep.subr.bf16.mxu0 0
      %682 = vmatpush1.bf16.msra.mxu0 0
      %683 = vmatprep.subr.bf16.mxu0 0
      %684 = vmatpush1.bf16.msra.mxu0 0
      %685 = vmatprep.subr.bf16.mxu0 0
      %686 = vmatpush1.bf16.msra.mxu0 0
      %687 = vmatprep.subr.bf16.mxu0 0
      %688 = vmatpush1.bf16.msra.mxu0 0
      %689 = vmatprep.subr.bf16.mxu0 0
      %690 = vmatpush1.bf16.msra.mxu0 0
      %691 = vmatprep.subr.bf16.mxu0 0
      %692 = vmatpush1.bf16.msra.mxu0 0
      %693 = vmatprep.subr.bf16.mxu0 0
      %694 = vmatpush1.bf16.msra.mxu0 0
      %695 = vmatprep.subr.bf16.mxu0 0
      %696 = vmatpush1.bf16.msra.mxu0 0
      %697 = vmatprep.subr.bf16.mxu0 0
      %698 = vmatpush1.bf16.msra.mxu0 0
      %699 = vmatprep.subr.bf16.mxu0 0
      %700 = vmatpush1.bf16.msra.mxu0 0
      %701 = vmatprep.subr.bf16.mxu0 0
      %702 = vmatpush1.bf16.msra.mxu0 0
      %703 = vmatprep.subr.bf16.mxu0 0
      %704 = vmatpush1.bf16.msra.mxu0 0
      %705 = vmatprep.subr.bf16.mxu0 0
      %706 = vmatpush1.bf16.msra.mxu0 0
      %707 = vmatprep.subr.bf16.mxu0 0
      %708 = vmatpush1.bf16.msra.mxu0 0
      %709 = vmatprep.mubr.bf16.mxu0 0
      %710 = vmatmul.mubr.bf16.gmra.mrb[0].mxu0 %v672
      %v711 = vpop.f32.mrb[0].mxu0
      %v712 = vadd.f32 %v666, %v711
      %v713 = vpop.f32.mrb[0].mxu0
      %v714 = vpop.f32.mrb[0].mxu0
      %v715 = vpop.f32.mrb[0].mxu0
      %716 = vdwg.mxu0
      %717 = vrot.lane.b32.xlu0 %v389, 112
      %v718 = vpop.permute.xlu0 %717
      %719 = vrot.lane.b32.xlu0 %v389, 80
      %v720 = vpop.permute.xlu0 %719
      %v722 = vsel %vm393, %v718, 0
      %v725 = vsel %vm393, %v720, 0
      %727 = vmatprep.subr.bf16.mxu0 0
      %728 = vmatpush1.bf16.xpose.msra.mxu0 %v725
      %729 = vmatprep.subr.bf16.mxu0 0
      %730 = vmatpush1.bf16.xpose.msra.mxu0 0
      %731 = vmatprep.subr.bf16.mxu0 0
      %732 = vmatpush1.bf16.xpose.msra.mxu0 0
      %733 = vmatprep.subr.bf16.mxu0 0
      %734 = vmatpush1.bf16.xpose.msra.mxu0 0
      %735 = vmatprep.subr.bf16.mxu0 0
      %736 = vmatpush1.bf16.xpose.msra.mxu0 0
      %737 = vmatprep.subr.bf16.mxu0 0
      %738 = vmatpush1.bf16.xpose.msra.mxu0 0
      %739 = vmatprep.subr.bf16.mxu0 0
      %740 = vmatpush1.bf16.xpose.msra.mxu0 0
      %741 = vmatprep.subr.bf16.mxu0 0
      %742 = vmatpush1.bf16.xpose.msra.mxu0 0
      %743 = vmatprep.subr.bf16.mxu0 0
      %744 = vmatpush1.bf16.xpose.msra.mxu0 0
      %745 = vmatprep.subr.bf16.mxu0 0
      %746 = vmatpush1.bf16.xpose.msra.mxu0 0
      %747 = vmatprep.subr.bf16.mxu0 0
      %748 = vmatpush1.bf16.xpose.msra.mxu0 0
      %749 = vmatprep.subr.bf16.mxu0 0
      %750 = vmatpush1.bf16.xpose.msra.mxu0 0
      %751 = vmatprep.subr.bf16.mxu0 0
      %752 = vmatpush1.bf16.xpose.msra.mxu0 0
      %753 = vmatprep.subr.bf16.mxu0 0
      %754 = vmatpush1.bf16.xpose.msra.mxu0 0
      %755 = vmatprep.subr.bf16.mxu0 0
      %756 = vmatpush1.bf16.xpose.msra.mxu0 0
      %757 = vmatprep.subr.bf16.mxu0 0
      %758 = vmatpush1.bf16.xpose.msra.mxu0 0
      %759 = vmatprep.mubr.bf16.mxu0 0
      %760 = vmatmul.mubr.bf16.gmra.mrb[0].mxu0 %v722
      %v761 = vpop.f32.mrb[0].mxu0
      %v762 = vadd.f32 0.0, %v761
      %v763 = vpop.f32.mrb[0].mxu0
      %v764 = vpop.f32.mrb[0].mxu0
      %v765 = vpop.f32.mrb[0].mxu0
      %766 = vdwg.mxu0
      %v767 = vmul.f32 %v762, 0.35355338
      %v768 = vadd.f32 %v767, %v445
      %v769 = vsel %vm393, %v768, -inf
      %770 = vmax.xlane.f32.xlu0 %v769
      %v771 = vpop.xlane.xlu0 %770
      %v772 = vsub.f32 %v768, %v771
      %v773 = vmul.f32 %v772, 1.442695
      %v774 = vpow.pop %v773
      %v775 = vsel %vm393, %v774, 0.0
      %776 = vadd.xlane.f32.xlu0 %v775
      %v777 = vpop.xlane.xlu0 %776
      %v778 = vrcp.pop %v777
      %v779 = vmul.f32 %v774, %v778
      %v780 = vpack.c.bf16 %v779, %v779
      %781 = vrot.lane.b32.xlu0 %v389, 48
      %v782 = vpop.permute.xlu0 %781
      %v784 = vsel %vm393, %v780, 0
      %v787 = vsel %vm465, %v782, 0
      %789 = vmatprep.subr.bf16.mxu0 0
      %790 = vmatpush1.bf16.msra.mxu0 %v787
      %791 = vmatprep.subr.bf16.mxu0 0
      %792 = vmatpush1.bf16.msra.mxu0 0
      %793 = vmatprep.subr.bf16.mxu0 0
      %794 = vmatpush1.bf16.msra.mxu0 0
      %795 = vmatprep.subr.bf16.mxu0 0
      %796 = vmatpush1.bf16.msra.mxu0 0
      %797 = vmatprep.subr.bf16.mxu0 0
      %798 = vmatpush1.bf16.msra.mxu0 0
      %799 = vmatprep.subr.bf16.mxu0 0
      %800 = vmatpush1.bf16.msra.mxu0 0
      %801 = vmatprep.subr.bf16.mxu0 0
      %802 = vmatpush1.bf16.msra.mxu0 0
      %803 = vmatprep.subr.bf16.mxu0 0
      %804 = vmatpush1.bf16.msra.mxu0 0
      %805 = vmatprep.subr.bf16.mxu0 0
      %806 = vmatpush1.bf16.msra.mxu0 0
      %807 = vmatprep.subr.bf16.mxu0 0
      %808 = vmatpush1.bf16.msra.mxu0 0
      %809 = vmatprep.subr.bf16.mxu0 0
      %810 = vmatpush1.bf16.msra.mxu0 0
      %811 = vmatprep.subr.bf16.mxu0 0
      %812 = vmatpush1.bf16.msra.mxu0 0
      %813 = vmatprep.subr.bf16.mxu0 0
      %814 = vmatpush1.bf16.msra.mxu0 0
      %815 = vmatprep.subr.bf16.mxu0 0
      %816 = vmatpush1.bf16.msra.mxu0 0
      %817 = vmatprep.subr.bf16.mxu0 0
      %818 = vmatpush1.bf16.msra.mxu0 0
      %819 = vmatprep.subr.bf16.mxu0 0
      %820 = vmatpush1.bf16.msra.mxu0 0
      %821 = vmatprep.mubr.bf16.mxu0 0
      %822 = vmatmul.mubr.bf16.gmra.mrb[0].mxu0 %v784
      %v823 = vpop.f32.mrb[0].mxu0
      %v824 = vadd.f32 0.0, %v823
      %v825 = vpop.f32.mrb[0].mxu0
      %v826 = vpop.f32.mrb[0].mxu0
      %v827 = vpop.f32.mrb[0].mxu0
      %828 = vdwg.mxu0
      %v829 = vpack.c.bf16 %v824, %v824
      %v830 = vld [vmem:[%s4 + $0x8] sm:$0xf]
      %v832 = vsel %vm393, %v829, 0
      %v835 = vsel %vm465, %v830, 0
      %837 = vmatprep.subr.bf16.mxu0 0
      %838 = vmatpush1.bf16.msra.mxu0 %v835
      %839 = vmatprep.subr.bf16.mxu0 0
      %840 = vmatpush1.bf16.msra.mxu0 0
      %841 = vmatprep.subr.bf16.mxu0 0
      %842 = vmatpush1.bf16.msra.mxu0 0
      %843 = vmatprep.subr.bf16.mxu0 0
      %844 = vmatpush1.bf16.msra.mxu0 0
      %845 = vmatprep.subr.bf16.mxu0 0
      %846 = vmatpush1.bf16.msra.mxu0 0
      %847 = vmatprep.subr.bf16.mxu0 0
      %848 = vmatpush1.bf16.msra.mxu0 0
      %849 = vmatprep.subr.bf16.mxu0 0
      %850 = vmatpush1.bf16.msra.mxu0 0
      %851 = vmatprep.subr.bf16.mxu0 0
      %852 = vmatpush1.bf16.msra.mxu0 0
      %853 = vmatprep.subr.bf16.mxu0 0
      %854 = vmatpush1.bf16.msra.mxu0 0
      %855 = vmatprep.subr.bf16.mxu0 0
      %856 = vmatpush1.bf16.msra.mxu0 0
      %857 = vmatprep.subr.bf16.mxu0 0
      %858 = vmatpush1.bf16.msra.mxu0 0
      %859 = vmatprep.subr.bf16.mxu0 0
      %860 = vmatpush1.bf16.msra.mxu0 0
      %861 = vmatprep.subr.bf16.mxu0 0
      %862 = vmatpush1.bf16.msra.mxu0 0
      %863 = vmatprep.subr.bf16.mxu0 0
      %864 = vmatpush1.bf16.msra.mxu0 0
      %865 = vmatprep.subr.bf16.mxu0 0
      %866 = vmatpush1.bf16.msra.mxu0 0
      %867 = vmatprep.subr.bf16.mxu0 0
      %868 = vmatpush1.bf16.msra.mxu0 0
      %869 = vmatprep.mubr.bf16.mxu0 0
      %870 = vmatmul.mubr.bf16.gmra.mrb[0].mxu0 %v832
      %v871 = vpop.f32.mrb[0].mxu0
      %v872 = vadd.f32 0.0, %v871
      %v873 = vpop.f32.mrb[0].mxu0
      %v874 = vpop.f32.mrb[0].mxu0
      %v875 = vpop.f32.mrb[0].mxu0
      %876 = vdwg.mxu0
      %v877 = vadd.f32 %v712, %v872
      %878 = vrot.lane.b32.xlu0 %v389, 104
      %v879 = vpop.permute.xlu0 %878
      %880 = vrot.lane.b32.xlu0 %v389, 72
      %v881 = vpop.permute.xlu0 %880
      %v883 = vsel %vm393, %v879, 0
      %v886 = vsel %vm393, %v881, 0
      %888 = vmatprep.subr.bf16.mxu0 0
      %889 = vmatpush1.bf16.xpose.msra.mxu0 %v886
      %890 = vmatprep.subr.bf16.mxu0 0
      %891 = vmatpush1.bf16.xpose.msra.mxu0 0
      %892 = vmatprep.subr.bf16.mxu0 0
      %893 = vmatpush1.bf16.xpose.msra.mxu0 0
      %894 = vmatprep.subr.bf16.mxu0 0
      %895 = vmatpush1.bf16.xpose.msra.mxu0 0
      %896 = vmatprep.subr.bf16.mxu0 0
      %897 = vmatpush1.bf16.xpose.msra.mxu0 0
      %898 = vmatprep.subr.bf16.mxu0 0
      %899 = vmatpush1.bf16.xpose.msra.mxu0 0
      %900 = vmatprep.subr.bf16.mxu0 0
      %901 = vmatpush1.bf16.xpose.msra.mxu0 0
      %902 = vmatprep.subr.bf16.mxu0 0
      %903 = vmatpush1.bf16.xpose.msra.mxu0 0
      %904 = vmatprep.subr.bf16.mxu0 0
      %905 = vmatpush1.bf16.xpose.msra.mxu0 0
      %906 = vmatprep.subr.bf16.mxu0 0
      %907 = vmatpush1.bf16.xpose.msra.mxu0 0
      %908 = vmatprep.subr.bf16.mxu0 0
      %909 = vmatpush1.bf16.xpose.msra.mxu0 0
      %910 = vmatprep.subr.bf16.mxu0 0
      %911 = vmatpush1.bf16.xpose.msra.mxu0 0
      %912 = vmatprep.subr.bf16.mxu0 0
      %913 = vmatpush1.bf16.xpose.msra.mxu0 0
      %914 = vmatprep.subr.bf16.mxu0 0
      %915 = vmatpush1.bf16.xpose.msra.mxu0 0
      %916 = vmatprep.subr.bf16.mxu0 0
      %917 = vmatpush1.bf16.xpose.msra.mxu0 0
      %918 = vmatprep.subr.bf16.mxu0 0
      %919 = vmatpush1.bf16.xpose.msra.mxu0 0
      %920 = vmatprep.mubr.bf16.mxu0 0
      %921 = vmatmul.mubr.bf16.gmra.mrb[0].mxu0 %v883
      %v922 = vpop.f32.mrb[0].mxu0
      %v923 = vadd.f32 0.0, %v922
      %v924 = vpop.f32.mrb[0].mxu0
      %v925 = vpop.f32.mrb[0].mxu0
      %v926 = vpop.f32.mrb[0].mxu0
      %927 = vdwg.mxu0
      %v928 = vmul.f32 %v923, 0.35355338
      %v929 = vadd.f32 %v928, %v445
      %v930 = vsel %vm393, %v929, -inf
      %931 = vmax.xlane.f32.xlu0 %v930
      %v932 = vpop.xlane.xlu0 %931
      %v933 = vsub.f32 %v929, %v932
      %v934 = vmul.f32 %v933, 1.442695
      %v935 = vpow.pop %v934
      %v936 = vsel %vm393, %v935, 0.0
      %937 = vadd.xlane.f32.xlu0 %v936
      %v938 = vpop.xlane.xlu0 %937
      %v939 = vrcp.pop %v938
      %v940 = vmul.f32 %v935, %v939
      %v941 = vpack.c.bf16 %v940, %v940
      %942 = vrot.lane.b32.xlu0 %v389, 40
      %v943 = vpop.permute.xlu0 %942
      %v945 = vsel %vm393, %v941, 0
      %v948 = vsel %vm465, %v943, 0
      %950 = vmatprep.subr.bf16.mxu0 0
      %951 = vmatpush1.bf16.msra.mxu0 %v948
      %952 = vmatprep.subr.bf16.mxu0 0
      %953 = vmatpush1.bf16.msra.mxu0 0
      %954 = vmatprep.subr.bf16.mxu0 0
      %955 = vmatpush1.bf16.msra.mxu0 0
      %956 = vmatprep.subr.bf16.mxu0 0
      %957 = vmatpush1.bf16.msra.mxu0 0
      %958 = vmatprep.subr.bf16.mxu0 0
      %959 = vmatpush1.bf16.msra.mxu0 0
      %960 = vmatprep.subr.bf16.mxu0 0
      %961 = vmatpush1.bf16.msra.mxu0 0
      %962 = vmatprep.subr.bf16.mxu0 0
      %963 = vmatpush1.bf16.msra.mxu0 0
      %964 = vmatprep.subr.bf16.mxu0 0
      %965 = vmatpush1.bf16.msra.mxu0 0
      %966 = vmatprep.subr.bf16.mxu0 0
      %967 = vmatpush1.bf16.msra.mxu0 0
      %968 = vmatprep.subr.bf16.mxu0 0
      %969 = vmatpush1.bf16.msra.mxu0 0
      %970 = vmatprep.subr.bf16.mxu0 0
      %971 = vmatpush1.bf16.msra.mxu0 0
      %972 = vmatprep.subr.bf16.mxu0 0
      %973 = vmatpush1.bf16.msra.mxu0 0
      %974 = vmatprep.subr.bf16.mxu0 0
      %975 = vmatpush1.bf16.msra.mxu0 0
      %976 = vmatprep.subr.bf16.mxu0 0
      %977 = vmatpush1.bf16.msra.mxu0 0
      %978 = vmatprep.subr.bf16.mxu0 0
      %979 = vmatpush1.bf16.msra.mxu0 0
      %980 = vmatprep.subr.bf16.mxu0 0
      %981 = vmatpush1.bf16.msra.mxu0 0
      %982 = vmatprep.mubr.bf16.mxu0 0
      %983 = vmatmul.mubr.bf16.gmra.mrb[0].mxu0 %v945
      %v984 = vpop.f32.mrb[0].mxu0
      %v985 = vadd.f32 0.0, %v984
      %v986 = vpop.f32.mrb[0].mxu0
      %v987 = vpop.f32.mrb[0].mxu0
      %v988 = vpop.f32.mrb[0].mxu0
      %989 = vdwg.mxu0
      %v990 = vpack.c.bf16 %v985, %v985
      %v991 = vld [vmem:[%s4 + $0xc] sm:$0xf]
      %v993 = vsel %vm393, %v990, 0
      %v996 = vsel %vm465, %v991, 0
      %998 = vmatprep.subr.bf16.mxu0 0
      %999 = vmatpush1.bf16.msra.mxu0 %v996
      %1000 = vmatprep.subr.bf16.mxu0 0
      %1001 = vmatpush1.bf16.msra.mxu0 0
      %1002 = vmatprep.subr.bf16.mxu0 0
      %1003 = vmatpush1.bf16.msra.mxu0 0
      %1004 = vmatprep.subr.bf16.mxu0 0
      %1005 = vmatpush1.bf16.msra.mxu0 0
      %1006 = vmatprep.subr.bf16.mxu0 0
      %1007 = vmatpush1.bf16.msra.mxu0 0
      %1008 = vmatprep.subr.bf16.mxu0 0
      %1009 = vmatpush1.bf16.msra.mxu0 0
      %1010 = vmatprep.subr.bf16.mxu0 0
      %1011 = vmatpush1.bf16.msra.mxu0 0
      %1012 = vmatprep.subr.bf16.mxu0 0
      %1013 = vmatpush1.bf16.msra.mxu0 0
      %1014 = vmatprep.subr.bf16.mxu0 0
      %1015 = vmatpush1.bf16.msra.mxu0 0
      %1016 = vmatprep.subr.bf16.mxu0 0
      %1017 = vmatpush1.bf16.msra.mxu0 0
      %1018 = vmatprep.subr.bf16.mxu0 0
      %1019 = vmatpush1.bf16.msra.mxu0 0
      %1020 = vmatprep.subr.bf16.mxu0 0
      %1021 = vmatpush1.bf16.msra.mxu0 0
      %1022 = vmatprep.subr.bf16.mxu0 0
      %1023 = vmatpush1.bf16.msra.mxu0 0
      %1024 = vmatprep.subr.bf16.mxu0 0
      %1025 = vmatpush1.bf16.msra.mxu0 0
      %1026 = vmatprep.subr.bf16.mxu0 0
      %1027 = vmatpush1.bf16.msra.mxu0 0
      %1028 = vmatprep.subr.bf16.mxu0 0
      %1029 = vmatpush1.bf16.msra.mxu0 0
      %1030 = vmatprep.mubr.bf16.mxu0 0
      %1031 = vmatmul.mubr.bf16.gmra.mrb[0].mxu0 %v993
      %v1032 = vpop.f32.mrb[0].mxu0
      %v1033 = vadd.f32 0.0, %v1032
      %v1034 = vpop.f32.mrb[0].mxu0
      %v1035 = vpop.f32.mrb[0].mxu0
      %v1036 = vpop.f32.mrb[0].mxu0
      %1037 = vdwg.mxu0
      %v1038 = vadd.f32 %v877, %v1033
      %v1039 = vadd.f32 %v316, %v1038
      %v1040 = vld [vmem:[%s5] sm:$0x1]
      %v1042 = vlaneseq
      %v1043 = vshrl.u32 %v1042, 7
      %v1044 = vsub.s32 0, %v1043
      %v1045 = vrot.slane %v1040, %v1044
      %v1047 = vadd.f32 %v1039, %v1045
      %v1048 = vsel %vm341, %v1047, 0.0
      %1049 = vadd.xlane.f32.xlu0 %v1048
      %v1050 = vpop.xlane.xlu0 %1049
      %v1051 = vrcp.pop 32.0
      %v1052 = vmul.f32 %v1050, %v1051
      %v1053 = vsub.f32 %v1047, %v1052
      %v1054 = vmul.f32 %v1053, %v1053
      %v1055 = vsel %vm341, %v1054, 0.0
      %1056 = vadd.xlane.f32.xlu0 %v1055
      %v1057 = vpop.xlane.xlu0 %1056
      %v1058 = vmul.f32 %v1057, %v1051
      %v1059 = vadd.f32 %v1058, 1e-05
      %v1060 = vrsqrt.pop %v1059
      %v1061 = vmul.f32 %v1053, %v1060
      %v1062 = vld [vmem:[%s6] sm:$0x1]
      %v1064 = vlaneseq
      %v1065 = vshrl.u32 %v1064, 7
      %v1066 = vsub.s32 0, %v1065
      %v1067 = vrot.slane %v1062, %v1066
      %v1069 = vmul.f32 %v1061, %v1067
      %v1070 = vld [vmem:[%s7] sm:$0x1]
      %v1072 = vlaneseq
      %v1073 = vshrl.u32 %v1072, 7
      %v1074 = vsub.s32 0, %v1073
      %v1075 = vrot.slane %v1070, %v1074
      %v1077 = vadd.f32 %v1069, %v1075
      %1078 = vst.msk [vmem:[%s314] sm:$0xff] %vm341, %v1077
      %p1079 = scmp.lt.s32.totalorder %s19, 1
      %s1080 = scalar_select %p1079, %s19, 1
      %s1081 = smul.addr %s1080, 8
      %s1082 = scalar_lea.vmem %s8, %s1081
      // Predicated region
      $region53: #{disturbance_transformer.7} parent=51 // pred_check
        %p1083 = pneg %p215
      $region54: #{disturbance_transformer.7} parent=51 // pred_check_branch
        %1085 = sbr.rel (%p1083) target = $region56
      $region55: #{disturbance_transformer.7} parent=51 // pred_region
        _
      $region56: #{disturbance_transformer.7} parent=51 // pred_fallthru
        _
    $region52: #{disturbance_transformer.7} parent=5 // pred_fallthru
      _
    %p1086 = scmp.le.s32.totalorder 2, %s14
    // Predicated region
    $region57: #{disturbance_transformer.7} parent=5 // pred_check
      %p1087 = pneg %p1086
    $region58: #{disturbance_transformer.7} parent=5 // pred_check_branch
      %1089 = sbr.rel (%p1087) target = $region60
    $region59: #{disturbance_transformer.7} parent=5 // pred_region
      %s1090 = ssub.s32 %s14, 2
      // Predicated region
      $region61: #{disturbance_transformer.7} parent=59 // pred_check
        %p1091 = pneg %p221
      $region62: #{disturbance_transformer.7} parent=59 // pred_check_branch
        %1093 = sbr.rel (%p1091) target = $region64
      $region63: #{disturbance_transformer.7} parent=59 // pred_region
        %p1094 = scmp.lt.s32.totalorder %s20, 1
        %s1095 = scalar_select %p1094, %s20, 1
        %s1096 = smul.addr %s1095, 8
        %s1097 = scalar_lea.vmem %s8, %s1096
      $region64: #{disturbance_transformer.7} parent=59 // pred_fallthru
        _
    $region60: #{disturbance_transformer.7} parent=5 // pred_fallthru
      _
  $region6: #{disturbance_transformer.7} parent=0 // loop_footer
    %s18 = sadd.s32 1, %s14
  $region7: #{disturbance_transformer.7} parent=0 // loop_footer_branch
    %13 = sbr.rel target = $region3
  $region8: #{disturbance_transformer.7} parent=0 // loop_exit
    _

// kernel: disturbance_transformer.8
$region0: #{disturbance_transformer.8}
  #allocation0 [shape = 'u32[]', space=smem, size = 0x4, offset = 0x4, fixed_abs, tag = 'smem constant byte address 0x4 - core index']
  #allocation1 [shape = 'u32[144,128]{1,0:T(1,128)}', space=vmem, size = 0x12000, scoped, tag = 'internal scratch']
  #allocation2 [shape = 'f32[16,32]{1,0:T(8,128)}', space=vmem, size = 0x2000, scoped, tag = 'scratch operand']
  %s0 = inlined_call_operand.vmem [shape: f32[16,32], index: 0, kind: input, shape index: {}]
  %s1 = inlined_call_operand.vmem [shape: bf16[32,2048], index: 1, kind: input, shape index: {}]
  %s2 = inlined_call_operand.vmem [shape: f32[1,2048], index: 2, kind: input, shape index: {}]
  %s3 = inlined_call_operand.vmem [shape: bf16[2048,32], index: 3, kind: input, shape index: {}]
  %s4 = inlined_call_operand.vmem [shape: f32[1,32], index: 4, kind: input, shape index: {}]
  %s5 = inlined_call_operand.vmem [shape: f32[1,32], index: 5, kind: input, shape index: {}]
  %s6 = inlined_call_operand.vmem [shape: f32[1,32], index: 6, kind: input, shape index: {}]
  %s7 = inlined_call_operand.vmem [shape: f32[16,32], index: 7, kind: output, shape index: {}]
  %s8 = sld [smem:[#allocation0]]
  $region92: #{disturbance_transformer.8} parent=0
    _
  %s10 = ssub.s32 1, %s8
  %s11 = scalar_select 0, %s10, %s8
  $region1: #{disturbance_transformer.8} parent=0
    #allocation3 [shape = 'u8[65536]{0}', space=vmem, size = 0x10000, scoped, tag = 'input window, operand 1']
    loop: start=0, step=1, limit=6
    $region2: #{disturbance_transformer.8} parent=1 // loop_pre_header
      _
    $region3: #{disturbance_transformer.8} parent=1 // loop_header
      %s13 = sphi 0, %s17
      %p14 = scmp.ge.s32.totalorder %s13, 6
      %s20 = sphi 0, %s32
      %s21 = sphi 0, %s28
      %s22 = sphi 0, %s20
      %s23 = sphi 0, %s21
      %s24 = sphi 0, %s22
      %s25 = sphi 0, %s23
      %s35 = sphi 0, %s37
      %s38 = sphi 0, %s35
      %s39 = sphi 0, %s38
      %s55 = sphi 0, %s39
      %s61 = sphi 0, %s63
      %s64 = sphi 0, %s61
      %s65 = sphi 0, %s64
      %s81 = sphi 0, %s65
      %s87 = sphi 0, %s89
      %s90 = sphi 0, %s87
      %s91 = sphi 0, %s90
      %s107 = sphi 0, %s91
      %s113 = sphi 0, %s115
      %s116 = sphi 0, %s113
      %s117 = sphi 0, %s116
      %s133 = sphi 0, %s117
      %s137 = sphi 0, %s137
      %s139 = sphi 0, %s137
      %s140 = sphi 0, %s139
      %s154 = sphi 0, %s140
      %s158 = sphi 0, %s158
      %s160 = sphi 0, %s158
      %s161 = sphi 0, %s160
      %s175 = sphi 0, %s161
      %s179 = sphi 0, %s179
      %s181 = sphi 0, %s179
      %s182 = sphi 0, %s181
      %s196 = sphi 0, %s182
      %s202 = sphi 0, %s204
      %s205 = sphi 0, %s202
      %s206 = sphi 0, %s205
      %s222 = sphi 0, %s206
    $region4: #{disturbance_transformer.8} parent=1 // loop_header_branch
      %16 = sbr.rel (%p14) target = $region8
    $region5: #{disturbance_transformer.8} parent=1 // loop_body
      %s18 = ssub.s32 %s13, 1
      %s19 = ssub.s32 %s13, 2
      %s26 = sadd.s32 1, %s21
      %p27 = scmp.ge.s32.totalorder %s26, 4
      %s28 = scalar_select %p27, 0, %s26
      %s29 = sadd.s32 1, %s20
      %s30 = scalar_select %p27, %s29, %s20
      %p31 = scmp.ge.s32.totalorder %s30, 1
      %s32 = scalar_select %p31, 0, %s30
      %s33 = ssub.s32 %s20, %s32
      %p34 = scmp.eq.s32.totalorder %s33, 0
      %s36 = sadd.s32 %s35, 1
      %s37 = scalar_select %p34, %s35, %s36
      %p40 = pneg %p34
      %p41 = scmp.eq.s32.totalorder %s13, 3
      %p42 = por %p40, %p41
      %p43 = scmp.ne.s32.totalorder %s35, %s38
      %p44 = scmp.eq.s32.totalorder %s13, 0
      %p45 = por %p43, %p44
      %p46 = scmp.ne.s32.totalorder %s35, %s38
      %p47 = scmp.eq.s32.totalorder %s18, 3
      %p48 = por %p46, %p47
      %p49 = scmp.ne.s32.totalorder %s38, %s39
      %p50 = scmp.eq.s32.totalorder %s18, 0
      %p51 = por %p49, %p50
      %p52 = scmp.ne.s32.totalorder %s38, %s39
      %p53 = scmp.eq.s32.totalorder %s19, 3
      %p54 = por %p52, %p53
      %p56 = scmp.ne.s32.totalorder %s39, %s55
      %p57 = scmp.eq.s32.totalorder %s19, 0
      %p58 = por %p56, %p57
      %s59 = ssub.s32 %s21, %s28
      %p60 = scmp.eq.s32.totalorder %s59, 0
      %s62 = sadd.s32 %s61, 1
      %s63 = scalar_select %p60, %s61, %s62
      %p66 = pneg %p60
      %p67 = scmp.eq.s32.totalorder %s13, 3
      %p68 = por %p66, %p67
      %p69 = scmp.ne.s32.totalorder %s61, %s64
      %p70 = scmp.eq.s32.totalorder %s13, 0
      %p71 = por %p69, %p70
      %p72 = scmp.ne.s32.totalorder %s61, %s64
      %p73 = scmp.eq.s32.totalorder %s18, 3
      %p74 = por %p72, %p73
      %p75 = scmp.ne.s32.totalorder %s64, %s65
      %p76 = scmp.eq.s32.totalorder %s18, 0
      %p77 = por %p75, %p76
      %p78 = scmp.ne.s32.totalorder %s64, %s65
      %p79 = scmp.eq.s32.totalorder %s19, 3
      %p80 = por %p78, %p79
      %p82 = scmp.ne.s32.totalorder %s65, %s81
      %p83 = scmp.eq.s32.totalorder %s19, 0
      %p84 = por %p82, %p83
      %s85 = ssub.s32 %s21, %s28
      %p86 = scmp.eq.s32.totalorder %s85, 0
      %s88 = sadd.s32 %s87, 1
      %s89 = scalar_select %p86, %s87, %s88
      %p92 = pneg %p86
      %p93 = scmp.eq.s32.totalorder %s13, 3
      %p94 = por %p92, %p93
      %p95 = scmp.ne.s32.totalorder %s87, %s90
      %p96 = scmp.eq.s32.totalorder %s13, 0
      %p97 = por %p95, %p96
      %p98 = scmp.ne.s32.totalorder %s87, %s90
      %p99 = scmp.eq.s32.totalorder %s18, 3
      %p100 = por %p98, %p99
      %p101 = scmp.ne.s32.totalorder %s90, %s91
      %p102 = scmp.eq.s32.totalorder %s18, 0
      %p103 = por %p101, %p102
      %p104 = scmp.ne.s32.totalorder %s90, %s91
      %p105 = scmp.eq.s32.totalorder %s19, 3
      %p106 = por %p104, %p105
      %p108 = scmp.ne.s32.totalorder %s91, %s107
      %p109 = scmp.eq.s32.totalorder %s19, 0
      %p110 = por %p108, %p109
      %s111 = ssub.s32 %s21, %s28
      %p112 = scmp.eq.s32.totalorder %s111, 0
      %s114 = sadd.s32 %s113, 1
      %s115 = scalar_select %p112, %s113, %s114
      %p118 = pneg %p112
      %p119 = scmp.eq.s32.totalorder %s13, 3
      %p120 = por %p118, %p119
      %p121 = scmp.ne.s32.totalorder %s113, %s116
      %p122 = scmp.eq.s32.totalorder %s13, 0
      %p123 = por %p121, %p122
      %p124 = scmp.ne.s32.totalorder %s113, %s116
      %p125 = scmp.eq.s32.totalorder %s18, 3
      %p126 = por %p124, %p125
      %p127 = scmp.ne.s32.totalorder %s116, %s117
      %p128 = scmp.eq.s32.totalorder %s18, 0
      %p129 = por %p127, %p128
      %p130 = scmp.ne.s32.totalorder %s116, %s117
      %p131 = scmp.eq.s32.totalorder %s19, 3
      %p132 = por %p130, %p131
      %p134 = scmp.ne.s32.totalorder %s117, %s133
      %p135 = scmp.eq.s32.totalorder %s19, 0
      %p136 = por %p134, %p135
      %s138 = sadd.s32 %s137, 1
      %p141 = scmp.eq.s32.totalorder %s13, 3
      %p142 = scmp.ne.s32.totalorder %s137, %s139
      %p143 = scmp.eq.s32.totalorder %s13, 0
      %p144 = por %p142, %p143
      %p145 = scmp.ne.s32.totalorder %s137, %s139
      %p146 = scmp.eq.s32.totalorder %s18, 3
      %p147 = por %p145, %p146
      %p148 = scmp.ne.s32.totalorder %s139, %s140
      %p149 = scmp.eq.s32.totalorder %s18, 0
      %p150 = por %p148, %p149
      %p151 = scmp.ne.s32.totalorder %s139, %s140
      %p152 = scmp.eq.s32.totalorder %s19, 3
      %p153 = por %p151, %p152
      %p155 = scmp.ne.s32.totalorder %s140, %s154
      %p156 = scmp.eq.s32.totalorder %s19, 0
      %p157 = por %p155, %p156
      %s159 = sadd.s32 %s158, 1
      %p162 = scmp.eq.s32.totalorder %s13, 3
      %p163 = scmp.ne.s32.totalorder %s158, %s160
      %p164 = scmp.eq.s32.totalorder %s13, 0
      %p165 = por %p163, %p164
      %p166 = scmp.ne.s32.totalorder %s158, %s160
      %p167 = scmp.eq.s32.totalorder %s18, 3
      %p168 = por %p166, %p167
      %p169 = scmp.ne.s32.totalorder %s160, %s161
      %p170 = scmp.eq.s32.totalorder %s18, 0
      %p171 = por %p169, %p170
      %p172 = scmp.ne.s32.totalorder %s160, %s161
      %p173 = scmp.eq.s32.totalorder %s19, 3
      %p174 = por %p172, %p173
      %p176 = scmp.ne.s32.totalorder %s161, %s175
      %p177 = scmp.eq.s32.totalorder %s19, 0
      %p178 = por %p176, %p177
      %s180 = sadd.s32 %s179, 1
      %p183 = scmp.eq.s32.totalorder %s13, 3
      %p184 = scmp.ne.s32.totalorder %s179, %s181
      %p185 = scmp.eq.s32.totalorder %s13, 0
      %p186 = por %p184, %p185
      %p187 = scmp.ne.s32.totalorder %s179, %s181
      %p188 = scmp.eq.s32.totalorder %s18, 3
      %p189 = por %p187, %p188
      %p190 = scmp.ne.s32.totalorder %s181, %s182
      %p191 = scmp.eq.s32.totalorder %s18, 0
      %p192 = por %p190, %p191
      %p193 = scmp.ne.s32.totalorder %s181, %s182
      %p194 = scmp.eq.s32.totalorder %s19, 3
      %p195 = por %p193, %p194
      %p197 = scmp.ne.s32.totalorder %s182, %s196
      %p198 = scmp.eq.s32.totalorder %s19, 0
      %p199 = por %p197, %p198
      %s200 = ssub.s32 %s20, %s32
      %p201 = scmp.eq.s32.totalorder %s200, 0
      %s203 = sadd.s32 %s202, 1
      %s204 = scalar_select %p201, %s202, %s203
      %p207 = pneg %p201
      %p208 = scmp.eq.s32.totalorder %s13, 3
      %p209 = por %p207, %p208
      %p210 = scmp.ne.s32.totalorder %s202, %s205
      %p211 = scmp.eq.s32.totalorder %s13, 0
      %p212 = por %p210, %p211
      %p213 = scmp.ne.s32.totalorder %s202, %s205
      %p214 = scmp.eq.s32.totalorder %s18, 3
      %p215 = por %p213, %p214
      %p216 = scmp.ne.s32.totalorder %s205, %s206
      %p217 = scmp.eq.s32.totalorder %s18, 0
      %p218 = por %p216, %p217
      %p219 = scmp.ne.s32.totalorder %s205, %s206
      %p220 = scmp.eq.s32.totalorder %s19, 3
      %p221 = por %p219, %p220
      %p223 = scmp.ne.s32.totalorder %s206, %s222
      %p224 = scmp.eq.s32.totalorder %s19, 0
      %p225 = por %p223, %p224
      %p226 = scmp.le.s32.totalorder 1, %s13
      %p227 = scmp.lt.s32.totalorder %s13, 5
      %p228 = pnand %p226, %p227
      %p229 = pneg %p228
      // Predicated region
      $region9: #{disturbance_transformer.8} parent=5 // pred_check
        _
      $region10: #{disturbance_transformer.8} parent=5 // pred_check_branch
        %231 = sbr.rel (%p228) target = $region12
      $region11: #{disturbance_transformer.8} parent=5 // pred_region
        %s232 = ssub.s32 %s13, 1
        // Predicated region
        $region13: #{disturbance_transformer.8} parent=11 // pred_check
          %p233 = pneg %p51
        $region14: #{disturbance_transformer.8} parent=11 // pred_check_branch
          %235 = sbr.rel (%p233) target = $region16
        $region15: #{disturbance_transformer.8} parent=11 // pred_region
          %s236 = smul.u32 2, %s22
          %p237 = scmp.lt.s32.totalorder %s236, 1
          %s238 = scalar_select %p237, %s236, 1
          %s239 = smul.addr %s238, 8
          %s240 = scalar_lea.vmem %s0, %s239
          %s241 = smul.u32 2, %s22
        $region16: #{disturbance_transformer.8} parent=11 // pred_fallthru
          _
        // Predicated region
        $region17: #{disturbance_transformer.8} parent=11 // pred_check
          %p242 = pneg %p150
        $region18: #{disturbance_transformer.8} parent=11 // pred_check_branch
          %244 = sbr.rel (%p242) target = $region20
        $region19: #{disturbance_transformer.8} parent=11 // pred_region
          _
        $region20: #{disturbance_transformer.8} parent=11 // pred_fallthru
          _
        // Predicated region
        $region21: #{disturbance_transformer.8} parent=11 // pred_check
          %p245 = pneg %p171
        $region22: #{disturbance_transformer.8} parent=11 // pred_check_branch
          %247 = sbr.rel (%p245) target = $region24
        $region23: #{disturbance_transformer.8} parent=11 // pred_region
          _
        $region24: #{disturbance_transformer.8} parent=11 // pred_fallthru
          _
        // Predicated region
        $region25: #{disturbance_transformer.8} parent=11 // pred_check
          %p248 = pneg %p192
        $region26: #{disturbance_transformer.8} parent=11 // pred_check_branch
          %250 = sbr.rel (%p248) target = $region28
        $region27: #{disturbance_transformer.8} parent=11 // pred_region
          _
        $region28: #{disturbance_transformer.8} parent=11 // pred_fallthru
          _
      $region12: #{disturbance_transformer.8} parent=5 // pred_fallthru
        _
      %p251 = scmp.lt.s32.totalorder %s13, 4
      // Predicated region
      $region29: #{disturbance_transformer.8} parent=5 // pred_check
        %p252 = pneg %p251
      $region30: #{disturbance_transformer.8} parent=5 // pred_check_branch
        %254 = sbr.rel (%p252) target = $region32
      $region31: #{disturbance_transformer.8} parent=5 // pred_region
        // Predicated region
        $region33: #{disturbance_transformer.8} parent=31 // pred_check
          %p255 = pneg %p71
        $region34: #{disturbance_transformer.8} parent=31 // pred_check_branch
          %257 = sbr.rel (%p255) target = $region36
        $region35: #{disturbance_transformer.8} parent=31 // pred_region
          %s258 = sand.u32 %s61, 1
          %s259 = sand.u32 %s61, 1
          %s260 = smul.addr %s259, 64
          %s261 = scalar_lea.vmem [#allocation3], %s260
          %s262 = smul.u32 4, %s21
          %s263 = smul.addr %s262, 4
          %s264 = scalar_lea.vmem %s1, %s263
          // Predicated region
          $region37: #{disturbance_transformer.8} parent=35 // pred_check
            _
          $region38: #{disturbance_transformer.8} parent=35 // pred_check_branch
            %266 = sbr.rel (0) target = $region40
          $region39: #{disturbance_transformer.8} parent=35 // pred_region
            // Predicated region
            $region41: #{disturbance_transformer.8} parent=39 // pred_check
              _
            $region42: #{disturbance_transformer.8} parent=39 // pred_check_branch
              %268 = sbr.rel (0) target = $region44
            $region43: #{disturbance_transformer.8} parent=39 // pred_region
              loop: start=0, step=1, limit=1
              $region45: #{disturbance_transformer.8} parent=43 // loop_pre_header
                _
              $region46: #{disturbance_transformer.8} parent=43 // loop_header
                %s270 = sphi 0, %s274
                %p271 = scmp.ge.s32.totalorder %s270, 1
                %s275 = sphi %s264, %s264
                %s276 = sphi %s261, %s261
              $region47: #{disturbance_transformer.8} parent=43 // loop_header_branch
                %273 = sbr.rel (%p271) target = $region51
              $region48: #{disturbance_transformer.8} parent=43 // loop_body
                %v277 = vld [vmem:[%s275] sm:$0xff]
                %278 = vst [vmem:[%s276] sm:$0xff] %v277
                %v279 = vld [vmem:[%s275 + $0x8] sm:$0xff]
                %280 = vst [vmem:[%s276 + $0x8] sm:$0xff] %v279
                %v281 = vld [vmem:[%s275 + $0x40] sm:$0xff]
                %282 = vst [vmem:[%s276 + $0x10] sm:$0xff] %v281
                %v283 = vld [vmem:[%s275 + $0x48] sm:$0xff]
                %284 = vst [vmem:[%s276 + $0x18] sm:$0xff] %v283
                %v285 = vld [vmem:[%s275 + $0x80] sm:$0xff]
                %286 = vst [vmem:[%s276 + $0x20] sm:$0xff] %v285
                %v287 = vld [vmem:[%s275 + $0x88] sm:$0xff]
                %288 = vst [vmem:[%s276 + $0x28] sm:$0xff] %v287
                %v289 = vld [vmem:[%s275 + $0xc0] sm:$0xff]
                %290 = vst [vmem:[%s276 + $0x30] sm:$0xff] %v289
                %v291 = vld [vmem:[%s275 + $0xc8] sm:$0xff]
                %292 = vst [vmem:[%s276 + $0x38] sm:$0xff] %v291
              $region49: #{disturbance_transformer.8} parent=43 // loop_footer
                %s274 = sadd.s32 1, %s270
              $region50: #{disturbance_transformer.8} parent=43 // loop_footer_branch
                %269 = sbr.rel target = $region46
              $region51: #{disturbance_transformer.8} parent=43 // loop_exit
                _
            $region44: #{disturbance_transformer.8} parent=39 // pred_fallthru
              _
            // Predicated region
            $region52: #{disturbance_transformer.8} parent=39 // pred_check
              _
            $region53: #{disturbance_transformer.8} parent=39 // pred_check_branch
              %294 = sbr.rel target = $region55
            $region54: #{disturbance_transformer.8} parent=39 // pred_region
              _
            $region55: #{disturbance_transformer.8} parent=39 // pred_fallthru
              _
          $region40: #{disturbance_transformer.8} parent=35 // pred_fallthru
            _
          %295 = vnop
        $region36: #{disturbance_transformer.8} parent=31 // pred_fallthru
          _
        // Predicated region
        $region56: #{disturbance_transformer.8} parent=31 // pred_check
          %p296 = pneg %p97
        $region57: #{disturbance_transformer.8} parent=31 // pred_check_branch
          %298 = sbr.rel (%p296) target = $region59
        $region58: #{disturbance_transformer.8} parent=31 // pred_region
          %s299 = smul.u32 4, %s21
          %p300 = scmp.lt.s32.totalorder %s299, 15
          %s301 = scalar_select %p300, %s299, 15
          %s302 = scalar_lea.vmem %s2, %s301
          %s303 = smul.u32 4, %s21
        $region59: #{disturbance_transformer.8} parent=31 // pred_fallthru
          _
        // Predicated region
        $region60: #{disturbance_transformer.8} parent=31 // pred_check
          %p304 = pneg %p123
        $region61: #{disturbance_transformer.8} parent=31 // pred_check_branch
          %306 = sbr.rel (%p304) target = $region63
        $region62: #{disturbance_transformer.8} parent=31 // pred_region
          %s307 = smul.u32 64, %s21
          %p308 = scmp.lt.s32.totalorder %s307, 255
          %s309 = scalar_select %p308, %s307, 255
          %s310 = smul.addr %s309, 4
          %s311 = scalar_lea.vmem %s3, %s310
          %s312 = smul.u32 64, %s21
        $region63: #{disturbance_transformer.8} parent=31 // pred_fallthru
          _
      $region32: #{disturbance_transformer.8} parent=5 // pred_fallthru
        _
      %p313 = scmp.le.s32.totalorder 1, %s13
      %p314 = scmp.lt.s32.totalorder %s13, 5
      %p315 = pnand %p313, %p314
      %p316 = pneg %p315
      // Predicated region
      $region64: #{disturbance_transformer.8} parent=5 // pred_check
        _
      $region65: #{disturbance_transformer.8} parent=5 // pred_check_branch
        %318 = sbr.rel (%p315) target = $region67
      $region66: #{disturbance_transformer.8} parent=5 // pred_region
        %s319 = ssub.s32 %s13, 1
        %s320 = sand.u32 %s64, 1
        %s321 = sand.u32 %s64, 1
        %s322 = smul.addr %s321, 64
        %s323 = scalar_lea.vmem [#allocation3], %s322
        // Predicated region
        $region68: #{disturbance_transformer.8} parent=66 // pred_check
          %p324 = pneg %p77
        $region69: #{disturbance_transformer.8} parent=66 // pred_check_branch
          %326 = sbr.rel (%p324) target = $region71
        $region70: #{disturbance_transformer.8} parent=66 // pred_region
          _
        $region71: #{disturbance_transformer.8} parent=66 // pred_fallthru
          _
        %s327 = smul.u32 2, %s22
        %p328 = scmp.lt.s32.totalorder %s327, 1
        %s329 = scalar_select %p328, %s327, 1
        %s330 = smul.addr %s329, 8
        %s331 = scalar_lea.vmem %s0, %s330
        %p332 = pneg %p51
        %p333 = pneg %p48
        %s334 = sand.u32 %s64, 1
        %s335 = sand.u32 %s64, 1
        %s336 = smul.addr %s335, 64
        %s337 = scalar_lea.vmem [#allocation3], %s336
        %p338 = pneg %p77
        %p339 = pneg %p74
        %s340 = smul.u32 4, %s23
        %p341 = scmp.lt.s32.totalorder %s340, 15
        %s342 = scalar_select %p341, %s340, 15
        %s343 = scalar_lea.vmem %s2, %s342
        %p344 = pneg %p103
        %p345 = pneg %p100
        %s346 = smul.u32 64, %s23
        %p347 = scmp.lt.s32.totalorder %s346, 255
        %s348 = scalar_select %p347, %s346, 255
        %s349 = smul.addr %s348, 4
        %s350 = scalar_lea.vmem %s3, %s349
        %p351 = pneg %p129
        %p352 = pneg %p126
        %p353 = pneg %p150
        %p354 = pneg %p147
        %p355 = pneg %p171
        %p356 = pneg %p168
        %p357 = pneg %p192
        %p358 = pneg %p189
        %p359 = pneg %p218
        %p360 = pneg %p215
        %s361 = smul.u32 2, %s22
        %p362 = scmp.lt.s32.totalorder %s361, 1
        %s363 = scalar_select %p362, %s361, 1
        %s364 = smul.addr %s363, 8
        %s365 = scalar_lea.vmem %s7, %s364
        %s366 = smul.u32 2, %s22
        %p367 = scmp.lt.s32.totalorder %s366, 1
        %s368 = scalar_select %p367, %s366, 1
        %s369 = smul.addr %s368, 8
        %s370 = scalar_lea.vmem %s0, %s369
        %s371 = smul.u32 2, %s22
        %s372 = smul.u32 4, %s23
        %s373 = smul.u32 4, %s23
        %p374 = scmp.lt.s32.totalorder %s373, 15
        %s375 = scalar_select %p374, %s373, 15
        %s376 = scalar_lea.vmem %s2, %s375
        %s377 = smul.u32 4, %s23
        %s378 = smul.u32 64, %s23
        %p379 = scmp.lt.s32.totalorder %s378, 255
        %s380 = scalar_select %p379, %s378, 255
        %s381 = smul.addr %s380, 4
        %s382 = scalar_lea.vmem %s3, %s381
        %s383 = smul.u32 64, %s23
        %s384 = smul.u32 2, %s22
        %p385 = scmp.lt.s32.totalorder %s384, 1
        %s386 = scalar_select %p385, %s384, 1
        %s387 = smul.addr %s386, 8
        %s388 = scalar_lea.vmem %s7, %s387
        %s389 = smul.u32 2, %s22
        %p391 = scmp.eq.s32.totalorder %s23, 0
        // Predicated region
        $region72: #{disturbance_transformer.8} parent=66 // pred_check
          %p392 = pneg %p391
        $region73: #{disturbance_transformer.8} parent=66 // pred_check_branch
          %394 = sbr.rel (%p392) target = $region75
        $region74: #{disturbance_transformer.8} parent=66 // pred_region
          %vm395 = vcmask 261120
          %396 = vst.msk [vmem:[#allocation2] sm:$0xff] %vm395, 0.0
          %397 = vst.msk [vmem:[#allocation2 + $0x8] sm:$0xff] %vm395, 0.0
        $region75: #{disturbance_transformer.8} parent=66 // pred_fallthru
          _
        %v398 = vld [vmem:[%s370] sm:$0xff]
        %v399 = vld [vmem:[%s370 + $0x8] sm:$0xff]
        %v400 = vpack.c.bf16 %v399, %v398
        %v401 = vld [vmem:[%s323] sm:$0xff]
        %v402 = vld [vmem:[%s323 + $0x8] sm:$0xff]
        %v403 = vld [vmem:[%s323 + $0x10] sm:$0xff]
        %v404 = vld [vmem:[%s323 + $0x18] sm:$0xff]
        %v405 = vld [vmem:[%s323 + $0x20] sm:$0xff]
        %v406 = vld [vmem:[%s323 + $0x28] sm:$0xff]
        %v407 = vld [vmem:[%s323 + $0x30] sm:$0xff]
        %v408 = vld [vmem:[%s323 + $0x38] sm:$0xff]
        %v409 = vld [vmem:[%s376] sm:$0xf]
        %v411 = vlaneseq
        %v412 = vshrl.u32 %v411, 7
        %v413 = vsub.s32 0, %v412
        %v414 = vrot.slane %v409, %v413
        %v415 = vlaneseq
        %v416 = vshrl.u32 %v415, 7
        %v417 = vsub.s32 1, %v416
        %v418 = vrot.slane %v409, %v417
        %v419 = vlaneseq
        %v420 = vshrl.u32 %v419, 7
        %v421 = vsub.s32 2, %v420
        %v422 = vrot.slane %v409, %v421
        %v423 = vlaneseq
        %v424 = vshrl.u32 %v423, 7
        %v425 = vsub.s32 3, %v424
        %v426 = vrot.slane %v409, %v425
        %v439 = vunpack.c.l.b16 %v401
        %v440 = vunpack.c.h.b16 %v401
        %v441 = vunpack.c.l.b16 %v402
        %v442 = vunpack.c.h.b16 %v402
        %v443 = vunpack.c.l.b16 %v403
        %v444 = vunpack.c.h.b16 %v403
        %v445 = vunpack.c.l.b16 %v404
        %v446 = vunpack.c.h.b16 %v404
        %v447 = vunpack.c.l.b16 %v405
        %v448 = vunpack.c.h.b16 %v405
        %v449 = vunpack.c.l.b16 %v406
        %v450 = vunpack.c.h.b16 %v406
        %v451 = vunpack.c.l.b16 %v407
        %v452 = vunpack.c.h.b16 %v407
        %v453 = vunpack.c.l.b16 %v408
        %v454 = vunpack.c.h.b16 %v408
        %v455 = vpack.c.b16 %v443, %v439
        %v456 = vpack.c.b16 %v444, %v440
        %v457 = vpack.c.b16 %v445, %v441
        %v458 = vpack.c.b16 %v446, %v442
        %v459 = vpack.c.b16 %v451, %v447
        %v460 = vpack.c.b16 %v452, %v448
        %v461 = vpack.c.b16 %v453, %v449
        %v462 = vpack.c.b16 %v454, %v450
        %vm471 = vcmask 261120
        %v473 = vsel %vm471, %v400, 0
        %475 = vmatprep.subr.bf16.mxu0 %v456
        %476 = vmatpush1.bf16.msra.mxu0 %v455
        %477 = vmatprep.subr.bf16.mxu0 %v460
        %478 = vmatpush1.bf16.msra.mxu0 %v459
        %479 = vmatprep.subr.bf16.mxu0 0
        %480 = vmatpush1.bf16.msra.mxu0 0
        %481 = vmatprep.subr.bf16.mxu0 0
        %482 = vmatpush1.bf16.msra.mxu0 0
        %483 = vmatprep.subr.bf16.mxu0 0
        %484 = vmatpush1.bf16.msra.mxu0 0
        %485 = vmatprep.subr.bf16.mxu0 0
        %486 = vmatpush1.bf16.msra.mxu0 0
        %487 = vmatprep.subr.bf16.mxu0 0
        %488 = vmatpush1.bf16.msra.mxu0 0
        %489 = vmatprep.subr.bf16.mxu0 0
        %490 = vmatpush1.bf16.msra.mxu0 0
        %491 = vmatprep.subr.bf16.mxu0 0
        %492 = vmatpush1.bf16.msra.mxu0 0
        %493 = vmatprep.subr.bf16.mxu0 0
        %494 = vmatpush1.bf16.msra.mxu0 0
        %495 = vmatprep.subr.bf16.mxu0 0
        %496 = vmatpush1.bf16.msra.mxu0 0
        %497 = vmatprep.subr.bf16.mxu0 0
        %498 = vmatpush1.bf16.msra.mxu0 0
        %499 = vmatprep.subr.bf16.mxu0 0
        %500 = vmatpush1.bf16.msra.mxu0 0
        %501 = vmatprep.subr.bf16.mxu0 0
        %502 = vmatpush1.bf16.msra.mxu0 0
        %503 = vmatprep.subr.bf16.mxu0 0
        %504 = vmatpush1.bf16.msra.mxu0 0
        %505 = vmatprep.subr.bf16.mxu0 0
        %506 = vmatpush1.bf16.msra.mxu0 0
        %507 = vmatprep.mubr.bf16.mxu0 0
        %508 = vmatmul.mubr.bf16.gmra.mrb[0].mxu0 %v473
        %v509 = vpop.f32.mrb[0].mxu0
        %v510 = vadd.f32 %v414, %v509
        %v511 = vpop.f32.mrb[0].mxu0
        %v512 = vadd.f32 %v418, %v511
        %v513 = vpop.f32.mrb[0].mxu0
        %v514 = vadd.f32 %v414, %v513
        %v515 = vpop.f32.mrb[0].mxu0
        %v516 = vadd.f32 %v418, %v515
        %517 = vdwg.mxu0
        %518 = vmatprep.subr.bf16.mxu0 %v458
        %519 = vmatpush1.bf16.msra.mxu0 %v457
        %520 = vmatprep.subr.bf16.mxu0 %v462
        %521 = vmatpush1.bf16.msra.mxu0 %v461
        %522 = vmatprep.subr.bf16.mxu0 0
        %523 = vmatpush1.bf16.msra.mxu0 0
        %524 = vmatprep.subr.bf16.mxu0 0
        %525 = vmatpush1.bf16.msra.mxu0 0
        %526 = vmatprep.subr.bf16.mxu0 0
        %527 = vmatpush1.bf16.msra.mxu0 0
        %528 = vmatprep.subr.bf16.mxu0 0
        %529 = vmatpush1.bf16.msra.mxu0 0
        %530 = vmatprep.subr.bf16.mxu0 0
        %531 = vmatpush1.bf16.msra.mxu0 0
        %532 = vmatprep.subr.bf16.mxu0 0
        %533 = vmatpush1.bf16.msra.mxu0 0
        %534 = vmatprep.subr.bf16.mxu0 0
        %535 = vmatpush1.bf16.msra.mxu0 0
        %536 = vmatprep.subr.bf16.mxu0 0
        %537 = vmatpush1.bf16.msra.mxu0 0
        %538 = vmatprep.subr.bf16.mxu0 0
        %539 = vmatpush1.bf16.msra.mxu0 0
        %540 = vmatprep.subr.bf16.mxu0 0
        %541 = vmatpush1.bf16.msra.mxu0 0
        %542 = vmatprep.subr.bf16.mxu0 0
        %543 = vmatpush1.bf16.msra.mxu0 0
        %544 = vmatprep.subr.bf16.mxu0 0
        %545 = vmatpush1.bf16.msra.mxu0 0
        %546 = vmatprep.subr.bf16.mxu0 0
        %547 = vmatpush1.bf16.msra.mxu0 0
        %548 = vmatprep.subr.bf16.mxu0 0
        %549 = vmatpush1.bf16.msra.mxu0 0
        %550 = vmatprep.mubr.bf16.mxu0 0
        %551 = vmatmul.mubr.bf16.gmra.mrb[0].mxu0 %v473
        %v552 = vpop.f32.mrb[0].mxu0
        %v553 = vadd.f32 %v422, %v552
        %v554 = vpop.f32.mrb[0].mxu0
        %v555 = vadd.f32 %v426, %v554
        %v556 = vpop.f32.mrb[0].mxu0
        %v557 = vadd.f32 %v422, %v556
        %v558 = vpop.f32.mrb[0].mxu0
        %v559 = vadd.f32 %v426, %v558
        %560 = vdwg.mxu0
        %v561 = vmax.f32 %v510, 0.0
        %v562 = vmax.f32 %v512, 0.0
        %v563 = vmax.f32 %v553, 0.0
        %v564 = vmax.f32 %v555, 0.0
        %v565 = vmax.f32 %v514, 0.0
        %v566 = vmax.f32 %v516, 0.0
        %v567 = vmax.f32 %v557, 0.0
        %v568 = vmax.f32 %v559, 0.0
        %v569 = vld [vmem:[#allocation2] sm:$0xff]
        %v570 = vld [vmem:[#allocation2 + $0x8] sm:$0xff]
        %v571 = vpack.c.bf16 %v565, %v561
        %v572 = vpack.c.bf16 %v566, %v562
        %v573 = vpack.c.bf16 %v567, %v563
        %v574 = vpack.c.bf16 %v568, %v564
        %v575 = vld [vmem:[%s382] sm:$0xf]
        %v576 = vld [vmem:[%s382 + $0x4] sm:$0xf]
        %v577 = vld [vmem:[%s382 + $0x8] sm:$0xf]
        %v578 = vld [vmem:[%s382 + $0xc] sm:$0xf]
        %v579 = vld [vmem:[%s382 + $0x10] sm:$0xf]
        %v580 = vld [vmem:[%s382 + $0x14] sm:$0xf]
        %v581 = vld [vmem:[%s382 + $0x18] sm:$0xf]
        %v582 = vld [vmem:[%s382 + $0x1c] sm:$0xf]
        %v583 = vld [vmem:[%s382 + $0x20] sm:$0xf]
        %v584 = vld [vmem:[%s382 + $0x24] sm:$0xf]
        %v585 = vld [vmem:[%s382 + $0x28] sm:$0xf]
        %v586 = vld [vmem:[%s382 + $0x2c] sm:$0xf]
        %v587 = vld [vmem:[%s382 + $0x30] sm:$0xf]
        %v588 = vld [vmem:[%s382 + $0x34] sm:$0xf]
        %v589 = vld [vmem:[%s382 + $0x38] sm:$0xf]
        %v590 = vld [vmem:[%s382 + $0x3c] sm:$0xf]
        %v591 = vld [vmem:[%s382 + $0x40] sm:$0xf]
        %v592 = vld [vmem:[%s382 + $0x44] sm:$0xf]
        %v593 = vld [vmem:[%s382 + $0x48] sm:$0xf]
        %v594 = vld [vmem:[%s382 + $0x4c] sm:$0xf]
        %v595 = vld [vmem:[%s382 + $0x50] sm:$0xf]
        %v596 = vld [vmem:[%s382 + $0x54] sm:$0xf]
        %v597 = vld [vmem:[%s382 + $0x58] sm:$0xf]
        %v598 = vld [vmem:[%s382 + $0x5c] sm:$0xf]
        %v599 = vld [vmem:[%s382 + $0x60] sm:$0xf]
        %v600 = vld [vmem:[%s382 + $0x64] sm:$0xf]
        %v601 = vld [vmem:[%s382 + $0x68] sm:$0xf]
        %v602 = vld [vmem:[%s382 + $0x6c] sm:$0xf]
        %v603 = vld [vmem:[%s382 + $0x70] sm:$0xf]
        %v604 = vld [vmem:[%s382 + $0x74] sm:$0xf]
        %v605 = vld [vmem:[%s382 + $0x78] sm:$0xf]
        %v606 = vld [vmem:[%s382 + $0x7c] sm:$0xf]
        %v607 = vld [vmem:[%s382 + $0x80] sm:$0xf]
        %v608 = vld [vmem:[%s382 + $0x84] sm:$0xf]
        %v609 = vld [vmem:[%s382 + $0x88] sm:$0xf]
        %v610 = vld [vmem:[%s382 + $0x8c] sm:$0xf]
        %v611 = vld [vmem:[%s382 + $0x90] sm:$0xf]
        %v612 = vld [vmem:[%s382 + $0x94] sm:$0xf]
        %v613 = vld [vmem:[%s382 + $0x98] sm:$0xf]
        %v614 = vld [vmem:[%s382 + $0x9c] sm:$0xf]
        %v615 = vld [vmem:[%s382 + $0xa0] sm:$0xf]
        %v616 = vld [vmem:[%s382 + $0xa4] sm:$0xf]
        %v617 = vld [vmem:[%s382 + $0xa8] sm:$0xf]
        %v618 = vld [vmem:[%s382 + $0xac] sm:$0xf]
        %v619 = vld [vmem:[%s382 + $0xb0] sm:$0xf]
        %v620 = vld [vmem:[%s382 + $0xb4] sm:$0xf]
        %v621 = vld [vmem:[%s382 + $0xb8] sm:$0xf]
        %v622 = vld [vmem:[%s382 + $0xbc] sm:$0xf]
        %v623 = vld [vmem:[%s382 + $0xc0] sm:$0xf]
        %v624 = vld [vmem:[%s382 + $0xc4] sm:$0xf]
        %v625 = vld [vmem:[%s382 + $0xc8] sm:$0xf]
        %v626 = vld [vmem:[%s382 + $0xcc] sm:$0xf]
        %v627 = vld [vmem:[%s382 + $0xd0] sm:$0xf]
        %v628 = vld [vmem:[%s382 + $0xd4] sm:$0xf]
        %v629 = vld [vmem:[%s382 + $0xd8] sm:$0xf]
        %v630 = vld [vmem:[%s382 + $0xdc] sm:$0xf]
        %v631 = vld [vmem:[%s382 + $0xe0] sm:$0xf]
        %v632 = vld [vmem:[%s382 + $0xe4] sm:$0xf]
        %v633 = vld [vmem:[%s382 + $0xe8] sm:$0xf]
        %v634 = vld [vmem:[%s382 + $0xec] sm:$0xf]
        %v635 = vld [vmem:[%s382 + $0xf0] sm:$0xf]
        %v636 = vld [vmem:[%s382 + $0xf4] sm:$0xf]
        %v637 = vld [vmem:[%s382 + $0xf8] sm:$0xf]
        %v638 = vld [vmem:[%s382 + $0xfc] sm:$0xf]
        %v703 = vunpack.c.l.b16 %v575
        %v704 = vunpack.c.l.b16 %v576
        %v705 = vunpack.c.l.b16 %v577
        %v706 = vunpack.c.l.b16 %v578
        %v707 = vunpack.c.l.b16 %v579
        %v708 = vunpack.c.l.b16 %v580
        %v709 = vunpack.c.l.b16 %v581
        %v710 = vunpack.c.l.b16 %v582
        %v711 = vunpack.c.l.b16 %v583
        %v712 = vunpack.c.l.b16 %v584
        %v713 = vunpack.c.l.b16 %v585
        %v714 = vunpack.c.l.b16 %v586
        %v715 = vunpack.c.l.b16 %v587
        %v716 = vunpack.c.l.b16 %v588
        %v717 = vunpack.c.l.b16 %v589
        %v718 = vunpack.c.l.b16 %v590
        %v719 = vunpack.c.l.b16 %v591
        %v720 = vunpack.c.l.b16 %v592
        %v721 = vunpack.c.l.b16 %v593
        %v722 = vunpack.c.l.b16 %v594
        %v723 = vunpack.c.l.b16 %v595
        %v724 = vunpack.c.l.b16 %v596
        %v725 = vunpack.c.l.b16 %v597
        %v726 = vunpack.c.l.b16 %v598
        %v727 = vunpack.c.l.b16 %v599
        %v728 = vunpack.c.l.b16 %v600
        %v729 = vunpack.c.l.b16 %v601
        %v730 = vunpack.c.l.b16 %v602
        %v731 = vunpack.c.l.b16 %v603
        %v732 = vunpack.c.l.b16 %v604
        %v733 = vunpack.c.l.b16 %v605
        %v734 = vunpack.c.l.b16 %v606
        %v735 = vunpack.c.l.b16 %v607
        %v736 = vunpack.c.l.b16 %v608
        %v737 = vunpack.c.l.b16 %v609
        %v738 = vunpack.c.l.b16 %v610
        %v739 = vunpack.c.l.b16 %v611
        %v740 = vunpack.c.l.b16 %v612
        %v741 = vunpack.c.l.b16 %v613
        %v742 = vunpack.c.l.b16 %v614
        %v743 = vunpack.c.l.b16 %v615
        %v744 = vunpack.c.l.b16 %v616
        %v745 = vunpack.c.l.b16 %v617
        %v746 = vunpack.c.l.b16 %v618
        %v747 = vunpack.c.l.b16 %v619
        %v748 = vunpack.c.l.b16 %v620
        %v749 = vunpack.c.l.b16 %v621
        %v750 = vunpack.c.l.b16 %v622
        %v751 = vunpack.c.l.b16 %v623
        %v752 = vunpack.c.l.b16 %v624
        %v753 = vunpack.c.l.b16 %v625
        %v754 = vunpack.c.l.b16 %v626
        %v755 = vunpack.c.l.b16 %v627
        %v756 = vunpack.c.l.b16 %v628
        %v757 = vunpack.c.l.b16 %v629
        %v758 = vunpack.c.l.b16 %v630
        %v759 = vunpack.c.l.b16 %v631
        %v760 = vunpack.c.l.b16 %v632
        %v761 = vunpack.c.l.b16 %v633
        %v762 = vunpack.c.l.b16 %v634
        %v763 = vunpack.c.l.b16 %v635
        %v764 = vunpack.c.l.b16 %v636
        %v765 = vunpack.c.l.b16 %v637
        %v766 = vunpack.c.l.b16 %v638
        %v767 = vpack.c.b16 %v704, %v703
        %v768 = vpack.c.b16 %v706, %v705
        %v769 = vpack.c.b16 %v708, %v707
        %v770 = vpack.c.b16 %v710, %v709
        %v771 = vpack.c.b16 %v712, %v711
        %v772 = vpack.c.b16 %v714, %v713
        %v773 = vpack.c.b16 %v716, %v715
        %v774 = vpack.c.b16 %v718, %v717
        %v775 = vpack.c.b16 %v720, %v719
        %v776 = vpack.c.b16 %v722, %v721
        %v777 = vpack.c.b16 %v724, %v723
        %v778 = vpack.c.b16 %v726, %v725
        %v779 = vpack.c.b16 %v728, %v727
        %v780 = vpack.c.b16 %v730, %v729
        %v781 = vpack.c.b16 %v732, %v731
        %v782 = vpack.c.b16 %v734, %v733
        %v783 = vpack.c.b16 %v736, %v735
        %v784 = vpack.c.b16 %v738, %v737
        %v785 = vpack.c.b16 %v740, %v739
        %v786 = vpack.c.b16 %v742, %v741
        %v787 = vpack.c.b16 %v744, %v743
        %v788 = vpack.c.b16 %v746, %v745
        %v789 = vpack.c.b16 %v748, %v747
        %v790 = vpack.c.b16 %v750, %v749
        %v791 = vpack.c.b16 %v752, %v751
        %v792 = vpack.c.b16 %v754, %v753
        %v793 = vpack.c.b16 %v756, %v755
        %v794 = vpack.c.b16 %v758, %v757
        %v795 = vpack.c.b16 %v760, %v759
        %v796 = vpack.c.b16 %v762, %v761
        %v797 = vpack.c.b16 %v764, %v763
        %v798 = vpack.c.b16 %v766, %v765
        %831 = vmatprep.subr.bf16.mxu0 0
        %832 = vmatpush1.bf16.msra.mxu0 %v767
        %833 = vmatprep.subr.bf16.mxu0 0
        %834 = vmatpush1.bf16.msra.mxu0 %v768
        %835 = vmatprep.subr.bf16.mxu0 0
        %836 = vmatpush1.bf16.msra.mxu0 %v769
        %837 = vmatprep.subr.bf16.mxu0 0
        %838 = vmatpush1.bf16.msra.mxu0 %v770
        %839 = vmatprep.subr.bf16.mxu0 0
        %840 = vmatpush1.bf16.msra.mxu0 %v771
        %841 = vmatprep.subr.bf16.mxu0 0
        %842 = vmatpush1.bf16.msra.mxu0 %v772
        %843 = vmatprep.subr.bf16.mxu0 0
        %844 = vmatpush1.bf16.msra.mxu0 %v773
        %845 = vmatprep.subr.bf16.mxu0 0
        %846 = vmatpush1.bf16.msra.mxu0 %v774
        %847 = vmatprep.subr.bf16.mxu0 0
        %848 = vmatpush1.bf16.msra.mxu0 %v775
        %849 = vmatprep.subr.bf16.mxu0 0
        %850 = vmatpush1.bf16.msra.mxu0 %v776
        %851 = vmatprep.subr.bf16.mxu0 0
        %852 = vmatpush1.bf16.msra.mxu0 %v777
        %853 = vmatprep.subr.bf16.mxu0 0
        %854 = vmatpush1.bf16.msra.mxu0 %v778
        %855 = vmatprep.subr.bf16.mxu0 0
        %856 = vmatpush1.bf16.msra.mxu0 %v779
        %857 = vmatprep.subr.bf16.mxu0 0
        %858 = vmatpush1.bf16.msra.mxu0 %v780
        %859 = vmatprep.subr.bf16.mxu0 0
        %860 = vmatpush1.bf16.msra.mxu0 %v781
        %861 = vmatprep.subr.bf16.mxu0 0
        %862 = vmatpush1.bf16.msra.mxu0 %v782
        %863 = vmatprep.mubr.bf16.mxu0 %v572
        %864 = vmatmul.mubr.bf16.gmra.mrb[0].mxu0 %v571
        %v865 = vpop.f32.mrb[0].mxu0
        %v866 = vadd.f32 0.0, %v865
        %v867 = vpop.f32.mrb[0].mxu0
        %v868 = vpop.f32.mrb[0].mxu0
        %v869 = vadd.f32 0.0, %v868
        %v870 = vpop.f32.mrb[0].mxu0
        %871 = vdwg.mxu0
        %872 = vmatprep.subr.bf16.mxu0 0
        %873 = vmatpush1.bf16.msra.mxu0 %v783
        %874 = vmatprep.subr.bf16.mxu0 0
        %875 = vmatpush1.bf16.msra.mxu0 %v784
        %876 = vmatprep.subr.bf16.mxu0 0
        %877 = vmatpush1.bf16.msra.mxu0 %v785
        %878 = vmatprep.subr.bf16.mxu0 0
        %879 = vmatpush1.bf16.msra.mxu0 %v786
        %880 = vmatprep.subr.bf16.mxu0 0
        %881 = vmatpush1.bf16.msra.mxu0 %v787
        %882 = vmatprep.subr.bf16.mxu0 0
        %883 = vmatpush1.bf16.msra.mxu0 %v788
        %884 = vmatprep.subr.bf16.mxu0 0
        %885 = vmatpush1.bf16.msra.mxu0 %v789
        %886 = vmatprep.subr.bf16.mxu0 0
        %887 = vmatpush1.bf16.msra.mxu0 %v790
        %888 = vmatprep.subr.bf16.mxu0 0
        %889 = vmatpush1.bf16.msra.mxu0 %v791
        %890 = vmatprep.subr.bf16.mxu0 0
        %891 = vmatpush1.bf16.msra.mxu0 %v792
        %892 = vmatprep.subr.bf16.mxu0 0
        %893 = vmatpush1.bf16.msra.mxu0 %v793
        %894 = vmatprep.subr.bf16.mxu0 0
        %895 = vmatpush1.bf16.msra.mxu0 %v794
        %896 = vmatprep.subr.bf16.mxu0 0
        %897 = vmatpush1.bf16.msra.mxu0 %v795
        %898 = vmatprep.subr.bf16.mxu0 0
        %899 = vmatpush1.bf16.msra.mxu0 %v796
        %900 = vmatprep.subr.bf16.mxu0 0
        %901 = vmatpush1.bf16.msra.mxu0 %v797
        %902 = vmatprep.subr.bf16.mxu0 0
        %903 = vmatpush1.bf16.msra.mxu0 %v798
        %904 = vmatprep.mubr.bf16.mxu0 %v574
        %905 = vmatmul.mubr.bf16.gmra.mrb[0].mxu0 %v573
        %v906 = vpop.f32.mrb[0].mxu0
        %v907 = vadd.f32 %v866, %v906
        %v908 = vpop.f32.mrb[0].mxu0
        %v909 = vpop.f32.mrb[0].mxu0
        %v910 = vadd.f32 %v869, %v909
        %v911 = vpop.f32.mrb[0].mxu0
        %912 = vdwg.mxu0
        %v913 = vadd.f32 %v569, %v907
        %v914 = vadd.f32 %v570, %v910
        %915 = vst.msk [vmem:[#allocation2] sm:$0xff] %vm471, %v913
        %916 = vst.msk [vmem:[#allocation2 + $0x8] sm:$0xff] %vm471, %v914
        %p917 = scmp.eq.s32.totalorder %s23, 3
        // Predicated region
        $region76: #{disturbance_transformer.8} parent=66 // pred_check
          %p918 = pneg %p917
        $region77: #{disturbance_transformer.8} parent=66 // pred_check_branch
          %920 = sbr.rel (%p918) target = $region79
        $region78: #{disturbance_transformer.8} parent=66 // pred_region
          %v921 = vld [vmem:[#allocation2] sm:$0xff]
          %v922 = vld [vmem:[#allocation2 + $0x8] sm:$0xff]
          %v923 = vadd.f32 %v398, %v921
          %v924 = vadd.f32 %v399, %v922
          %v925 = vld [vmem:[%s4] sm:$0x1]
          %v927 = vlaneseq
          %v928 = vshrl.u32 %v927, 7
          %v929 = vsub.s32 0, %v928
          %v930 = vrot.slane %v925, %v929
          %v932 = vadd.f32 %v923, %v930
          %v933 = vadd.f32 %v924, %v930
          %v934 = vsel %vm471, %v932, 0.0
          %935 = vadd.xlane.f32.xlu0 %v934
          %v936 = vpop.xlane.xlu0 %935
          %v937 = vsel %vm471, %v933, 0.0
          %938 = vadd.xlane.f32.xlu0 %v937
          %v939 = vpop.xlane.xlu0 %938
          %v940 = vrcp.pop 32.0
          %v941 = vmul.f32 %v936, %v940
          %v942 = vmul.f32 %v939, %v940
          %v943 = vsub.f32 %v932, %v941
          %v944 = vsub.f32 %v933, %v942
          %v945 = vmul.f32 %v943, %v943
          %v946 = vmul.f32 %v944, %v944
          %v947 = vsel %vm471, %v945, 0.0
          %948 = vadd.xlane.f32.xlu0 %v947
          %v949 = vpop.xlane.xlu0 %948
          %v950 = vsel %vm471, %v946, 0.0
          %951 = vadd.xlane.f32.xlu0 %v950
          %v952 = vpop.xlane.xlu0 %951
          %v953 = vmul.f32 %v949, %v940
          %v954 = vmul.f32 %v952, %v940
          %v955 = vadd.f32 %v953, 1e-05
          %v956 = vadd.f32 %v954, 1e-05
          %v957 = vrsqrt.pop %v955
          %v958 = vrsqrt.pop %v956
          %v959 = vmul.f32 %v943, %v957
          %v960 = vmul.f32 %v944, %v958
          %v961 = vld [vmem:[%s5] sm:$0x1]
          %v963 = vlaneseq
          %v964 = vshrl.u32 %v963, 7
          %v965 = vsub.s32 0, %v964
          %v966 = vrot.slane %v961, %v965
          %v968 = vmul.f32 %v959, %v966
          %v969 = vmul.f32 %v960, %v966
          %v970 = vld [vmem:[%s6] sm:$0x1]
          %v972 = vlaneseq
          %v973 = vshrl.u32 %v972, 7
          %v974 = vsub.s32 0, %v973
          %v975 = vrot.slane %v970, %v974
          %v977 = vadd.f32 %v968, %v975
          %v978 = vadd.f32 %v969, %v975
          %979 = vst.msk [vmem:[%s388] sm:$0xff] %vm471, %v977
          %980 = vst.msk [vmem:[%s388 + $0x8] sm:$0xff] %vm471, %v978
        $region79: #{disturbance_transformer.8} parent=66 // pred_fallthru
          _
        %s981 = smul.u32 2, %s22
        %p982 = scmp.lt.s32.totalorder %s981, 1
        %s983 = scalar_select %p982, %s981, 1
        %s984 = smul.addr %s983, 8
        %s985 = scalar_lea.vmem %s7, %s984
        // Predicated region
        $region80: #{disturbance_transformer.8} parent=66 // pred_check
          %p986 = pneg %p215
        $region81: #{disturbance_transformer.8} parent=66 // pred_check_branch
          %988 = sbr.rel (%p986) target = $region83
        $region82: #{disturbance_transformer.8} parent=66 // pred_region
          %s989 = smul.u32 2, %s22
        $region83: #{disturbance_transformer.8} parent=66 // pred_fallthru
          _
        // Predicated region
        $region84: #{disturbance_transformer.8} parent=66 // pred_check
          %p990 = pneg %p215
        $region85: #{disturbance_transformer.8} parent=66 // pred_check_branch
          %992 = sbr.rel (%p990) target = $region87
        $region86: #{disturbance_transformer.8} parent=66 // pred_region
          %s993 = smul.u32 2, %s22
          %p994 = scmp.lt.s32.totalorder %s993, 1
          %s995 = scalar_select %p994, %s993, 1
          %s996 = smul.addr %s995, 8
          %s997 = scalar_lea.vmem %s7, %s996
        $region87: #{disturbance_transformer.8} parent=66 // pred_fallthru
          _
      $region67: #{disturbance_transformer.8} parent=5 // pred_fallthru
        _
      %p998 = scmp.le.s32.totalorder 2, %s13
      // Predicated region
      $region88: #{disturbance_transformer.8} parent=5 // pred_check
        %p999 = pneg %p998
      $region89: #{disturbance_transformer.8} parent=5 // pred_check_branch
        %1001 = sbr.rel (%p999) target = $region91
      $region90: #{disturbance_transformer.8} parent=5 // pred_region
        %s1002 = ssub.s32 %s13, 2
      $region91: #{disturbance_transformer.8} parent=5 // pred_fallthru
        _
    $region6: #{disturbance_transformer.8} parent=1 // loop_footer
      %s17 = sadd.s32 1, %s13
    $region7: #{disturbance_transformer.8} parent=1 // loop_footer_branch
      %12 = sbr.rel target = $region3
    $region8: #{disturbance_transformer.8} parent=1 // loop_exit
      _

// kernel: disturbance_transformer.11
$region0: #{disturbance_transformer.11}
  #allocation0 [shape = 'u32[]', space=smem, size = 0x4, offset = 0x4, fixed_abs, tag = 'smem constant byte address 0x4 - core index']
  #allocation1 [shape = 'u32[144,128]{1,0:T(1,128)}', space=vmem, size = 0x12000, scoped, tag = 'internal scratch']
  %s0 = inlined_call_operand.vmem [shape: f32[16,32], index: 0, kind: input, shape index: {}]
  %s1 = inlined_call_operand.vmem [shape: bf16[32,128], index: 1, kind: input, shape index: {}]
  %s2 = inlined_call_operand.vmem [shape: f32[1,128], index: 2, kind: input, shape index: {}]
  %s3 = inlined_call_operand.vmem [shape: f32[16,128], index: 3, kind: output, shape index: {}]
  %s4 = sld [smem:[#allocation0]]
  $region22: #{disturbance_transformer.11} parent=0
    _
  %s6 = ssub.s32 1, %s4
  %s7 = scalar_select 0, %s6, %s4
  // Predicated region
  $region2: #{disturbance_transformer.11} parent=0 // pred_check
    _
  $region3: #{disturbance_transformer.11} parent=0 // pred_check_branch
    %9 = sbr.rel (0) target = $region5
  $region4: #{disturbance_transformer.11} parent=0 // pred_region
    _
  $region5: #{disturbance_transformer.11} parent=0 // pred_fallthru
    _
  // Predicated region
  $region6: #{disturbance_transformer.11} parent=0 // pred_check
    _
  $region7: #{disturbance_transformer.11} parent=0 // pred_check_branch
    %11 = sbr.rel (0) target = $region9
  $region8: #{disturbance_transformer.11} parent=0 // pred_region
    _
  $region9: #{disturbance_transformer.11} parent=0 // pred_fallthru
    _
  // Predicated region
  $region10: #{disturbance_transformer.11} parent=0 // pred_check
    _
  $region11: #{disturbance_transformer.11} parent=0 // pred_check_branch
    %13 = sbr.rel (0) target = $region13
  $region12: #{disturbance_transformer.11} parent=0 // pred_region
    _
  $region13: #{disturbance_transformer.11} parent=0 // pred_fallthru
    _
  %v15 = vld [vmem:[%s0] sm:$0xff]
  %v16 = vld [vmem:[%s0 + $0x8] sm:$0xff]
  %v17 = vpack.c.bf16 %v16, %v15
  %v18 = vld [vmem:[%s1] sm:$0xf]
  %v19 = vld [vmem:[%s1 + $0x4] sm:$0xf]
  %v20 = vld [vmem:[%s1 + $0x8] sm:$0xf]
  %v21 = vld [vmem:[%s1 + $0xc] sm:$0xf]
  %v22 = vld [vmem:[%s2] sm:$0x1]
  %v24 = vlaneseq
  %v25 = vshrl.u32 %v24, 7
  %v26 = vsub.s32 0, %v25
  %v27 = vrot.slane %v22, %v26
  %v33 = vunpack.c.l.b16 %v18
  %v34 = vunpack.c.l.b16 %v19
  %v35 = vunpack.c.l.b16 %v20
  %v36 = vunpack.c.l.b16 %v21
  %v37 = vpack.c.b16 %v34, %v33
  %v38 = vpack.c.b16 %v36, %v35
  %vm41 = vcmask 261120
  %v43 = vsel %vm41, %v17, 0
  %45 = vmatprep.subr.bf16.mxu0 0
  %46 = vmatpush1.bf16.msra.mxu0 %v37
  %47 = vmatprep.subr.bf16.mxu0 0
  %48 = vmatpush1.bf16.msra.mxu0 %v38
  %49 = vmatprep.subr.bf16.mxu0 0
  %50 = vmatpush1.bf16.msra.mxu0 0
  %51 = vmatprep.subr.bf16.mxu0 0
  %52 = vmatpush1.bf16.msra.mxu0 0
  %53 = vmatprep.subr.bf16.mxu0 0
  %54 = vmatpush1.bf16.msra.mxu0 0
  %55 = vmatprep.subr.bf16.mxu0 0
  %56 = vmatpush1.bf16.msra.mxu0 0
  %57 = vmatprep.subr.bf16.mxu0 0
  %58 = vmatpush1.bf16.msra.mxu0 0
  %59 = vmatprep.subr.bf16.mxu0 0
  %60 = vmatpush1.bf16.msra.mxu0 0
  %61 = vmatprep.subr.bf16.mxu0 0
  %62 = vmatpush1.bf16.msra.mxu0 0
  %63 = vmatprep.subr.bf16.mxu0 0
  %64 = vmatpush1.bf16.msra.mxu0 0
  %65 = vmatprep.subr.bf16.mxu0 0
  %66 = vmatpush1.bf16.msra.mxu0 0
  %67 = vmatprep.subr.bf16.mxu0 0
  %68 = vmatpush1.bf16.msra.mxu0 0
  %69 = vmatprep.subr.bf16.mxu0 0
  %70 = vmatpush1.bf16.msra.mxu0 0
  %71 = vmatprep.subr.bf16.mxu0 0
  %72 = vmatpush1.bf16.msra.mxu0 0
  %73 = vmatprep.subr.bf16.mxu0 0
  %74 = vmatpush1.bf16.msra.mxu0 0
  %75 = vmatprep.subr.bf16.mxu0 0
  %76 = vmatpush1.bf16.msra.mxu0 0
  %77 = vmatprep.mubr.bf16.mxu0 0
  %78 = vmatmul.mubr.bf16.gmra.mrb[0].mxu0 %v43
  %v79 = vpop.f32.mrb[0].mxu0
  %v80 = vadd.f32 %v27, %v79
  %v81 = vpop.f32.mrb[0].mxu0
  %v82 = vpop.f32.mrb[0].mxu0
  %v83 = vadd.f32 %v27, %v82
  %v84 = vpop.f32.mrb[0].mxu0
  %85 = vdwg.mxu0
  %86 = vst [vmem:[%s3] sm:$0xff] %v80
  %87 = vst [vmem:[%s3 + $0x8] sm:$0xff] %v83
  // Predicated region
  $region14: #{disturbance_transformer.11} parent=0 // pred_check
    _
  $region15: #{disturbance_transformer.11} parent=0 // pred_check_branch
    %89 = sbr.rel (0) target = $region17
  $region16: #{disturbance_transformer.11} parent=0 // pred_region
    _
  $region17: #{disturbance_transformer.11} parent=0 // pred_fallthru
    _
  // Predicated region
  $region18: #{disturbance_transformer.11} parent=0 // pred_check
    _
  $region19: #{disturbance_transformer.11} parent=0 // pred_check_branch
    %91 = sbr.rel (0) target = $region21
  $region20: #{disturbance_transformer.11} parent=0 // pred_region
    _
  $region21: #{disturbance_transformer.11} parent=0 // pred_fallthru
    _

</llo_original>
